<compile_context>
chip_gen: v7x
topology: tpu7x:2x2x1
jax: 0.10.0
libtpu: 0.0.40
codegen_flags: <defaults>
</compile_context>

<pallas_src>
import math
import jax
import jax.numpy as jnp
from jax.experimental import pallas as pl
from jax.experimental.pallas import tpu as pltpu

DIM_H = 32
NUM_HEADS = 4
NUM_SIDES = 1
LN_EPS = 1e-5


def _layernorm(x, gamma, beta):
    mu = jnp.mean(x, axis=-1, keepdims=True)
    var = jnp.mean(jnp.square(x - mu), axis=-1, keepdims=True)
    xhat = (x - mu) * jax.lax.rsqrt(var + LN_EPS)
    return xhat * gamma + beta


def nova_mha_kernel(id_ref, side_ref,
                    idg_ref, idb_ref, sg_ref, sb_ref,
                    wq_ref, wk_ref, wv_ref, wo_ref, bo_ref,
                    out_ref, attn_ref):
    TB, S, H = id_ref.shape
    ns = side_ref.shape[2]
    nh = wq_ref.shape[0]
    dh = wq_ref.shape[2]

    residual = id_ref[...]                                   # (TB, S, H)
    id_n = _layernorm(residual, idg_ref[0, :], idb_ref[0, :])

    side = side_ref[...]                                     # (TB, S, ns, H)
    fused = id_n
    for idx in range(ns):                                    # static unroll
        fused = fused + _layernorm(side[:, :, idx, :], sg_ref[idx, :], sb_ref[idx, :])
    fused = fused * (1.0 / float(ns + 1))                    # 'mean' fusion

    # Flatten batch*seq for the projections (S = 8 keeps this a layout no-op).
    fused2 = fused.reshape(TB * S, H)
    idn2 = id_n.reshape(TB * S, H)

    scale = 1.0 / math.sqrt(H)                               # note: sqrt(dim_H), not sqrt(d_head)
    acc = jnp.zeros((TB * S, H), jnp.float32)
    for h in range(nh):                                      # static unroll over heads
        # Per-head projections via leading-dim indexing of the weight refs
        # (no lane slicing / relayouts).
        qh = jnp.dot(fused2, wq_ref[h], preferred_element_type=jnp.float32).reshape(TB, S, dh)
        kh = jnp.dot(fused2, wk_ref[h], preferred_element_type=jnp.float32).reshape(TB, S, dh)
        vh = jnp.dot(idn2, wv_ref[h], preferred_element_type=jnp.float32).reshape(TB, S, dh)

        logits = jnp.einsum('bqd,bkd->bqk', qh, kh,
                            preferred_element_type=jnp.float32) * scale   # (TB, S, S)
        m = jnp.max(logits, axis=-1, keepdims=True)
        e = jnp.exp(logits - m)
        denom = jnp.sum(e, axis=-1, keepdims=True)
        # EUP approx reciprocal + one Newton step (fp32-level accuracy, tiny tensor).
        r = pl.reciprocal(denom, approx=True)
        r = r * (2.0 - denom * r)
        a = e * r
        attn_ref[h, :, :, :] = a
        # TODO(synk): if A is only returned for API parity, store bf16 or skip to halve HBM traffic.

        oh = jnp.einsum('bqk,bkd->bqd', a, vh,
                        preferred_element_type=jnp.float32)               # (TB, S, dh)
        # Accumulate the out-projection per head — no lane-axis concatenate.
        acc = acc + jnp.dot(oh.reshape(TB * S, dh), wo_ref[h],
                            preferred_element_type=jnp.float32)

    out = residual.reshape(TB * S, H) + acc + bo_ref[0, :]
    out_ref[...] = out.reshape(TB, S, H)
    # TODO(synk): dropout / attn_dropout (ratio 0.0) and the optional mask argument are omitted.


def nova_mha_forward(id_x, side_x, params, *, tb=None):
    B, S, H = id_x.shape
    ns = side_x.shape[2]
    nh = NUM_HEADS
    dh = H // nh

    # Batch tile: amortize per-grid-step overhead. For large S, shrink tb (and/or
    # raise vmem_limit_bytes) so the double-buffered (nh, tb, S, S) attn block
    # stays within the scoped VMEM limit (tightest on v7x).
    if tb is None:
        tb = B
        for cand in (8, 4, 2, 1):
            if B % cand == 0 and cand <= B:
                tb = cand
                break
    assert B % tb == 0, "batch must be divisible by the batch tile"
    nb = B // tb

    # Head-major weight layouts so the kernel indexes heads on leading dims.
    wq_h = params["wq"].reshape(H, nh, dh).transpose(1, 0, 2)   # (nh, H, dh)
    wk_h = params["wk"].reshape(H, nh, dh).transpose(1, 0, 2)   # (nh, H, dh)
    wv_h = params["wv"].reshape(H, nh, dh).transpose(1, 0, 2)   # (nh, H, dh)
    wo_h = params["wo"].reshape(nh, dh, H)                      # (nh, dh, H)

    def full_spec(shape):
        nd = len(shape)
        return pl.BlockSpec(shape, lambda b, _nd=nd: (0,) * _nd)

    flops = 2 * B * (4 * S * H * H + 2 * nh * S * S * dh)
    transcendentals = B * nh * S * S
    bytes_accessed = 4 * (2 * B * S * H + B * S * ns * H + nh * B * S * S
                          + 4 * H * H + (3 + 2 * ns) * H)

    out, attn = pl.pallas_call(
        nova_mha_kernel,
        out_shape=(jax.ShapeDtypeStruct((B, S, H), jnp.float32),
                   jax.ShapeDtypeStruct((nh, B, S, S), jnp.float32)),
        grid=(nb,),
        in_specs=[
            pl.BlockSpec((tb, S, H), lambda b: (b, 0, 0)),
            pl.BlockSpec((tb, S, ns, H), lambda b: (b, 0, 0, 0)),
            full_spec((1, H)), full_spec((1, H)),
            full_spec((ns, H)), full_spec((ns, H)),
            full_spec((nh, H, dh)), full_spec((nh, H, dh)), full_spec((nh, H, dh)),
            full_spec((nh, dh, H)),
            full_spec((1, H)),
        ],
        out_specs=(pl.BlockSpec((tb, S, H), lambda b: (b, 0, 0)),
                   pl.BlockSpec((nh, tb, S, S), lambda b: (0, b, 0, 0))),
        compiler_params=pltpu.CompilerParams(
            dimension_semantics=("parallel",)),
        cost_estimate=pl.CostEstimate(
            flops=flops, transcendentals=transcendentals,
            bytes_accessed=bytes_accessed),
    )(id_x, side_x,
      params["id_gamma"], params["id_beta"],
      params["side_gamma"], params["side_beta"],
      wq_h, wk_h, wv_h, wo_h, params["bo"])

    # torch ordering: A[h*B + b]
    attn = attn.reshape(nh * B, S, S)
    return out, attn


def nova_mha_ref(id_x, side_x, params):
    """Pure-JAX reference mirroring the PyTorch forward."""
    B, S, H = id_x.shape
    ns = side_x.shape[2]
    nh = NUM_HEADS
    residual = id_x
    id_n = _layernorm(id_x, params["id_gamma"][0], params["id_beta"][0])
    sides = [_layernorm(side_x[:, :, i, :], params["side_gamma"][i], params["side_beta"][i])
             for i in range(ns)]
    fused = (id_n + sum(sides)) / float(ns + 1)
    q = fused @ params["wq"]
    k = fused @ params["wk"]
    v = id_n @ params["wv"]

    def split_heads(x):  # (B,S,H) -> (nh*B, S, dh), head-major (matches torch.cat(split,0))
        return jnp.concatenate(jnp.split(x, nh, axis=2), axis=0)

    Q_, K_, V_ = split_heads(q), split_heads(k), split_heads(v)
    A_ = jnp.einsum('bqd,bkd->bqk', Q_, K_) / math.sqrt(H)
    A = jax.nn.softmax(A_, axis=-1)
    O_ = jnp.concatenate(jnp.split(jnp.einsum('bqk,bkd->bqd', A, V_), nh, axis=0), axis=2)
    out = residual + O_ @ params["wo"] + params["bo"][0]
    return out, A


def make_params(key, H=DIM_H, ns=NUM_SIDES):
    ks = jax.random.split(key, 9)
    s = 1.0 / math.sqrt(H)
    return {
        "id_gamma": 1.0 + 0.1 * jax.random.normal(ks[0], (1, H), jnp.float32),
        "id_beta": 0.1 * jax.random.normal(ks[1], (1, H), jnp.float32),
        "side_gamma": 1.0 + 0.1 * jax.random.normal(ks[2], (ns, H), jnp.float32),
        "side_beta": 0.1 * jax.random.normal(ks[3], (ns, H), jnp.float32),
        "wq": s * jax.random.normal(ks[4], (H, H), jnp.float32),
        "wk": s * jax.random.normal(ks[5], (H, H), jnp.float32),
        "wv": s * jax.random.normal(ks[6], (H, H), jnp.float32),
        "wo": s * jax.random.normal(ks[7], (H, H), jnp.float32),
        "bo": 0.1 * jax.random.normal(ks[8], (1, H), jnp.float32),
    }


if __name__ == "__main__":
    B, S, H, ns = 4, 8, DIM_H, NUM_SIDES
    key = jax.random.PRNGKey(0)
    k_id, k_side, k_p = jax.random.split(key, 3)
    id_x = jax.random.normal(k_id, (B, S, H), jnp.float32)
    side_x = jax.random.normal(k_side, (B, S, ns, H), jnp.float32)
    params = make_params(k_p)

    # tb=2 -> grid=(2,): exercises the multi-batch-per-step pipeline.
    out, attn = nova_mha_forward(id_x, side_x, params, tb=2)
    out, attn = jax.block_until_ready(out), jax.block_until_ready(attn)

    out_ref, attn_ref = nova_mha_ref(id_x, side_x, params)
    assert out.shape == (B, S, H) and attn.shape == (NUM_HEADS * B, S, S)
    assert jnp.allclose(out, out_ref, rtol=1e-4, atol=1e-4), "output mismatch"
    assert jnp.allclose(attn, attn_ref, rtol=1e-4, atol=1e-4), "attention mismatch"
    print("KERNEL_OK")
</pallas_src>

<mosaic_0001>
module attributes {stable_mosaic.version = 11 : i64} {
  func.func @nova_mha_kernel(%arg0: i32, %arg1: memref<2x8x32xf32, #tpu.memory_space<vmem>>, %arg2: memref<2x8x1x32xf32, #tpu.memory_space<vmem>>, %arg3: memref<1x32xf32, #tpu.memory_space<vmem>>, %arg4: memref<1x32xf32, #tpu.memory_space<vmem>>, %arg5: memref<1x32xf32, #tpu.memory_space<vmem>>, %arg6: memref<1x32xf32, #tpu.memory_space<vmem>>, %arg7: memref<4x32x8xf32, #tpu.memory_space<vmem>>, %arg8: memref<4x32x8xf32, #tpu.memory_space<vmem>>, %arg9: memref<4x32x8xf32, #tpu.memory_space<vmem>>, %arg10: memref<4x8x32xf32, #tpu.memory_space<vmem>>, %arg11: memref<1x32xf32, #tpu.memory_space<vmem>>, %arg12: memref<2x8x32xf32, #tpu.memory_space<vmem>>, %arg13: memref<4x2x8x8xf32, #tpu.memory_space<vmem>>) attributes {dimension_semantics = [#tpu.dimension_semantics<parallel>], iteration_bounds = array<i64: 2>, scalar_prefetch = 0 : i64, scratch_operands = 0 : i64, tpu.core_type = #tpu.core_type<tc>, window_params = [{transform_indices = @transform_0, window_bounds = array<i64: 2, 8, 32>}, {transform_indices = @transform_1, window_bounds = array<i64: 2, 8, 1, 32>}, {pipeline_mode = #tpu.pipeline_mode<synchronous>, transform_indices = @transform_2, window_bounds = array<i64: 1, 32>}, {pipeline_mode = #tpu.pipeline_mode<synchronous>, transform_indices = @transform_3, window_bounds = array<i64: 1, 32>}, {pipeline_mode = #tpu.pipeline_mode<synchronous>, transform_indices = @transform_4, window_bounds = array<i64: 1, 32>}, {pipeline_mode = #tpu.pipeline_mode<synchronous>, transform_indices = @transform_5, window_bounds = array<i64: 1, 32>}, {pipeline_mode = #tpu.pipeline_mode<synchronous>, transform_indices = @transform_6, window_bounds = array<i64: 4, 32, 8>}, {pipeline_mode = #tpu.pipeline_mode<synchronous>, transform_indices = @transform_7, window_bounds = array<i64: 4, 32, 8>}, {pipeline_mode = #tpu.pipeline_mode<synchronous>, transform_indices = @transform_8, window_bounds = array<i64: 4, 32, 8>}, {pipeline_mode = #tpu.pipeline_mode<synchronous>, transform_indices = @transform_9, window_bounds = array<i64: 4, 8, 32>}, {pipeline_mode = #tpu.pipeline_mode<synchronous>, transform_indices = @transform_10, window_bounds = array<i64: 1, 32>}, {transform_indices = @transform_11, window_bounds = array<i64: 2, 8, 32>}, {transform_indices = @transform_12, window_bounds = array<i64: 4, 2, 8, 8>}]} {
    %c0 = arith.constant 0 : index
    %c0_0 = arith.constant 0 : index
    %c0_1 = arith.constant 0 : index
    %0 = vector.load %arg1[%c0, %c0_0, %c0_1] : memref<2x8x32xf32, #tpu.memory_space<vmem>>, vector<2x8x32xf32>
    %c0_2 = arith.constant 0 : index
    %c0_3 = arith.constant 0 : index
    %1 = vector.load %arg3[%c0_2, %c0_3] : memref<1x32xf32, #tpu.memory_space<vmem>>, vector<1x32xf32>
    %2 = vector.shape_cast %1 : vector<1x32xf32> to vector<32xf32>
    %c0_4 = arith.constant 0 : index
    %c0_5 = arith.constant 0 : index
    %3 = vector.load %arg4[%c0_4, %c0_5] : memref<1x32xf32, #tpu.memory_space<vmem>>, vector<1x32xf32>
    %4 = vector.shape_cast %3 : vector<1x32xf32> to vector<32xf32>
    %cst = arith.constant dense<0.000000e+00> : vector<2x8xf32>
    %5 = vector.multi_reduction <add>, %0, %cst [2] : vector<2x8x32xf32> to vector<2x8xf32>
    %6 = vector.shape_cast %5 : vector<2x8xf32> to vector<2x8x1xf32>
    %cst_6 = arith.constant 3.200000e+01 : f32
    %7 = vector.broadcast %cst_6 : f32 to vector<2x8x1xf32>
    %8 = arith.divf %6, %7 : vector<2x8x1xf32>
    %9 = vector.broadcast %8 : vector<2x8x1xf32> to vector<2x8x32xf32>
    %10 = arith.subf %0, %9 : vector<2x8x32xf32>
    %11 = arith.mulf %10, %10 : vector<2x8x32xf32>
    %cst_7 = arith.constant dense<0.000000e+00> : vector<2x8xf32>
    %12 = vector.multi_reduction <add>, %11, %cst_7 [2] : vector<2x8x32xf32> to vector<2x8xf32>
    %13 = vector.shape_cast %12 : vector<2x8xf32> to vector<2x8x1xf32>
    %cst_8 = arith.constant 3.200000e+01 : f32
    %14 = vector.broadcast %cst_8 : f32 to vector<2x8x1xf32>
    %15 = arith.divf %13, %14 : vector<2x8x1xf32>
    %16 = vector.broadcast %8 : vector<2x8x1xf32> to vector<2x8x32xf32>
    %17 = arith.subf %0, %16 : vector<2x8x32xf32>
    %cst_9 = arith.constant 9.99999974E-6 : f32
    %18 = vector.broadcast %cst_9 : f32 to vector<2x8x1xf32>
    %19 = arith.addf %15, %18 : vector<2x8x1xf32>
    %20 = math.rsqrt %19 : vector<2x8x1xf32>
    %21 = vector.broadcast %20 : vector<2x8x1xf32> to vector<2x8x32xf32>
    %22 = arith.mulf %17, %21 : vector<2x8x32xf32>
    %23 = vector.shape_cast %2 : vector<32xf32> to vector<1x1x32xf32>
    %24 = vector.broadcast %23 : vector<1x1x32xf32> to vector<2x8x32xf32>
    %25 = arith.mulf %22, %24 : vector<2x8x32xf32>
    %26 = vector.shape_cast %4 : vector<32xf32> to vector<1x1x32xf32>
    %27 = vector.broadcast %26 : vector<1x1x32xf32> to vector<2x8x32xf32>
    %28 = arith.addf %25, %27 : vector<2x8x32xf32>
    %c0_10 = arith.constant 0 : index
    %c0_11 = arith.constant 0 : index
    %c0_12 = arith.constant 0 : index
    %c0_13 = arith.constant 0 : index
    %29 = vector.load %arg2[%c0_10, %c0_11, %c0_12, %c0_13] : memref<2x8x1x32xf32, #tpu.memory_space<vmem>>, vector<2x8x1x32xf32>
    %30 = vector.shape_cast %29 : vector<2x8x1x32xf32> to vector<2x8x32xf32>
    %c0_14 = arith.constant 0 : index
    %c0_15 = arith.constant 0 : index
    %31 = vector.load %arg5[%c0_14, %c0_15] : memref<1x32xf32, #tpu.memory_space<vmem>>, vector<1x32xf32>
    %32 = vector.shape_cast %31 : vector<1x32xf32> to vector<32xf32>
    %c0_16 = arith.constant 0 : index
    %c0_17 = arith.constant 0 : index
    %33 = vector.load %arg6[%c0_16, %c0_17] : memref<1x32xf32, #tpu.memory_space<vmem>>, vector<1x32xf32>
    %34 = vector.shape_cast %33 : vector<1x32xf32> to vector<32xf32>
    %cst_18 = arith.constant dense<0.000000e+00> : vector<2x8xf32>
    %35 = vector.multi_reduction <add>, %30, %cst_18 [2] : vector<2x8x32xf32> to vector<2x8xf32>
    %36 = vector.shape_cast %35 : vector<2x8xf32> to vector<2x8x1xf32>
    %cst_19 = arith.constant 3.200000e+01 : f32
    %37 = vector.broadcast %cst_19 : f32 to vector<2x8x1xf32>
    %38 = arith.divf %36, %37 : vector<2x8x1xf32>
    %39 = vector.broadcast %38 : vector<2x8x1xf32> to vector<2x8x32xf32>
    %40 = arith.subf %30, %39 : vector<2x8x32xf32>
    %41 = arith.mulf %40, %40 : vector<2x8x32xf32>
    %cst_20 = arith.constant dense<0.000000e+00> : vector<2x8xf32>
    %42 = vector.multi_reduction <add>, %41, %cst_20 [2] : vector<2x8x32xf32> to vector<2x8xf32>
    %43 = vector.shape_cast %42 : vector<2x8xf32> to vector<2x8x1xf32>
    %cst_21 = arith.constant 3.200000e+01 : f32
    %44 = vector.broadcast %cst_21 : f32 to vector<2x8x1xf32>
    %45 = arith.divf %43, %44 : vector<2x8x1xf32>
    %46 = vector.broadcast %38 : vector<2x8x1xf32> to vector<2x8x32xf32>
    %47 = arith.subf %30, %46 : vector<2x8x32xf32>
    %cst_22 = arith.constant 9.99999974E-6 : f32
    %48 = vector.broadcast %cst_22 : f32 to vector<2x8x1xf32>
    %49 = arith.addf %45, %48 : vector<2x8x1xf32>
    %50 = math.rsqrt %49 : vector<2x8x1xf32>
    %51 = vector.broadcast %50 : vector<2x8x1xf32> to vector<2x8x32xf32>
    %52 = arith.mulf %47, %51 : vector<2x8x32xf32>
    %53 = vector.shape_cast %32 : vector<32xf32> to vector<1x1x32xf32>
    %54 = vector.broadcast %53 : vector<1x1x32xf32> to vector<2x8x32xf32>
    %55 = arith.mulf %52, %54 : vector<2x8x32xf32>
    %56 = vector.shape_cast %34 : vector<32xf32> to vector<1x1x32xf32>
    %57 = vector.broadcast %56 : vector<1x1x32xf32> to vector<2x8x32xf32>
    %58 = arith.addf %55, %57 : vector<2x8x32xf32>
    %59 = arith.addf %28, %58 : vector<2x8x32xf32>
    %cst_23 = arith.constant 5.000000e-01 : f32
    %60 = vector.broadcast %cst_23 : f32 to vector<2x8x32xf32>
    %61 = arith.mulf %59, %60 : vector<2x8x32xf32>
    %62 = vector.shape_cast %61 : vector<2x8x32xf32> to vector<16x32xf32>
    %63 = vector.shape_cast %28 : vector<2x8x32xf32> to vector<16x32xf32>
    %cst_24 = arith.constant 0.000000e+00 : f32
    %64 = vector.broadcast %cst_24 : f32 to vector<16x32xf32>
    %c0_25 = arith.constant 0 : index
    %c0_26 = arith.constant 0 : index
    %c0_27 = arith.constant 0 : index
    %65 = vector.load %arg7[%c0_25, %c0_26, %c0_27] : memref<4x32x8xf32, #tpu.memory_space<vmem>>, vector<1x32x8xf32>
    %66 = vector.shape_cast %65 : vector<1x32x8xf32> to vector<32x8xf32>
    %cst_28 = arith.constant dense<0.000000e+00> : vector<16x8xf32>
    %67 = tpu.matmul %62, %66, %cst_28 {dimension_numbers = #tpu.dot_dimension_numbers<[1], [0], [0], [1], [0, 0, 1, 1], [], []>} : vector<16x32xf32>, vector<32x8xf32>, vector<16x8xf32> -> vector<16x8xf32>
    %68 = vector.shape_cast %67 : vector<16x8xf32> to vector<2x8x8xf32>
    %c0_29 = arith.constant 0 : index
    %c0_30 = arith.constant 0 : index
    %c0_31 = arith.constant 0 : index
    %69 = vector.load %arg8[%c0_29, %c0_30, %c0_31] : memref<4x32x8xf32, #tpu.memory_space<vmem>>, vector<1x32x8xf32>
    %70 = vector.shape_cast %69 : vector<1x32x8xf32> to vector<32x8xf32>
    %cst_32 = arith.constant dense<0.000000e+00> : vector<16x8xf32>
    %71 = tpu.matmul %62, %70, %cst_32 {dimension_numbers = #tpu.dot_dimension_numbers<[1], [0], [0], [1], [0, 0, 1, 1], [], []>} : vector<16x32xf32>, vector<32x8xf32>, vector<16x8xf32> -> vector<16x8xf32>
    %72 = vector.shape_cast %71 : vector<16x8xf32> to vector<2x8x8xf32>
    %c0_33 = arith.constant 0 : index
    %c0_34 = arith.constant 0 : index
    %c0_35 = arith.constant 0 : index
    %73 = vector.load %arg9[%c0_33, %c0_34, %c0_35] : memref<4x32x8xf32, #tpu.memory_space<vmem>>, vector<1x32x8xf32>
    %74 = vector.shape_cast %73 : vector<1x32x8xf32> to vector<32x8xf32>
    %cst_36 = arith.constant dense<0.000000e+00> : vector<16x8xf32>
    %75 = tpu.matmul %63, %74, %cst_36 {dimension_numbers = #tpu.dot_dimension_numbers<[1], [0], [0], [1], [0, 0, 1, 1], [], []>} : vector<16x32xf32>, vector<32x8xf32>, vector<16x8xf32> -> vector<16x8xf32>
    %76 = vector.shape_cast %75 : vector<16x8xf32> to vector<2x8x8xf32>
    "tpu.trace_start"() <{level = 10 : i32, message = "bqd,bkd->bqk"}> : () -> ()
    %cst_37 = arith.constant dense<0.000000e+00> : vector<2x8x8xf32>
    %77 = tpu.matmul %68, %72, %cst_37 {dimension_numbers = #tpu.dot_dimension_numbers<[2], [2], [1], [1], [0, 0, 0, 1, 1, 1], [0], [0]>} : vector<2x8x8xf32>, vector<2x8x8xf32>, vector<2x8x8xf32> -> vector<2x8x8xf32>
    "tpu.trace_stop"() : () -> ()
    %cst_38 = arith.constant 0.176776692 : f32
    %78 = vector.broadcast %cst_38 : f32 to vector<2x8x8xf32>
    %79 = arith.mulf %77, %78 : vector<2x8x8xf32>
    %cst_39 = arith.constant dense<0xFF800000> : vector<2x8xf32>
    %80 = vector.multi_reduction <maximumf>, %79, %cst_39 [2] : vector<2x8x8xf32> to vector<2x8xf32>
    %81 = vector.shape_cast %80 : vector<2x8xf32> to vector<2x8x1xf32>
    %82 = vector.broadcast %81 : vector<2x8x1xf32> to vector<2x8x8xf32>
    %83 = arith.subf %79, %82 : vector<2x8x8xf32>
    %84 = math.exp %83 : vector<2x8x8xf32>
    %cst_40 = arith.constant dense<0.000000e+00> : vector<2x8xf32>
    %85 = vector.multi_reduction <add>, %84, %cst_40 [2] : vector<2x8x8xf32> to vector<2x8xf32>
    %86 = vector.shape_cast %85 : vector<2x8xf32> to vector<2x8x1xf32>
    %87 = tpu.reciprocal %86 {approx = true} : vector<2x8x1xf32> -> vector<2x8x1xf32>
    %88 = arith.mulf %86, %87 : vector<2x8x1xf32>
    %cst_41 = arith.constant 2.000000e+00 : f32
    %89 = vector.broadcast %cst_41 : f32 to vector<2x8x1xf32>
    %90 = arith.subf %89, %88 : vector<2x8x1xf32>
    %91 = arith.mulf %87, %90 : vector<2x8x1xf32>
    %92 = vector.broadcast %91 : vector<2x8x1xf32> to vector<2x8x8xf32>
    %93 = arith.mulf %84, %92 : vector<2x8x8xf32>
    %c0_42 = arith.constant 0 : index
    %c0_43 = arith.constant 0 : index
    %c0_44 = arith.constant 0 : index
    %c0_45 = arith.constant 0 : index
    %94 = vector.load %arg13[%c0_42, %c0_43, %c0_44, %c0_45] : memref<4x2x8x8xf32, #tpu.memory_space<vmem>>, vector<1x2x8x8xf32>
    %95 = vector.shape_cast %94 : vector<1x2x8x8xf32> to vector<2x8x8xf32>
    %96 = vector.shape_cast %93 : vector<2x8x8xf32> to vector<1x2x8x8xf32>
    tpu.vector_store %arg13[%c0_42, %c0_43, %c0_44, %c0_45], %96 {strides = array<i32>} : memref<4x2x8x8xf32, #tpu.memory_space<vmem>>, vector<1x2x8x8xf32>,
    "tpu.trace_start"() <{level = 10 : i32, message = "bqk,bkd->bqd"}> : () -> ()
    %cst_46 = arith.constant dense<0.000000e+00> : vector<2x8x8xf32>
    %97 = tpu.matmul %93, %76, %cst_46 {dimension_numbers = #tpu.dot_dimension_numbers<[2], [1], [1], [2], [0, 0, 0, 1, 1, 2], [0], [0]>} : vector<2x8x8xf32>, vector<2x8x8xf32>, vector<2x8x8xf32> -> vector<2x8x8xf32>
    "tpu.trace_stop"() : () -> ()
    %98 = vector.shape_cast %97 : vector<2x8x8xf32> to vector<16x8xf32>
    %c0_47 = arith.constant 0 : index
    %c0_48 = arith.constant 0 : index
    %c0_49 = arith.constant 0 : index
    %99 = vector.load %arg10[%c0_47, %c0_48, %c0_49] : memref<4x8x32xf32, #tpu.memory_space<vmem>>, vector<1x8x32xf32>
    %100 = vector.shape_cast %99 : vector<1x8x32xf32> to vector<8x32xf32>
    %cst_50 = arith.constant dense<0.000000e+00> : vector<16x32xf32>
    %101 = tpu.matmul %98, %100, %cst_50 {dimension_numbers = #tpu.dot_dimension_numbers<[1], [0], [0], [1], [0, 0, 1, 1], [], []>} : vector<16x8xf32>, vector<8x32xf32>, vector<16x32xf32> -> vector<16x32xf32>
    %102 = arith.addf %64, %101 : vector<16x32xf32>
    %c1 = arith.constant 1 : index
    %c0_51 = arith.constant 0 : index
    %c0_52 = arith.constant 0 : index
    %103 = vector.load %arg7[%c1, %c0_51, %c0_52] : memref<4x32x8xf32, #tpu.memory_space<vmem>>, vector<1x32x8xf32>
    %104 = vector.shape_cast %103 : vector<1x32x8xf32> to vector<32x8xf32>
    %cst_53 = arith.constant dense<0.000000e+00> : vector<16x8xf32>
    %105 = tpu.matmul %62, %104, %cst_53 {dimension_numbers = #tpu.dot_dimension_numbers<[1], [0], [0], [1], [0, 0, 1, 1], [], []>} : vector<16x32xf32>, vector<32x8xf32>, vector<16x8xf32> -> vector<16x8xf32>
    %106 = vector.shape_cast %105 : vector<16x8xf32> to vector<2x8x8xf32>
    %c1_54 = arith.constant 1 : index
    %c0_55 = arith.constant 0 : index
    %c0_56 = arith.constant 0 : index
    %107 = vector.load %arg8[%c1_54, %c0_55, %c0_56] : memref<4x32x8xf32, #tpu.memory_space<vmem>>, vector<1x32x8xf32>
    %108 = vector.shape_cast %107 : vector<1x32x8xf32> to vector<32x8xf32>
    %cst_57 = arith.constant dense<0.000000e+00> : vector<16x8xf32>
    %109 = tpu.matmul %62, %108, %cst_57 {dimension_numbers = #tpu.dot_dimension_numbers<[1], [0], [0], [1], [0, 0, 1, 1], [], []>} : vector<16x32xf32>, vector<32x8xf32>, vector<16x8xf32> -> vector<16x8xf32>
    %110 = vector.shape_cast %109 : vector<16x8xf32> to vector<2x8x8xf32>
    %c1_58 = arith.constant 1 : index
    %c0_59 = arith.constant 0 : index
    %c0_60 = arith.constant 0 : index
    %111 = vector.load %arg9[%c1_58, %c0_59, %c0_60] : memref<4x32x8xf32, #tpu.memory_space<vmem>>, vector<1x32x8xf32>
    %112 = vector.shape_cast %111 : vector<1x32x8xf32> to vector<32x8xf32>
    %cst_61 = arith.constant dense<0.000000e+00> : vector<16x8xf32>
    %113 = tpu.matmul %63, %112, %cst_61 {dimension_numbers = #tpu.dot_dimension_numbers<[1], [0], [0], [1], [0, 0, 1, 1], [], []>} : vector<16x32xf32>, vector<32x8xf32>, vector<16x8xf32> -> vector<16x8xf32>
    %114 = vector.shape_cast %113 : vector<16x8xf32> to vector<2x8x8xf32>
    "tpu.trace_start"() <{level = 10 : i32, message = "bqd,bkd->bqk"}> : () -> ()
    %cst_62 = arith.constant dense<0.000000e+00> : vector<2x8x8xf32>
    %115 = tpu.matmul %106, %110, %cst_62 {dimension_numbers = #tpu.dot_dimension_numbers<[2], [2], [1], [1], [0, 0, 0, 1, 1, 1], [0], [0]>} : vector<2x8x8xf32>, vector<2x8x8xf32>, vector<2x8x8xf32> -> vector<2x8x8xf32>
    "tpu.trace_stop"() : () -> ()
    %cst_63 = arith.constant 0.176776692 : f32
    %116 = vector.broadcast %cst_63 : f32 to vector<2x8x8xf32>
    %117 = arith.mulf %115, %116 : vector<2x8x8xf32>
    %cst_64 = arith.constant dense<0xFF800000> : vector<2x8xf32>
    %118 = vector.multi_reduction <maximumf>, %117, %cst_64 [2] : vector<2x8x8xf32> to vector<2x8xf32>
    %119 = vector.shape_cast %118 : vector<2x8xf32> to vector<2x8x1xf32>
    %120 = vector.broadcast %119 : vector<2x8x1xf32> to vector<2x8x8xf32>
    %121 = arith.subf %117, %120 : vector<2x8x8xf32>
    %122 = math.exp %121 : vector<2x8x8xf32>
    %cst_65 = arith.constant dense<0.000000e+00> : vector<2x8xf32>
    %123 = vector.multi_reduction <add>, %122, %cst_65 [2] : vector<2x8x8xf32> to vector<2x8xf32>
    %124 = vector.shape_cast %123 : vector<2x8xf32> to vector<2x8x1xf32>
    %125 = tpu.reciprocal %124 {approx = true} : vector<2x8x1xf32> -> vector<2x8x1xf32>
    %126 = arith.mulf %124, %125 : vector<2x8x1xf32>
    %cst_66 = arith.constant 2.000000e+00 : f32
    %127 = vector.broadcast %cst_66 : f32 to vector<2x8x1xf32>
    %128 = arith.subf %127, %126 : vector<2x8x1xf32>
    %129 = arith.mulf %125, %128 : vector<2x8x1xf32>
    %130 = vector.broadcast %129 : vector<2x8x1xf32> to vector<2x8x8xf32>
    %131 = arith.mulf %122, %130 : vector<2x8x8xf32>
    %c1_67 = arith.constant 1 : index
    %c0_68 = arith.constant 0 : index
    %c0_69 = arith.constant 0 : index
    %c0_70 = arith.constant 0 : index
    %132 = vector.load %arg13[%c1_67, %c0_68, %c0_69, %c0_70] : memref<4x2x8x8xf32, #tpu.memory_space<vmem>>, vector<1x2x8x8xf32>
    %133 = vector.shape_cast %132 : vector<1x2x8x8xf32> to vector<2x8x8xf32>
    %134 = vector.shape_cast %131 : vector<2x8x8xf32> to vector<1x2x8x8xf32>
    tpu.vector_store %arg13[%c1_67, %c0_68, %c0_69, %c0_70], %134 {strides = array<i32>} : memref<4x2x8x8xf32, #tpu.memory_space<vmem>>, vector<1x2x8x8xf32>,
    "tpu.trace_start"() <{level = 10 : i32, message = "bqk,bkd->bqd"}> : () -> ()
    %cst_71 = arith.constant dense<0.000000e+00> : vector<2x8x8xf32>
    %135 = tpu.matmul %131, %114, %cst_71 {dimension_numbers = #tpu.dot_dimension_numbers<[2], [1], [1], [2], [0, 0, 0, 1, 1, 2], [0], [0]>} : vector<2x8x8xf32>, vector<2x8x8xf32>, vector<2x8x8xf32> -> vector<2x8x8xf32>
    "tpu.trace_stop"() : () -> ()
    %136 = vector.shape_cast %135 : vector<2x8x8xf32> to vector<16x8xf32>
    %c1_72 = arith.constant 1 : index
    %c0_73 = arith.constant 0 : index
    %c0_74 = arith.constant 0 : index
    %137 = vector.load %arg10[%c1_72, %c0_73, %c0_74] : memref<4x8x32xf32, #tpu.memory_space<vmem>>, vector<1x8x32xf32>
    %138 = vector.shape_cast %137 : vector<1x8x32xf32> to vector<8x32xf32>
    %cst_75 = arith.constant dense<0.000000e+00> : vector<16x32xf32>
    %139 = tpu.matmul %136, %138, %cst_75 {dimension_numbers = #tpu.dot_dimension_numbers<[1], [0], [0], [1], [0, 0, 1, 1], [], []>} : vector<16x8xf32>, vector<8x32xf32>, vector<16x32xf32> -> vector<16x32xf32>
    %140 = arith.addf %102, %139 : vector<16x32xf32>
    %c2 = arith.constant 2 : index
    %c0_76 = arith.constant 0 : index
    %c0_77 = arith.constant 0 : index
    %141 = vector.load %arg7[%c2, %c0_76, %c0_77] : memref<4x32x8xf32, #tpu.memory_space<vmem>>, vector<1x32x8xf32>
    %142 = vector.shape_cast %141 : vector<1x32x8xf32> to vector<32x8xf32>
    %cst_78 = arith.constant dense<0.000000e+00> : vector<16x8xf32>
    %143 = tpu.matmul %62, %142, %cst_78 {dimension_numbers = #tpu.dot_dimension_numbers<[1], [0], [0], [1], [0, 0, 1, 1], [], []>} : vector<16x32xf32>, vector<32x8xf32>, vector<16x8xf32> -> vector<16x8xf32>
    %144 = vector.shape_cast %143 : vector<16x8xf32> to vector<2x8x8xf32>
    %c2_79 = arith.constant 2 : index
    %c0_80 = arith.constant 0 : index
    %c0_81 = arith.constant 0 : index
    %145 = vector.load %arg8[%c2_79, %c0_80, %c0_81] : memref<4x32x8xf32, #tpu.memory_space<vmem>>, vector<1x32x8xf32>
    %146 = vector.shape_cast %145 : vector<1x32x8xf32> to vector<32x8xf32>
    %cst_82 = arith.constant dense<0.000000e+00> : vector<16x8xf32>
    %147 = tpu.matmul %62, %146, %cst_82 {dimension_numbers = #tpu.dot_dimension_numbers<[1], [0], [0], [1], [0, 0, 1, 1], [], []>} : vector<16x32xf32>, vector<32x8xf32>, vector<16x8xf32> -> vector<16x8xf32>
    %148 = vector.shape_cast %147 : vector<16x8xf32> to vector<2x8x8xf32>
    %c2_83 = arith.constant 2 : index
    %c0_84 = arith.constant 0 : index
    %c0_85 = arith.constant 0 : index
    %149 = vector.load %arg9[%c2_83, %c0_84, %c0_85] : memref<4x32x8xf32, #tpu.memory_space<vmem>>, vector<1x32x8xf32>
    %150 = vector.shape_cast %149 : vector<1x32x8xf32> to vector<32x8xf32>
    %cst_86 = arith.constant dense<0.000000e+00> : vector<16x8xf32>
    %151 = tpu.matmul %63, %150, %cst_86 {dimension_numbers = #tpu.dot_dimension_numbers<[1], [0], [0], [1], [0, 0, 1, 1], [], []>} : vector<16x32xf32>, vector<32x8xf32>, vector<16x8xf32> -> vector<16x8xf32>
    %152 = vector.shape_cast %151 : vector<16x8xf32> to vector<2x8x8xf32>
    "tpu.trace_start"() <{level = 10 : i32, message = "bqd,bkd->bqk"}> : () -> ()
    %cst_87 = arith.constant dense<0.000000e+00> : vector<2x8x8xf32>
    %153 = tpu.matmul %144, %148, %cst_87 {dimension_numbers = #tpu.dot_dimension_numbers<[2], [2], [1], [1], [0, 0, 0, 1, 1, 1], [0], [0]>} : vector<2x8x8xf32>, vector<2x8x8xf32>, vector<2x8x8xf32> -> vector<2x8x8xf32>
    "tpu.trace_stop"() : () -> ()
    %cst_88 = arith.constant 0.176776692 : f32
    %154 = vector.broadcast %cst_88 : f32 to vector<2x8x8xf32>
    %155 = arith.mulf %153, %154 : vector<2x8x8xf32>
    %cst_89 = arith.constant dense<0xFF800000> : vector<2x8xf32>
    %156 = vector.multi_reduction <maximumf>, %155, %cst_89 [2] : vector<2x8x8xf32> to vector<2x8xf32>
    %157 = vector.shape_cast %156 : vector<2x8xf32> to vector<2x8x1xf32>
    %158 = vector.broadcast %157 : vector<2x8x1xf32> to vector<2x8x8xf32>
    %159 = arith.subf %155, %158 : vector<2x8x8xf32>
    %160 = math.exp %159 : vector<2x8x8xf32>
    %cst_90 = arith.constant dense<0.000000e+00> : vector<2x8xf32>
    %161 = vector.multi_reduction <add>, %160, %cst_90 [2] : vector<2x8x8xf32> to vector<2x8xf32>
    %162 = vector.shape_cast %161 : vector<2x8xf32> to vector<2x8x1xf32>
    %163 = tpu.reciprocal %162 {approx = true} : vector<2x8x1xf32> -> vector<2x8x1xf32>
    %164 = arith.mulf %162, %163 : vector<2x8x1xf32>
    %cst_91 = arith.constant 2.000000e+00 : f32
    %165 = vector.broadcast %cst_91 : f32 to vector<2x8x1xf32>
    %166 = arith.subf %165, %164 : vector<2x8x1xf32>
    %167 = arith.mulf %163, %166 : vector<2x8x1xf32>
    %168 = vector.broadcast %167 : vector<2x8x1xf32> to vector<2x8x8xf32>
    %169 = arith.mulf %160, %168 : vector<2x8x8xf32>
    %c2_92 = arith.constant 2 : index
    %c0_93 = arith.constant 0 : index
    %c0_94 = arith.constant 0 : index
    %c0_95 = arith.constant 0 : index
    %170 = vector.load %arg13[%c2_92, %c0_93, %c0_94, %c0_95] : memref<4x2x8x8xf32, #tpu.memory_space<vmem>>, vector<1x2x8x8xf32>
    %171 = vector.shape_cast %170 : vector<1x2x8x8xf32> to vector<2x8x8xf32>
    %172 = vector.shape_cast %169 : vector<2x8x8xf32> to vector<1x2x8x8xf32>
    tpu.vector_store %arg13[%c2_92, %c0_93, %c0_94, %c0_95], %172 {strides = array<i32>} : memref<4x2x8x8xf32, #tpu.memory_space<vmem>>, vector<1x2x8x8xf32>,
    "tpu.trace_start"() <{level = 10 : i32, message = "bqk,bkd->bqd"}> : () -> ()
    %cst_96 = arith.constant dense<0.000000e+00> : vector<2x8x8xf32>
    %173 = tpu.matmul %169, %152, %cst_96 {dimension_numbers = #tpu.dot_dimension_numbers<[2], [1], [1], [2], [0, 0, 0, 1, 1, 2], [0], [0]>} : vector<2x8x8xf32>, vector<2x8x8xf32>, vector<2x8x8xf32> -> vector<2x8x8xf32>
    "tpu.trace_stop"() : () -> ()
    %174 = vector.shape_cast %173 : vector<2x8x8xf32> to vector<16x8xf32>
    %c2_97 = arith.constant 2 : index
    %c0_98 = arith.constant 0 : index
    %c0_99 = arith.constant 0 : index
    %175 = vector.load %arg10[%c2_97, %c0_98, %c0_99] : memref<4x8x32xf32, #tpu.memory_space<vmem>>, vector<1x8x32xf32>
    %176 = vector.shape_cast %175 : vector<1x8x32xf32> to vector<8x32xf32>
    %cst_100 = arith.constant dense<0.000000e+00> : vector<16x32xf32>
    %177 = tpu.matmul %174, %176, %cst_100 {dimension_numbers = #tpu.dot_dimension_numbers<[1], [0], [0], [1], [0, 0, 1, 1], [], []>} : vector<16x8xf32>, vector<8x32xf32>, vector<16x32xf32> -> vector<16x32xf32>
    %178 = arith.addf %140, %177 : vector<16x32xf32>
    %c3 = arith.constant 3 : index
    %c0_101 = arith.constant 0 : index
    %c0_102 = arith.constant 0 : index
    %179 = vector.load %arg7[%c3, %c0_101, %c0_102] : memref<4x32x8xf32, #tpu.memory_space<vmem>>, vector<1x32x8xf32>
    %180 = vector.shape_cast %179 : vector<1x32x8xf32> to vector<32x8xf32>
    %cst_103 = arith.constant dense<0.000000e+00> : vector<16x8xf32>
    %181 = tpu.matmul %62, %180, %cst_103 {dimension_numbers = #tpu.dot_dimension_numbers<[1], [0], [0], [1], [0, 0, 1, 1], [], []>} : vector<16x32xf32>, vector<32x8xf32>, vector<16x8xf32> -> vector<16x8xf32>
    %182 = vector.shape_cast %181 : vector<16x8xf32> to vector<2x8x8xf32>
    %c3_104 = arith.constant 3 : index
    %c0_105 = arith.constant 0 : index
    %c0_106 = arith.constant 0 : index
    %183 = vector.load %arg8[%c3_104, %c0_105, %c0_106] : memref<4x32x8xf32, #tpu.memory_space<vmem>>, vector<1x32x8xf32>
    %184 = vector.shape_cast %183 : vector<1x32x8xf32> to vector<32x8xf32>
    %cst_107 = arith.constant dense<0.000000e+00> : vector<16x8xf32>
    %185 = tpu.matmul %62, %184, %cst_107 {dimension_numbers = #tpu.dot_dimension_numbers<[1], [0], [0], [1], [0, 0, 1, 1], [], []>} : vector<16x32xf32>, vector<32x8xf32>, vector<16x8xf32> -> vector<16x8xf32>
    %186 = vector.shape_cast %185 : vector<16x8xf32> to vector<2x8x8xf32>
    %c3_108 = arith.constant 3 : index
    %c0_109 = arith.constant 0 : index
    %c0_110 = arith.constant 0 : index
    %187 = vector.load %arg9[%c3_108, %c0_109, %c0_110] : memref<4x32x8xf32, #tpu.memory_space<vmem>>, vector<1x32x8xf32>
    %188 = vector.shape_cast %187 : vector<1x32x8xf32> to vector<32x8xf32>
    %cst_111 = arith.constant dense<0.000000e+00> : vector<16x8xf32>
    %189 = tpu.matmul %63, %188, %cst_111 {dimension_numbers = #tpu.dot_dimension_numbers<[1], [0], [0], [1], [0, 0, 1, 1], [], []>} : vector<16x32xf32>, vector<32x8xf32>, vector<16x8xf32> -> vector<16x8xf32>
    %190 = vector.shape_cast %189 : vector<16x8xf32> to vector<2x8x8xf32>
    "tpu.trace_start"() <{level = 10 : i32, message = "bqd,bkd->bqk"}> : () -> ()
    %cst_112 = arith.constant dense<0.000000e+00> : vector<2x8x8xf32>
    %191 = tpu.matmul %182, %186, %cst_112 {dimension_numbers = #tpu.dot_dimension_numbers<[2], [2], [1], [1], [0, 0, 0, 1, 1, 1], [0], [0]>} : vector<2x8x8xf32>, vector<2x8x8xf32>, vector<2x8x8xf32> -> vector<2x8x8xf32>
    "tpu.trace_stop"() : () -> ()
    %cst_113 = arith.constant 0.176776692 : f32
    %192 = vector.broadcast %cst_113 : f32 to vector<2x8x8xf32>
    %193 = arith.mulf %191, %192 : vector<2x8x8xf32>
    %cst_114 = arith.constant dense<0xFF800000> : vector<2x8xf32>
    %194 = vector.multi_reduction <maximumf>, %193, %cst_114 [2] : vector<2x8x8xf32> to vector<2x8xf32>
    %195 = vector.shape_cast %194 : vector<2x8xf32> to vector<2x8x1xf32>
    %196 = vector.broadcast %195 : vector<2x8x1xf32> to vector<2x8x8xf32>
    %197 = arith.subf %193, %196 : vector<2x8x8xf32>
    %198 = math.exp %197 : vector<2x8x8xf32>
    %cst_115 = arith.constant dense<0.000000e+00> : vector<2x8xf32>
    %199 = vector.multi_reduction <add>, %198, %cst_115 [2] : vector<2x8x8xf32> to vector<2x8xf32>
    %200 = vector.shape_cast %199 : vector<2x8xf32> to vector<2x8x1xf32>
    %201 = tpu.reciprocal %200 {approx = true} : vector<2x8x1xf32> -> vector<2x8x1xf32>
    %202 = arith.mulf %200, %201 : vector<2x8x1xf32>
    %cst_116 = arith.constant 2.000000e+00 : f32
    %203 = vector.broadcast %cst_116 : f32 to vector<2x8x1xf32>
    %204 = arith.subf %203, %202 : vector<2x8x1xf32>
    %205 = arith.mulf %201, %204 : vector<2x8x1xf32>
    %206 = vector.broadcast %205 : vector<2x8x1xf32> to vector<2x8x8xf32>
    %207 = arith.mulf %198, %206 : vector<2x8x8xf32>
    %c3_117 = arith.constant 3 : index
    %c0_118 = arith.constant 0 : index
    %c0_119 = arith.constant 0 : index
    %c0_120 = arith.constant 0 : index
    %208 = vector.load %arg13[%c3_117, %c0_118, %c0_119, %c0_120] : memref<4x2x8x8xf32, #tpu.memory_space<vmem>>, vector<1x2x8x8xf32>
    %209 = vector.shape_cast %208 : vector<1x2x8x8xf32> to vector<2x8x8xf32>
    %210 = vector.shape_cast %207 : vector<2x8x8xf32> to vector<1x2x8x8xf32>
    tpu.vector_store %arg13[%c3_117, %c0_118, %c0_119, %c0_120], %210 {strides = array<i32>} : memref<4x2x8x8xf32, #tpu.memory_space<vmem>>, vector<1x2x8x8xf32>,
    "tpu.trace_start"() <{level = 10 : i32, message = "bqk,bkd->bqd"}> : () -> ()
    %cst_121 = arith.constant dense<0.000000e+00> : vector<2x8x8xf32>
    %211 = tpu.matmul %207, %190, %cst_121 {dimension_numbers = #tpu.dot_dimension_numbers<[2], [1], [1], [2], [0, 0, 0, 1, 1, 2], [0], [0]>} : vector<2x8x8xf32>, vector<2x8x8xf32>, vector<2x8x8xf32> -> vector<2x8x8xf32>
    "tpu.trace_stop"() : () -> ()
    %212 = vector.shape_cast %211 : vector<2x8x8xf32> to vector<16x8xf32>
    %c3_122 = arith.constant 3 : index
    %c0_123 = arith.constant 0 : index
    %c0_124 = arith.constant 0 : index
    %213 = vector.load %arg10[%c3_122, %c0_123, %c0_124] : memref<4x8x32xf32, #tpu.memory_space<vmem>>, vector<1x8x32xf32>
    %214 = vector.shape_cast %213 : vector<1x8x32xf32> to vector<8x32xf32>
    %cst_125 = arith.constant dense<0.000000e+00> : vector<16x32xf32>
    %215 = tpu.matmul %212, %214, %cst_125 {dimension_numbers = #tpu.dot_dimension_numbers<[1], [0], [0], [1], [0, 0, 1, 1], [], []>} : vector<16x8xf32>, vector<8x32xf32>, vector<16x32xf32> -> vector<16x32xf32>
    %216 = arith.addf %178, %215 : vector<16x32xf32>
    %217 = vector.shape_cast %0 : vector<2x8x32xf32> to vector<16x32xf32>
    %218 = arith.addf %217, %216 : vector<16x32xf32>
    %c0_126 = arith.constant 0 : index
    %c0_127 = arith.constant 0 : index
    %219 = vector.load %arg11[%c0_126, %c0_127] : memref<1x32xf32, #tpu.memory_space<vmem>>, vector<1x32xf32>
    %220 = vector.shape_cast %219 : vector<1x32xf32> to vector<32xf32>
    %221 = vector.shape_cast %220 : vector<32xf32> to vector<1x32xf32>
    %222 = vector.broadcast %221 : vector<1x32xf32> to vector<16x32xf32>
    %223 = arith.addf %218, %222 : vector<16x32xf32>
    %224 = vector.shape_cast %223 : vector<16x32xf32> to vector<2x8x32xf32>
    %c0_128 = arith.constant 0 : index
    %c0_129 = arith.constant 0 : index
    %c0_130 = arith.constant 0 : index
    %225 = vector.load %arg12[%c0_128, %c0_129, %c0_130] : memref<2x8x32xf32, #tpu.memory_space<vmem>>, vector<2x8x32xf32>
    tpu.vector_store %arg12[%c0_128, %c0_129, %c0_130], %224 {strides = array<i32>} : memref<2x8x32xf32, #tpu.memory_space<vmem>>, vector<2x8x32xf32>,
    return
  }
  func.func @transform_0(%arg0: i32) -> (i32, i32, i32) {
    %c0_i32 = arith.constant 0 : i32
    %c0_i32_0 = arith.constant 0 : i32
    %c0_i32_1 = arith.constant 0 : i32
    return %arg0, %c0_i32, %c0_i32_0 : i32, i32, i32
  }
  func.func @transform_1(%arg0: i32) -> (i32, i32, i32, i32) {
    %c0_i32 = arith.constant 0 : i32
    %c0_i32_0 = arith.constant 0 : i32
    %c0_i32_1 = arith.constant 0 : i32
    %c0_i32_2 = arith.constant 0 : i32
    return %arg0, %c0_i32, %c0_i32_0, %c0_i32_1 : i32, i32, i32, i32
  }
  func.func @transform_2(%arg0: i32) -> (i32, i32) {
    %c0_i32 = arith.constant 0 : i32
    %c0_i32_0 = arith.constant 0 : i32
    %c0_i32_1 = arith.constant 0 : i32
    return %c0_i32, %c0_i32_0 : i32, i32
  }
  func.func @transform_3(%arg0: i32) -> (i32, i32) {
    %c0_i32 = arith.constant 0 : i32
    %c0_i32_0 = arith.constant 0 : i32
    %c0_i32_1 = arith.constant 0 : i32
    return %c0_i32, %c0_i32_0 : i32, i32
  }
  func.func @transform_4(%arg0: i32) -> (i32, i32) {
    %c0_i32 = arith.constant 0 : i32
    %c0_i32_0 = arith.constant 0 : i32
    %c0_i32_1 = arith.constant 0 : i32
    return %c0_i32, %c0_i32_0 : i32, i32
  }
  func.func @transform_5(%arg0: i32) -> (i32, i32) {
    %c0_i32 = arith.constant 0 : i32
    %c0_i32_0 = arith.constant 0 : i32
    %c0_i32_1 = arith.constant 0 : i32
    return %c0_i32, %c0_i32_0 : i32, i32
  }
  func.func @transform_6(%arg0: i32) -> (i32, i32, i32) {
    %c0_i32 = arith.constant 0 : i32
    %c0_i32_0 = arith.constant 0 : i32
    %c0_i32_1 = arith.constant 0 : i32
    %c0_i32_2 = arith.constant 0 : i32
    return %c0_i32, %c0_i32_0, %c0_i32_1 : i32, i32, i32
  }
  func.func @transform_7(%arg0: i32) -> (i32, i32, i32) {
    %c0_i32 = arith.constant 0 : i32
    %c0_i32_0 = arith.constant 0 : i32
    %c0_i32_1 = arith.constant 0 : i32
    %c0_i32_2 = arith.constant 0 : i32
    return %c0_i32, %c0_i32_0, %c0_i32_1 : i32, i32, i32
  }
  func.func @transform_8(%arg0: i32) -> (i32, i32, i32) {
    %c0_i32 = arith.constant 0 : i32
    %c0_i32_0 = arith.constant 0 : i32
    %c0_i32_1 = arith.constant 0 : i32
    %c0_i32_2 = arith.constant 0 : i32
    return %c0_i32, %c0_i32_0, %c0_i32_1 : i32, i32, i32
  }
  func.func @transform_9(%arg0: i32) -> (i32, i32, i32) {
    %c0_i32 = arith.constant 0 : i32
    %c0_i32_0 = arith.constant 0 : i32
    %c0_i32_1 = arith.constant 0 : i32
    %c0_i32_2 = arith.constant 0 : i32
    return %c0_i32, %c0_i32_0, %c0_i32_1 : i32, i32, i32
  }
  func.func @transform_10(%arg0: i32) -> (i32, i32) {
    %c0_i32 = arith.constant 0 : i32
    %c0_i32_0 = arith.constant 0 : i32
    %c0_i32_1 = arith.constant 0 : i32
    return %c0_i32, %c0_i32_0 : i32, i32
  }
  func.func @transform_11(%arg0: i32) -> (i32, i32, i32) {
    %c0_i32 = arith.constant 0 : i32
    %c0_i32_0 = arith.constant 0 : i32
    %c0_i32_1 = arith.constant 0 : i32
    return %arg0, %c0_i32, %c0_i32_0 : i32, i32, i32
  }
  func.func @transform_12(%arg0: i32) -> (i32, i32, i32, i32) {
    %c0_i32 = arith.constant 0 : i32
    %c0_i32_0 = arith.constant 0 : i32
    %c0_i32_1 = arith.constant 0 : i32
    %c0_i32_2 = arith.constant 0 : i32
    return %c0_i32, %arg0, %c0_i32_0, %c0_i32_1 : i32, i32, i32, i32
  }
}

</mosaic_0001>

<llo_original>
// kernel: tpu_custom_call.1
$region0: #{tpu_custom_call.1}
  #allocation0 [shape = 'u32[]', space=smem, size = 0x4, offset = 0x4, fixed_abs, tag = 'smem constant byte address 0x4 - core index']
  #allocation1 [shape = 'u32[144,128]{1,0:T(1,128)}', space=vmem, size = 0x12000, scoped, tag = 'internal scratch']
  #allocation6 [shape = 's32[]', space=sflag, size = 0x4, offset = 0, fixed_abs, tag = 'sflag constant byte address 0x0 - dummy sync flag']
  %s0 = inlined_call_operand.vmem [shape: f32[4,8,32], index: 0, kind: input, shape index: {}]
  %s1 = inlined_call_operand.vmem [shape: f32[4,8,1,32], index: 1, kind: input, shape index: {}]
  %s2 = inlined_call_operand.vmem [shape: f32[1,32], index: 2, kind: input, shape index: {}]
  %s3 = inlined_call_operand.vmem [shape: f32[1,32], index: 3, kind: input, shape index: {}]
  %s4 = inlined_call_operand.vmem [shape: f32[1,32], index: 4, kind: input, shape index: {}]
  %s5 = inlined_call_operand.vmem [shape: f32[1,32], index: 5, kind: input, shape index: {}]
  %s6 = inlined_call_operand.vmem [shape: f32[4,32,8], index: 6, kind: input, shape index: {}]
  %s7 = inlined_call_operand.vmem [shape: f32[4,32,8], index: 7, kind: input, shape index: {}]
  %s8 = inlined_call_operand.vmem [shape: f32[4,32,8], index: 8, kind: input, shape index: {}]
  %s9 = inlined_call_operand.vmem [shape: f32[4,8,32], index: 9, kind: input, shape index: {}]
  %s10 = inlined_call_operand.vmem [shape: f32[1,32], index: 10, kind: input, shape index: {}]
  %s11 = inlined_call_operand.hbm [shape: f32[4,8,32], index: 11, kind: output, shape index: {0}]
  %s12 = inlined_call_operand.hbm [shape: f32[4,4,8,8], index: 12, kind: output, shape index: {1}]
  %13 = xla_tuple %s11, %s12
  %s14 = sld [smem:[#allocation0]]
  $region85: #{tpu_custom_call.1} parent=0
    _
  %s16 = ssub.s32 1, %s14
  %s17 = scalar_select 0, %s16, %s14
  $region1: #{tpu_custom_call.1} parent=0
    #allocation2 [shape = 'u8[16384]{0}', space=vmem, size = 0x4000, scoped, tag = 'output window, operand 0']
    #allocation3 [shape = 's32[2]{0}', space=sflag, size = 0x8, scoped, tag = 'scoped memory for tpu_custom_call.1']
    #allocation4 [shape = 'u8[65536]{0}', space=vmem, size = 0x10000, scoped, tag = 'output window, operand 1']
    #allocation5 [shape = 's32[2]{0}', space=sflag, size = 0x8, scoped, tag = 'scoped memory for tpu_custom_call.1']
    %18 = vsyncpa [#allocation3], 0
    %s19 = scalar_lea.sflag [#allocation3], 1
    %20 = vsyncpa %s19, 0
    %21 = vsyncpa [#allocation5], 0
    %s22 = scalar_lea.sflag [#allocation5], 1
    %23 = vsyncpa %s22, 0
    loop: start=0, step=1, limit=4
    $region2: #{tpu_custom_call.1} parent=1 // loop_pre_header
      _
    $region3: #{tpu_custom_call.1} parent=1 // loop_header
      %s25 = sphi 0, %s29
      %p26 = scmp.ge.s32.totalorder %s25, 4
      %s35 = sphi 0, %s37
      %s38 = sphi 0, %s35
      %s39 = sphi 0, %s38
      %s55 = sphi 0, %s39
      %s61 = sphi 0, %s63
      %s64 = sphi 0, %s61
      %s65 = sphi 0, %s64
      %s81 = sphi 0, %s65
      %s85 = sphi 0, %s85
      %s87 = sphi 0, %s85
      %s88 = sphi 0, %s87
      %s102 = sphi 0, %s88
      %s106 = sphi 0, %s106
      %s108 = sphi 0, %s106
      %s109 = sphi 0, %s108
      %s123 = sphi 0, %s109
      %s127 = sphi 0, %s127
      %s129 = sphi 0, %s127
      %s130 = sphi 0, %s129
      %s144 = sphi 0, %s130
      %s148 = sphi 0, %s148
      %s150 = sphi 0, %s148
      %s151 = sphi 0, %s150
      %s165 = sphi 0, %s151
      %s169 = sphi 0, %s169
      %s171 = sphi 0, %s169
      %s172 = sphi 0, %s171
      %s186 = sphi 0, %s172
      %s190 = sphi 0, %s190
      %s192 = sphi 0, %s190
      %s193 = sphi 0, %s192
      %s207 = sphi 0, %s193
      %s211 = sphi 0, %s211
      %s213 = sphi 0, %s211
      %s214 = sphi 0, %s213
      %s228 = sphi 0, %s214
      %s232 = sphi 0, %s232
      %s234 = sphi 0, %s232
      %s235 = sphi 0, %s234
      %s249 = sphi 0, %s235
      %s253 = sphi 0, %s253
      %s255 = sphi 0, %s253
      %s256 = sphi 0, %s255
      %s270 = sphi 0, %s256
      %s276 = sphi 0, %s278
      %s279 = sphi 0, %s276
      %s280 = sphi 0, %s279
      %s296 = sphi 0, %s280
      %s302 = sphi 0, %s304
      %s305 = sphi 0, %s302
      %s306 = sphi 0, %s305
      %s322 = sphi 0, %s306
    $region4: #{tpu_custom_call.1} parent=1 // loop_header_branch
      %28 = sbr.rel (%p26) target = $region8
    $region5: #{tpu_custom_call.1} parent=1 // loop_body
      %s30 = ssub.s32 %s25, 1
      %s31 = ssub.s32 %s25, 2
      %s32 = sadd.s32 %s25, 1
      %s33 = ssub.s32 %s25, %s32
      %p34 = scmp.eq.s32.totalorder %s33, 0
      %s36 = sadd.s32 %s35, 1
      %s37 = scalar_select %p34, %s35, %s36
      %p40 = pneg %p34
      %p41 = scmp.eq.s32.totalorder %s25, 1
      %p42 = por %p40, %p41
      %p43 = scmp.ne.s32.totalorder %s35, %s38
      %p44 = scmp.eq.s32.totalorder %s25, 0
      %p45 = por %p43, %p44
      %p46 = scmp.ne.s32.totalorder %s35, %s38
      %p47 = scmp.eq.s32.totalorder %s30, 1
      %p48 = por %p46, %p47
      %p49 = scmp.ne.s32.totalorder %s38, %s39
      %p50 = scmp.eq.s32.totalorder %s30, 0
      %p51 = por %p49, %p50
      %p52 = scmp.ne.s32.totalorder %s38, %s39
      %p53 = scmp.eq.s32.totalorder %s31, 1
      %p54 = por %p52, %p53
      %p56 = scmp.ne.s32.totalorder %s39, %s55
      %p57 = scmp.eq.s32.totalorder %s31, 0
      %p58 = por %p56, %p57
      %s59 = ssub.s32 %s25, %s32
      %p60 = scmp.eq.s32.totalorder %s59, 0
      %s62 = sadd.s32 %s61, 1
      %s63 = scalar_select %p60, %s61, %s62
      %p66 = pneg %p60
      %p67 = scmp.eq.s32.totalorder %s25, 1
      %p68 = por %p66, %p67
      %p69 = scmp.ne.s32.totalorder %s61, %s64
      %p70 = scmp.eq.s32.totalorder %s25, 0
      %p71 = por %p69, %p70
      %p72 = scmp.ne.s32.totalorder %s61, %s64
      %p73 = scmp.eq.s32.totalorder %s30, 1
      %p74 = por %p72, %p73
      %p75 = scmp.ne.s32.totalorder %s64, %s65
      %p76 = scmp.eq.s32.totalorder %s30, 0
      %p77 = por %p75, %p76
      %p78 = scmp.ne.s32.totalorder %s64, %s65
      %p79 = scmp.eq.s32.totalorder %s31, 1
      %p80 = por %p78, %p79
      %p82 = scmp.ne.s32.totalorder %s65, %s81
      %p83 = scmp.eq.s32.totalorder %s31, 0
      %p84 = por %p82, %p83
      %s86 = sadd.s32 %s85, 1
      %p89 = scmp.eq.s32.totalorder %s25, 1
      %p90 = scmp.ne.s32.totalorder %s85, %s87
      %p91 = scmp.eq.s32.totalorder %s25, 0
      %p92 = por %p90, %p91
      %p93 = scmp.ne.s32.totalorder %s85, %s87
      %p94 = scmp.eq.s32.totalorder %s30, 1
      %p95 = por %p93, %p94
      %p96 = scmp.ne.s32.totalorder %s87, %s88
      %p97 = scmp.eq.s32.totalorder %s30, 0
      %p98 = por %p96, %p97
      %p99 = scmp.ne.s32.totalorder %s87, %s88
      %p100 = scmp.eq.s32.totalorder %s31, 1
      %p101 = por %p99, %p100
      %p103 = scmp.ne.s32.totalorder %s88, %s102
      %p104 = scmp.eq.s32.totalorder %s31, 0
      %p105 = por %p103, %p104
      %s107 = sadd.s32 %s106, 1
      %p110 = scmp.eq.s32.totalorder %s25, 1
      %p111 = scmp.ne.s32.totalorder %s106, %s108
      %p112 = scmp.eq.s32.totalorder %s25, 0
      %p113 = por %p111, %p112
      %p114 = scmp.ne.s32.totalorder %s106, %s108
      %p115 = scmp.eq.s32.totalorder %s30, 1
      %p116 = por %p114, %p115
      %p117 = scmp.ne.s32.totalorder %s108, %s109
      %p118 = scmp.eq.s32.totalorder %s30, 0
      %p119 = por %p117, %p118
      %p120 = scmp.ne.s32.totalorder %s108, %s109
      %p121 = scmp.eq.s32.totalorder %s31, 1
      %p122 = por %p120, %p121
      %p124 = scmp.ne.s32.totalorder %s109, %s123
      %p125 = scmp.eq.s32.totalorder %s31, 0
      %p126 = por %p124, %p125
      %s128 = sadd.s32 %s127, 1
      %p131 = scmp.eq.s32.totalorder %s25, 1
      %p132 = scmp.ne.s32.totalorder %s127, %s129
      %p133 = scmp.eq.s32.totalorder %s25, 0
      %p134 = por %p132, %p133
      %p135 = scmp.ne.s32.totalorder %s127, %s129
      %p136 = scmp.eq.s32.totalorder %s30, 1
      %p137 = por %p135, %p136
      %p138 = scmp.ne.s32.totalorder %s129, %s130
      %p139 = scmp.eq.s32.totalorder %s30, 0
      %p140 = por %p138, %p139
      %p141 = scmp.ne.s32.totalorder %s129, %s130
      %p142 = scmp.eq.s32.totalorder %s31, 1
      %p143 = por %p141, %p142
      %p145 = scmp.ne.s32.totalorder %s130, %s144
      %p146 = scmp.eq.s32.totalorder %s31, 0
      %p147 = por %p145, %p146
      %s149 = sadd.s32 %s148, 1
      %p152 = scmp.eq.s32.totalorder %s25, 1
      %p153 = scmp.ne.s32.totalorder %s148, %s150
      %p154 = scmp.eq.s32.totalorder %s25, 0
      %p155 = por %p153, %p154
      %p156 = scmp.ne.s32.totalorder %s148, %s150
      %p157 = scmp.eq.s32.totalorder %s30, 1
      %p158 = por %p156, %p157
      %p159 = scmp.ne.s32.totalorder %s150, %s151
      %p160 = scmp.eq.s32.totalorder %s30, 0
      %p161 = por %p159, %p160
      %p162 = scmp.ne.s32.totalorder %s150, %s151
      %p163 = scmp.eq.s32.totalorder %s31, 1
      %p164 = por %p162, %p163
      %p166 = scmp.ne.s32.totalorder %s151, %s165
      %p167 = scmp.eq.s32.totalorder %s31, 0
      %p168 = por %p166, %p167
      %s170 = sadd.s32 %s169, 1
      %p173 = scmp.eq.s32.totalorder %s25, 1
      %p174 = scmp.ne.s32.totalorder %s169, %s171
      %p175 = scmp.eq.s32.totalorder %s25, 0
      %p176 = por %p174, %p175
      %p177 = scmp.ne.s32.totalorder %s169, %s171
      %p178 = scmp.eq.s32.totalorder %s30, 1
      %p179 = por %p177, %p178
      %p180 = scmp.ne.s32.totalorder %s171, %s172
      %p181 = scmp.eq.s32.totalorder %s30, 0
      %p182 = por %p180, %p181
      %p183 = scmp.ne.s32.totalorder %s171, %s172
      %p184 = scmp.eq.s32.totalorder %s31, 1
      %p185 = por %p183, %p184
      %p187 = scmp.ne.s32.totalorder %s172, %s186
      %p188 = scmp.eq.s32.totalorder %s31, 0
      %p189 = por %p187, %p188
      %s191 = sadd.s32 %s190, 1
      %p194 = scmp.eq.s32.totalorder %s25, 1
      %p195 = scmp.ne.s32.totalorder %s190, %s192
      %p196 = scmp.eq.s32.totalorder %s25, 0
      %p197 = por %p195, %p196
      %p198 = scmp.ne.s32.totalorder %s190, %s192
      %p199 = scmp.eq.s32.totalorder %s30, 1
      %p200 = por %p198, %p199
      %p201 = scmp.ne.s32.totalorder %s192, %s193
      %p202 = scmp.eq.s32.totalorder %s30, 0
      %p203 = por %p201, %p202
      %p204 = scmp.ne.s32.totalorder %s192, %s193
      %p205 = scmp.eq.s32.totalorder %s31, 1
      %p206 = por %p204, %p205
      %p208 = scmp.ne.s32.totalorder %s193, %s207
      %p209 = scmp.eq.s32.totalorder %s31, 0
      %p210 = por %p208, %p209
      %s212 = sadd.s32 %s211, 1
      %p215 = scmp.eq.s32.totalorder %s25, 1
      %p216 = scmp.ne.s32.totalorder %s211, %s213
      %p217 = scmp.eq.s32.totalorder %s25, 0
      %p218 = por %p216, %p217
      %p219 = scmp.ne.s32.totalorder %s211, %s213
      %p220 = scmp.eq.s32.totalorder %s30, 1
      %p221 = por %p219, %p220
      %p222 = scmp.ne.s32.totalorder %s213, %s214
      %p223 = scmp.eq.s32.totalorder %s30, 0
      %p224 = por %p222, %p223
      %p225 = scmp.ne.s32.totalorder %s213, %s214
      %p226 = scmp.eq.s32.totalorder %s31, 1
      %p227 = por %p225, %p226
      %p229 = scmp.ne.s32.totalorder %s214, %s228
      %p230 = scmp.eq.s32.totalorder %s31, 0
      %p231 = por %p229, %p230
      %s233 = sadd.s32 %s232, 1
      %p236 = scmp.eq.s32.totalorder %s25, 1
      %p237 = scmp.ne.s32.totalorder %s232, %s234
      %p238 = scmp.eq.s32.totalorder %s25, 0
      %p239 = por %p237, %p238
      %p240 = scmp.ne.s32.totalorder %s232, %s234
      %p241 = scmp.eq.s32.totalorder %s30, 1
      %p242 = por %p240, %p241
      %p243 = scmp.ne.s32.totalorder %s234, %s235
      %p244 = scmp.eq.s32.totalorder %s30, 0
      %p245 = por %p243, %p244
      %p246 = scmp.ne.s32.totalorder %s234, %s235
      %p247 = scmp.eq.s32.totalorder %s31, 1
      %p248 = por %p246, %p247
      %p250 = scmp.ne.s32.totalorder %s235, %s249
      %p251 = scmp.eq.s32.totalorder %s31, 0
      %p252 = por %p250, %p251
      %s254 = sadd.s32 %s253, 1
      %p257 = scmp.eq.s32.totalorder %s25, 1
      %p258 = scmp.ne.s32.totalorder %s253, %s255
      %p259 = scmp.eq.s32.totalorder %s25, 0
      %p260 = por %p258, %p259
      %p261 = scmp.ne.s32.totalorder %s253, %s255
      %p262 = scmp.eq.s32.totalorder %s30, 1
      %p263 = por %p261, %p262
      %p264 = scmp.ne.s32.totalorder %s255, %s256
      %p265 = scmp.eq.s32.totalorder %s30, 0
      %p266 = por %p264, %p265
      %p267 = scmp.ne.s32.totalorder %s255, %s256
      %p268 = scmp.eq.s32.totalorder %s31, 1
      %p269 = por %p267, %p268
      %p271 = scmp.ne.s32.totalorder %s256, %s270
      %p272 = scmp.eq.s32.totalorder %s31, 0
      %p273 = por %p271, %p272
      %s274 = ssub.s32 %s25, %s32
      %p275 = scmp.eq.s32.totalorder %s274, 0
      %s277 = sadd.s32 %s276, 1
      %s278 = scalar_select %p275, %s276, %s277
      %p281 = pneg %p275
      %p282 = scmp.eq.s32.totalorder %s25, 1
      %p283 = por %p281, %p282
      %p284 = scmp.ne.s32.totalorder %s276, %s279
      %p285 = scmp.eq.s32.totalorder %s25, 0
      %p286 = por %p284, %p285
      %p287 = scmp.ne.s32.totalorder %s276, %s279
      %p288 = scmp.eq.s32.totalorder %s30, 1
      %p289 = por %p287, %p288
      %p290 = scmp.ne.s32.totalorder %s279, %s280
      %p291 = scmp.eq.s32.totalorder %s30, 0
      %p292 = por %p290, %p291
      %p293 = scmp.ne.s32.totalorder %s279, %s280
      %p294 = scmp.eq.s32.totalorder %s31, 1
      %p295 = por %p293, %p294
      %p297 = scmp.ne.s32.totalorder %s280, %s296
      %p298 = scmp.eq.s32.totalorder %s31, 0
      %p299 = por %p297, %p298
      %s300 = ssub.s32 %s25, %s32
      %p301 = scmp.eq.s32.totalorder %s300, 0
      %s303 = sadd.s32 %s302, 1
      %s304 = scalar_select %p301, %s302, %s303
      %p307 = pneg %p301
      %p308 = scmp.eq.s32.totalorder %s25, 1
      %p309 = por %p307, %p308
      %p310 = scmp.ne.s32.totalorder %s302, %s305
      %p311 = scmp.eq.s32.totalorder %s25, 0
      %p312 = por %p310, %p311
      %p313 = scmp.ne.s32.totalorder %s302, %s305
      %p314 = scmp.eq.s32.totalorder %s30, 1
      %p315 = por %p313, %p314
      %p316 = scmp.ne.s32.totalorder %s305, %s306
      %p317 = scmp.eq.s32.totalorder %s30, 0
      %p318 = por %p316, %p317
      %p319 = scmp.ne.s32.totalorder %s305, %s306
      %p320 = scmp.eq.s32.totalorder %s31, 1
      %p321 = por %p319, %p320
      %p323 = scmp.ne.s32.totalorder %s306, %s322
      %p324 = scmp.eq.s32.totalorder %s31, 0
      %p325 = por %p323, %p324
      %p326 = scmp.le.s32.totalorder 1, %s25
      %p327 = scmp.lt.s32.totalorder %s25, 3
      %p328 = pnand %p326, %p327
      %p329 = pneg %p328
      // Predicated region
      $region9: #{tpu_custom_call.1} parent=5 // pred_check
        _
      $region10: #{tpu_custom_call.1} parent=5 // pred_check_branch
        %331 = sbr.rel (%p328) target = $region12
      $region11: #{tpu_custom_call.1} parent=5 // pred_region
        %s332 = ssub.s32 %s25, 1
        // Predicated region
        $region13: #{tpu_custom_call.1} parent=11 // pred_check
          %p333 = pneg %p98
        $region14: #{tpu_custom_call.1} parent=11 // pred_check_branch
          %335 = sbr.rel (%p333) target = $region16
        $region15: #{tpu_custom_call.1} parent=11 // pred_region
          _
        $region16: #{tpu_custom_call.1} parent=11 // pred_fallthru
          _
        // Predicated region
        $region17: #{tpu_custom_call.1} parent=11 // pred_check
          %p336 = pneg %p119
        $region18: #{tpu_custom_call.1} parent=11 // pred_check_branch
          %338 = sbr.rel (%p336) target = $region20
        $region19: #{tpu_custom_call.1} parent=11 // pred_region
          _
        $region20: #{tpu_custom_call.1} parent=11 // pred_fallthru
          _
        // Predicated region
        $region21: #{tpu_custom_call.1} parent=11 // pred_check
          %p339 = pneg %p140
        $region22: #{tpu_custom_call.1} parent=11 // pred_check_branch
          %341 = sbr.rel (%p339) target = $region24
        $region23: #{tpu_custom_call.1} parent=11 // pred_region
          _
        $region24: #{tpu_custom_call.1} parent=11 // pred_fallthru
          _
        // Predicated region
        $region25: #{tpu_custom_call.1} parent=11 // pred_check
          %p342 = pneg %p161
        $region26: #{tpu_custom_call.1} parent=11 // pred_check_branch
          %344 = sbr.rel (%p342) target = $region28
        $region27: #{tpu_custom_call.1} parent=11 // pred_region
          _
        $region28: #{tpu_custom_call.1} parent=11 // pred_fallthru
          _
        // Predicated region
        $region29: #{tpu_custom_call.1} parent=11 // pred_check
          %p345 = pneg %p182
        $region30: #{tpu_custom_call.1} parent=11 // pred_check_branch
          %347 = sbr.rel (%p345) target = $region32
        $region31: #{tpu_custom_call.1} parent=11 // pred_region
          _
        $region32: #{tpu_custom_call.1} parent=11 // pred_fallthru
          _
        // Predicated region
        $region33: #{tpu_custom_call.1} parent=11 // pred_check
          %p348 = pneg %p203
        $region34: #{tpu_custom_call.1} parent=11 // pred_check_branch
          %350 = sbr.rel (%p348) target = $region36
        $region35: #{tpu_custom_call.1} parent=11 // pred_region
          _
        $region36: #{tpu_custom_call.1} parent=11 // pred_fallthru
          _
        // Predicated region
        $region37: #{tpu_custom_call.1} parent=11 // pred_check
          %p351 = pneg %p224
        $region38: #{tpu_custom_call.1} parent=11 // pred_check_branch
          %353 = sbr.rel (%p351) target = $region40
        $region39: #{tpu_custom_call.1} parent=11 // pred_region
          _
        $region40: #{tpu_custom_call.1} parent=11 // pred_fallthru
          _
        // Predicated region
        $region41: #{tpu_custom_call.1} parent=11 // pred_check
          %p354 = pneg %p245
        $region42: #{tpu_custom_call.1} parent=11 // pred_check_branch
          %356 = sbr.rel (%p354) target = $region44
        $region43: #{tpu_custom_call.1} parent=11 // pred_region
          _
        $region44: #{tpu_custom_call.1} parent=11 // pred_fallthru
          _
        // Predicated region
        $region45: #{tpu_custom_call.1} parent=11 // pred_check
          %p357 = pneg %p266
        $region46: #{tpu_custom_call.1} parent=11 // pred_check_branch
          %359 = sbr.rel (%p357) target = $region48
        $region47: #{tpu_custom_call.1} parent=11 // pred_region
          _
        $region48: #{tpu_custom_call.1} parent=11 // pred_fallthru
          _
      $region12: #{tpu_custom_call.1} parent=5 // pred_fallthru
        _
      %p360 = scmp.lt.s32.totalorder %s25, 2
      // Predicated region
      $region49: #{tpu_custom_call.1} parent=5 // pred_check
        %p361 = pneg %p360
      $region50: #{tpu_custom_call.1} parent=5 // pred_check_branch
        %363 = sbr.rel (%p361) target = $region52
      $region51: #{tpu_custom_call.1} parent=5 // pred_region
        // Predicated region
        $region53: #{tpu_custom_call.1} parent=51 // pred_check
          %p364 = pneg %p45
        $region54: #{tpu_custom_call.1} parent=51 // pred_check_branch
          %366 = sbr.rel (%p364) target = $region56
        $region55: #{tpu_custom_call.1} parent=51 // pred_region
          %s367 = smul.u32 2, %s25
          %p368 = scmp.lt.s32.totalorder %s367, 3
          %s369 = scalar_select %p368, %s367, 3
          %s370 = smul.addr %s369, 8
          %s371 = scalar_lea.vmem %s0, %s370
          %s372 = smul.u32 2, %s25
        $region56: #{tpu_custom_call.1} parent=51 // pred_fallthru
          _
        // Predicated region
        $region57: #{tpu_custom_call.1} parent=51 // pred_check
          %p373 = pneg %p71
        $region58: #{tpu_custom_call.1} parent=51 // pred_check_branch
          %375 = sbr.rel (%p373) target = $region60
        $region59: #{tpu_custom_call.1} parent=51 // pred_region
          %s376 = smul.u32 2, %s25
          %p377 = scmp.lt.s32.totalorder %s376, 3
          %s378 = scalar_select %p377, %s376, 3
          %s379 = smul.addr %s378, 8
          %s380 = scalar_lea.vmem %s1, %s379
          %s381 = smul.u32 2, %s25
        $region60: #{tpu_custom_call.1} parent=51 // pred_fallthru
          _
      $region52: #{tpu_custom_call.1} parent=5 // pred_fallthru
        _
      %p382 = scmp.le.s32.totalorder 1, %s25
      %p383 = scmp.lt.s32.totalorder %s25, 3
      %p384 = pnand %p382, %p383
      %p385 = pneg %p384
      // Predicated region
      $region61: #{tpu_custom_call.1} parent=5 // pred_check
        _
      $region62: #{tpu_custom_call.1} parent=5 // pred_check_branch
        %387 = sbr.rel (%p384) target = $region64
      $region63: #{tpu_custom_call.1} parent=5 // pred_region
        %s388 = ssub.s32 %s25, 1
        %s389 = smul.u32 2, %s30
        %p390 = scmp.lt.s32.totalorder %s389, 3
        %s391 = scalar_select %p390, %s389, 3
        %s392 = smul.addr %s391, 8
        %s393 = scalar_lea.vmem %s0, %s392
        %p394 = pneg %p51
        %p395 = pneg %p48
        %s396 = smul.u32 2, %s30
        %p397 = scmp.lt.s32.totalorder %s396, 3
        %s398 = scalar_select %p397, %s396, 3
        %s399 = smul.addr %s398, 8
        %s400 = scalar_lea.vmem %s1, %s399
        %p401 = pneg %p77
        %p402 = pneg %p74
        %p403 = pneg %p98
        %p404 = pneg %p95
        %p405 = pneg %p119
        %p406 = pneg %p116
        %p407 = pneg %p140
        %p408 = pneg %p137
        %p409 = pneg %p161
        %p410 = pneg %p158
        %p411 = pneg %p182
        %p412 = pneg %p179
        %p413 = pneg %p203
        %p414 = pneg %p200
        %p415 = pneg %p224
        %p416 = pneg %p221
        %p417 = pneg %p245
        %p418 = pneg %p242
        %p419 = pneg %p266
        %p420 = pneg %p263
        %p421 = pneg %p292
        %p422 = pneg %p289
        %s423 = sand.u32 %s279, 1
        %s424 = scalar_lea.sflag [#allocation3], %s423
        %s425 = sand.u32 %s279, 1
        %s426 = smul.addr %s425, 16
        %s427 = scalar_lea.vmem [#allocation2], %s426
        %p428 = pneg %p318
        %p429 = pneg %p315
        %s430 = sand.u32 %s305, 1
        %s431 = scalar_lea.sflag [#allocation5], %s430
        %s432 = sand.u32 %s305, 1
        %s433 = smul.addr %s432, 64
        %s434 = scalar_lea.vmem [#allocation4], %s433
        %s435 = smul.u32 2, %s30
        %p436 = scmp.lt.s32.totalorder %s435, 3
        %s437 = scalar_select %p436, %s435, 3
        %s438 = smul.addr %s437, 8
        %s439 = scalar_lea.vmem %s0, %s438
        %s440 = smul.u32 2, %s30
        %s441 = smul.u32 2, %s30
        %p442 = scmp.lt.s32.totalorder %s441, 3
        %s443 = scalar_select %p442, %s441, 3
        %s444 = smul.addr %s443, 8
        %s445 = scalar_lea.vmem %s1, %s444
        %s446 = smul.u32 2, %s30
        %s447 = smul.u32 2, %s30
        %s448 = smul.u32 2, %s30
        %v449 = vld [vmem:[%s439] sm:$0xff]
        %v450 = vld [vmem:[%s439 + $0x8] sm:$0xff]
        %v451 = vld [vmem:[%s2] sm:$0x1]
        %v452 = vld [vmem:[%s3] sm:$0x1]
        %vm453 = vcmask 261120
        %v454 = vsel %vm453, %v449, 0.0
        %455 = vadd.xlane.f32.xlu0 %v454
        %v456 = vpop.xlane.xlu0 %455
        %v457 = vsel %vm453, %v450, 0.0
        %458 = vadd.xlane.f32.xlu0 %v457
        %v459 = vpop.xlane.xlu0 %458
        %v460 = vrcp.pop 32.0
        %v461 = vmul.f32 %v456, %v460
        %v462 = vmul.f32 %v459, %v460
        %v463 = vsub.f32 %v449, %v461
        %v464 = vsub.f32 %v450, %v462
        %v465 = vmul.f32 %v463, %v463
        %v466 = vmul.f32 %v464, %v464
        %v467 = vsel %vm453, %v465, 0.0
        %468 = vadd.xlane.f32.xlu0 %v467
        %v469 = vpop.xlane.xlu0 %468
        %v470 = vsel %vm453, %v466, 0.0
        %471 = vadd.xlane.f32.xlu0 %v470
        %v472 = vpop.xlane.xlu0 %471
        %v473 = vmul.f32 %v469, %v460
        %v474 = vmul.f32 %v472, %v460
        %v475 = vadd.f32 %v473, 1e-05
        %v476 = vadd.f32 %v474, 1e-05
        %v477 = vrsqrt.pop %v475
        %v478 = vrsqrt.pop %v476
        %v479 = vmul.f32 %v463, %v477
        %v480 = vmul.f32 %v464, %v478
        %v482 = vlaneseq
        %v483 = vshrl.u32 %v482, 7
        %v484 = vsub.s32 0, %v483
        %v485 = vrot.slane %v451, %v484
        %v487 = vmul.f32 %v479, %v485
        %v488 = vmul.f32 %v480, %v485
        %v490 = vlaneseq
        %v491 = vshrl.u32 %v490, 7
        %v492 = vsub.s32 0, %v491
        %v493 = vrot.slane %v452, %v492
        %v495 = vadd.f32 %v487, %v493
        %v496 = vadd.f32 %v488, %v493
        %v497 = vld [vmem:[%s445] sm:$0x1]
        %v498 = vld [vmem:[%s445 + $0x1] sm:$0x1]
        %v499 = vld [vmem:[%s445 + $0x2] sm:$0x1]
        %v500 = vld [vmem:[%s445 + $0x3] sm:$0x1]
        %v501 = vld [vmem:[%s445 + $0x4] sm:$0x1]
        %v502 = vld [vmem:[%s445 + $0x5] sm:$0x1]
        %v503 = vld [vmem:[%s445 + $0x6] sm:$0x1]
        %v504 = vld [vmem:[%s445 + $0x7] sm:$0x1]
        %v505 = vld [vmem:[%s445 + $0x8] sm:$0x1]
        %v506 = vld [vmem:[%s445 + $0x9] sm:$0x1]
        %v507 = vld [vmem:[%s445 + $0xa] sm:$0x1]
        %v508 = vld [vmem:[%s445 + $0xb] sm:$0x1]
        %v509 = vld [vmem:[%s445 + $0xc] sm:$0x1]
        %v510 = vld [vmem:[%s445 + $0xd] sm:$0x1]
        %v511 = vld [vmem:[%s445 + $0xe] sm:$0x1]
        %v512 = vld [vmem:[%s445 + $0xf] sm:$0x1]
        %v513 = vld [vmem:[%s4] sm:$0x1]
        %v514 = vld [vmem:[%s5] sm:$0x1]
        %v531 = vcombine.low %v497, %v498
        %v532 = vcombine.low %v499, %v500
        %v533 = vcombine.low %v501, %v502
        %v534 = vcombine.low %v503, %v504
        %v536 = vunpack.c.l.s4 1966171168
        %v537 = vunpack.c.0.s8 %v536
        %v538 = vlaneseq
        %v539 = vshrl.u32 %v538, 7
        %v540 = vsub.s32 %v537, %v539
        %v541 = vrot.slane %v531, %v540
        %v543 = vunpack.c.l.s4 1966171168
        %v544 = vunpack.c.0.s8 %v543
        %v545 = vlaneseq
        %v546 = vshrl.u32 %v545, 7
        %v547 = vsub.s32 %v544, %v546
        %v548 = vrot.slane %v532, %v547
        %v550 = vunpack.c.l.s4 1966171168
        %v551 = vunpack.c.0.s8 %v550
        %v552 = vlaneseq
        %v553 = vshrl.u32 %v552, 7
        %v554 = vsub.s32 %v551, %v553
        %v555 = vrot.slane %v533, %v554
        %v557 = vunpack.c.l.s4 1966171168
        %v558 = vunpack.c.0.s8 %v557
        %v559 = vlaneseq
        %v560 = vshrl.u32 %v559, 7
        %v561 = vsub.s32 %v558, %v560
        %v562 = vrot.slane %v534, %v561
        %v563 = vcombine.low %v541, %v548
        %v564 = vcombine.low %v555, %v562
        %v566 = vunpack.c.l.s4 1966171168
        %v567 = vunpack.c.0.s8 %v566
        %v568 = vlaneseq
        %v569 = vshrl.u32 %v568, 7
        %v570 = vsub.s32 %v567, %v569
        %v571 = vrot.slane %v563, %v570
        %v573 = vunpack.c.l.s4 1966171168
        %v574 = vunpack.c.0.s8 %v573
        %v575 = vlaneseq
        %v576 = vshrl.u32 %v575, 7
        %v577 = vsub.s32 %v574, %v576
        %v578 = vrot.slane %v564, %v577
        %v579 = vcombine.low %v571, %v578
        %v580 = vcombine.low %v505, %v506
        %v581 = vcombine.low %v507, %v508
        %v582 = vcombine.low %v509, %v510
        %v583 = vcombine.low %v511, %v512
        %v585 = vunpack.c.l.s4 1966171168
        %v586 = vunpack.c.0.s8 %v585
        %v587 = vlaneseq
        %v588 = vshrl.u32 %v587, 7
        %v589 = vsub.s32 %v586, %v588
        %v590 = vrot.slane %v580, %v589
        %v592 = vunpack.c.l.s4 1966171168
        %v593 = vunpack.c.0.s8 %v592
        %v594 = vlaneseq
        %v595 = vshrl.u32 %v594, 7
        %v596 = vsub.s32 %v593, %v595
        %v597 = vrot.slane %v581, %v596
        %v599 = vunpack.c.l.s4 1966171168
        %v600 = vunpack.c.0.s8 %v599
        %v601 = vlaneseq
        %v602 = vshrl.u32 %v601, 7
        %v603 = vsub.s32 %v600, %v602
        %v604 = vrot.slane %v582, %v603
        %v606 = vunpack.c.l.s4 1966171168
        %v607 = vunpack.c.0.s8 %v606
        %v608 = vlaneseq
        %v609 = vshrl.u32 %v608, 7
        %v610 = vsub.s32 %v607, %v609
        %v611 = vrot.slane %v583, %v610
        %v612 = vcombine.low %v590, %v597
        %v613 = vcombine.low %v604, %v611
        %v615 = vunpack.c.l.s4 1966171168
        %v616 = vunpack.c.0.s8 %v615
        %v617 = vlaneseq
        %v618 = vshrl.u32 %v617, 7
        %v619 = vsub.s32 %v616, %v618
        %v620 = vrot.slane %v612, %v619
        %v622 = vunpack.c.l.s4 1966171168
        %v623 = vunpack.c.0.s8 %v622
        %v624 = vlaneseq
        %v625 = vshrl.u32 %v624, 7
        %v626 = vsub.s32 %v623, %v625
        %v627 = vrot.slane %v613, %v626
        %v628 = vcombine.low %v620, %v627
        %v631 = vsel %vm453, %v579, 0.0
        %632 = vadd.xlane.f32.xlu0 %v631
        %v633 = vpop.xlane.xlu0 %632
        %v634 = vsel %vm453, %v628, 0.0
        %635 = vadd.xlane.f32.xlu0 %v634
        %v636 = vpop.xlane.xlu0 %635
        %v637 = vmul.f32 %v633, %v460
        %v638 = vmul.f32 %v636, %v460
        %v641 = vlaneseq
        %v642 = vshrl.u32 %v641, 7
        %v643 = vsub.s32 0, %v642
        %v644 = vrot.slane %v637, %v643
        %v645 = vlaneseq
        %v646 = vshrl.u32 %v645, 7
        %v647 = vsub.s32 1, %v646
        %v648 = vrot.slane %v637, %v647
        %v649 = vlaneseq
        %v650 = vshrl.u32 %v649, 7
        %v651 = vsub.s32 2, %v650
        %v652 = vrot.slane %v637, %v651
        %v653 = vlaneseq
        %v654 = vshrl.u32 %v653, 7
        %v655 = vsub.s32 3, %v654
        %v656 = vrot.slane %v637, %v655
        %v657 = vlaneseq
        %v658 = vshrl.u32 %v657, 7
        %v659 = vsub.s32 4, %v658
        %v660 = vrot.slane %v637, %v659
        %v661 = vlaneseq
        %v662 = vshrl.u32 %v661, 7
        %v663 = vsub.s32 5, %v662
        %v664 = vrot.slane %v637, %v663
        %v665 = vlaneseq
        %v666 = vshrl.u32 %v665, 7
        %v667 = vsub.s32 6, %v666
        %v668 = vrot.slane %v637, %v667
        %v669 = vlaneseq
        %v670 = vshrl.u32 %v669, 7
        %v671 = vsub.s32 7, %v670
        %v672 = vrot.slane %v637, %v671
        %v673 = vlaneseq
        %v674 = vshrl.u32 %v673, 7
        %v675 = vsub.s32 0, %v674
        %v676 = vrot.slane %v638, %v675
        %v677 = vlaneseq
        %v678 = vshrl.u32 %v677, 7
        %v679 = vsub.s32 1, %v678
        %v680 = vrot.slane %v638, %v679
        %v681 = vlaneseq
        %v682 = vshrl.u32 %v681, 7
        %v683 = vsub.s32 2, %v682
        %v684 = vrot.slane %v638, %v683
        %v685 = vlaneseq
        %v686 = vshrl.u32 %v685, 7
        %v687 = vsub.s32 3, %v686
        %v688 = vrot.slane %v638, %v687
        %v689 = vlaneseq
        %v690 = vshrl.u32 %v689, 7
        %v691 = vsub.s32 4, %v690
        %v692 = vrot.slane %v638, %v691
        %v693 = vlaneseq
        %v694 = vshrl.u32 %v693, 7
        %v695 = vsub.s32 5, %v694
        %v696 = vrot.slane %v638, %v695
        %v697 = vlaneseq
        %v698 = vshrl.u32 %v697, 7
        %v699 = vsub.s32 6, %v698
        %v700 = vrot.slane %v638, %v699
        %v701 = vlaneseq
        %v702 = vshrl.u32 %v701, 7
        %v703 = vsub.s32 7, %v702
        %v704 = vrot.slane %v638, %v703
        %v721 = vsub.f32 %v497, %v644
        %v722 = vsub.f32 %v498, %v648
        %v723 = vsub.f32 %v499, %v652
        %v724 = vsub.f32 %v500, %v656
        %v725 = vsub.f32 %v501, %v660
        %v726 = vsub.f32 %v502, %v664
        %v727 = vsub.f32 %v503, %v668
        %v728 = vsub.f32 %v504, %v672
        %v729 = vsub.f32 %v505, %v676
        %v730 = vsub.f32 %v506, %v680
        %v731 = vsub.f32 %v507, %v684
        %v732 = vsub.f32 %v508, %v688
        %v733 = vsub.f32 %v509, %v692
        %v734 = vsub.f32 %v510, %v696
        %v735 = vsub.f32 %v511, %v700
        %v736 = vsub.f32 %v512, %v704
        %v737 = vmul.f32 %v721, %v721
        %v738 = vmul.f32 %v722, %v722
        %v739 = vmul.f32 %v723, %v723
        %v740 = vmul.f32 %v724, %v724
        %v741 = vmul.f32 %v725, %v725
        %v742 = vmul.f32 %v726, %v726
        %v743 = vmul.f32 %v727, %v727
        %v744 = vmul.f32 %v728, %v728
        %v745 = vmul.f32 %v729, %v729
        %v746 = vmul.f32 %v730, %v730
        %v747 = vmul.f32 %v731, %v731
        %v748 = vmul.f32 %v732, %v732
        %v749 = vmul.f32 %v733, %v733
        %v750 = vmul.f32 %v734, %v734
        %v751 = vmul.f32 %v735, %v735
        %v752 = vmul.f32 %v736, %v736
        %v769 = vcombine.low %v737, %v738
        %v770 = vcombine.low %v739, %v740
        %v771 = vcombine.low %v741, %v742
        %v772 = vcombine.low %v743, %v744
        %v774 = vunpack.c.l.s4 1966171168
        %v775 = vunpack.c.0.s8 %v774
        %v776 = vlaneseq
        %v777 = vshrl.u32 %v776, 7
        %v778 = vsub.s32 %v775, %v777
        %v779 = vrot.slane %v769, %v778
        %v781 = vunpack.c.l.s4 1966171168
        %v782 = vunpack.c.0.s8 %v781
        %v783 = vlaneseq
        %v784 = vshrl.u32 %v783, 7
        %v785 = vsub.s32 %v782, %v784
        %v786 = vrot.slane %v770, %v785
        %v788 = vunpack.c.l.s4 1966171168
        %v789 = vunpack.c.0.s8 %v788
        %v790 = vlaneseq
        %v791 = vshrl.u32 %v790, 7
        %v792 = vsub.s32 %v789, %v791
        %v793 = vrot.slane %v771, %v792
        %v795 = vunpack.c.l.s4 1966171168
        %v796 = vunpack.c.0.s8 %v795
        %v797 = vlaneseq
        %v798 = vshrl.u32 %v797, 7
        %v799 = vsub.s32 %v796, %v798
        %v800 = vrot.slane %v772, %v799
        %v801 = vcombine.low %v779, %v786
        %v802 = vcombine.low %v793, %v800
        %v804 = vunpack.c.l.s4 1966171168
        %v805 = vunpack.c.0.s8 %v804
        %v806 = vlaneseq
        %v807 = vshrl.u32 %v806, 7
        %v808 = vsub.s32 %v805, %v807
        %v809 = vrot.slane %v801, %v808
        %v811 = vunpack.c.l.s4 1966171168
        %v812 = vunpack.c.0.s8 %v811
        %v813 = vlaneseq
        %v814 = vshrl.u32 %v813, 7
        %v815 = vsub.s32 %v812, %v814
        %v816 = vrot.slane %v802, %v815
        %v817 = vcombine.low %v809, %v816
        %v818 = vcombine.low %v745, %v746
        %v819 = vcombine.low %v747, %v748
        %v820 = vcombine.low %v749, %v750
        %v821 = vcombine.low %v751, %v752
        %v823 = vunpack.c.l.s4 1966171168
        %v824 = vunpack.c.0.s8 %v823
        %v825 = vlaneseq
        %v826 = vshrl.u32 %v825, 7
        %v827 = vsub.s32 %v824, %v826
        %v828 = vrot.slane %v818, %v827
        %v830 = vunpack.c.l.s4 1966171168
        %v831 = vunpack.c.0.s8 %v830
        %v832 = vlaneseq
        %v833 = vshrl.u32 %v832, 7
        %v834 = vsub.s32 %v831, %v833
        %v835 = vrot.slane %v819, %v834
        %v837 = vunpack.c.l.s4 1966171168
        %v838 = vunpack.c.0.s8 %v837
        %v839 = vlaneseq
        %v840 = vshrl.u32 %v839, 7
        %v841 = vsub.s32 %v838, %v840
        %v842 = vrot.slane %v820, %v841
        %v844 = vunpack.c.l.s4 1966171168
        %v845 = vunpack.c.0.s8 %v844
        %v846 = vlaneseq
        %v847 = vshrl.u32 %v846, 7
        %v848 = vsub.s32 %v845, %v847
        %v849 = vrot.slane %v821, %v848
        %v850 = vcombine.low %v828, %v835
        %v851 = vcombine.low %v842, %v849
        %v853 = vunpack.c.l.s4 1966171168
        %v854 = vunpack.c.0.s8 %v853
        %v855 = vlaneseq
        %v856 = vshrl.u32 %v855, 7
        %v857 = vsub.s32 %v854, %v856
        %v858 = vrot.slane %v850, %v857
        %v860 = vunpack.c.l.s4 1966171168
        %v861 = vunpack.c.0.s8 %v860
        %v862 = vlaneseq
        %v863 = vshrl.u32 %v862, 7
        %v864 = vsub.s32 %v861, %v863
        %v865 = vrot.slane %v851, %v864
        %v866 = vcombine.low %v858, %v865
        %v869 = vsel %vm453, %v817, 0.0
        %870 = vadd.xlane.f32.xlu0 %v869
        %v871 = vpop.xlane.xlu0 %870
        %v872 = vsel %vm453, %v866, 0.0
        %873 = vadd.xlane.f32.xlu0 %v872
        %v874 = vpop.xlane.xlu0 %873
        %v875 = vmul.f32 %v871, %v460
        %v876 = vmul.f32 %v874, %v460
        %v877 = vadd.f32 %v875, 1e-05
        %v878 = vadd.f32 %v876, 1e-05
        %v879 = vrsqrt.pop %v877
        %v880 = vrsqrt.pop %v878
        %v883 = vlaneseq
        %v884 = vshrl.u32 %v883, 7
        %v885 = vsub.s32 0, %v884
        %v886 = vrot.slane %v879, %v885
        %v887 = vlaneseq
        %v888 = vshrl.u32 %v887, 7
        %v889 = vsub.s32 1, %v888
        %v890 = vrot.slane %v879, %v889
        %v891 = vlaneseq
        %v892 = vshrl.u32 %v891, 7
        %v893 = vsub.s32 2, %v892
        %v894 = vrot.slane %v879, %v893
        %v895 = vlaneseq
        %v896 = vshrl.u32 %v895, 7
        %v897 = vsub.s32 3, %v896
        %v898 = vrot.slane %v879, %v897
        %v899 = vlaneseq
        %v900 = vshrl.u32 %v899, 7
        %v901 = vsub.s32 4, %v900
        %v902 = vrot.slane %v879, %v901
        %v903 = vlaneseq
        %v904 = vshrl.u32 %v903, 7
        %v905 = vsub.s32 5, %v904
        %v906 = vrot.slane %v879, %v905
        %v907 = vlaneseq
        %v908 = vshrl.u32 %v907, 7
        %v909 = vsub.s32 6, %v908
        %v910 = vrot.slane %v879, %v909
        %v911 = vlaneseq
        %v912 = vshrl.u32 %v911, 7
        %v913 = vsub.s32 7, %v912
        %v914 = vrot.slane %v879, %v913
        %v915 = vlaneseq
        %v916 = vshrl.u32 %v915, 7
        %v917 = vsub.s32 0, %v916
        %v918 = vrot.slane %v880, %v917
        %v919 = vlaneseq
        %v920 = vshrl.u32 %v919, 7
        %v921 = vsub.s32 1, %v920
        %v922 = vrot.slane %v880, %v921
        %v923 = vlaneseq
        %v924 = vshrl.u32 %v923, 7
        %v925 = vsub.s32 2, %v924
        %v926 = vrot.slane %v880, %v925
        %v927 = vlaneseq
        %v928 = vshrl.u32 %v927, 7
        %v929 = vsub.s32 3, %v928
        %v930 = vrot.slane %v880, %v929
        %v931 = vlaneseq
        %v932 = vshrl.u32 %v931, 7
        %v933 = vsub.s32 4, %v932
        %v934 = vrot.slane %v880, %v933
        %v935 = vlaneseq
        %v936 = vshrl.u32 %v935, 7
        %v937 = vsub.s32 5, %v936
        %v938 = vrot.slane %v880, %v937
        %v939 = vlaneseq
        %v940 = vshrl.u32 %v939, 7
        %v941 = vsub.s32 6, %v940
        %v942 = vrot.slane %v880, %v941
        %v943 = vlaneseq
        %v944 = vshrl.u32 %v943, 7
        %v945 = vsub.s32 7, %v944
        %v946 = vrot.slane %v880, %v945
        %v963 = vmul.f32 %v721, %v886
        %v964 = vmul.f32 %v722, %v890
        %v965 = vmul.f32 %v723, %v894
        %v966 = vmul.f32 %v724, %v898
        %v967 = vmul.f32 %v725, %v902
        %v968 = vmul.f32 %v726, %v906
        %v969 = vmul.f32 %v727, %v910
        %v970 = vmul.f32 %v728, %v914
        %v971 = vmul.f32 %v729, %v918
        %v972 = vmul.f32 %v730, %v922
        %v973 = vmul.f32 %v731, %v926
        %v974 = vmul.f32 %v732, %v930
        %v975 = vmul.f32 %v733, %v934
        %v976 = vmul.f32 %v734, %v938
        %v977 = vmul.f32 %v735, %v942
        %v978 = vmul.f32 %v736, %v946
        %v980 = vlaneseq
        %v981 = vshrl.u32 %v980, 7
        %v982 = vsub.s32 0, %v981
        %v983 = vrot.slane %v513, %v982
        %v984 = vcombine.high %v983, %v983
        %v986 = vunpack.c.l.s4 1966171168
        %v987 = vunpack.c.0.s8 %v986
        %v988 = vlaneseq
        %v989 = vshrl.u32 %v988, 7
        %v990 = vsub.s32 %v987, %v989
        %v991 = vrot.slane %v983, %v990
        %v993 = vunpack.c.l.s4 1966171168
        %v994 = vunpack.c.0.s8 %v993
        %v995 = vlaneseq
        %v996 = vshrl.u32 %v995, 7
        %v997 = vsub.s32 %v994, %v996
        %v998 = vrot.slane %v984, %v997
        %v999 = vcombine.high %v991, %v991
        %v1000 = vcombine.high %v998, %v998
        %v1002 = vunpack.c.l.s4 1966171168
        %v1003 = vunpack.c.0.s8 %v1002
        %v1004 = vlaneseq
        %v1005 = vshrl.u32 %v1004, 7
        %v1006 = vsub.s32 %v1003, %v1005
        %v1007 = vrot.slane %v991, %v1006
        %v1009 = vunpack.c.l.s4 1966171168
        %v1010 = vunpack.c.0.s8 %v1009
        %v1011 = vlaneseq
        %v1012 = vshrl.u32 %v1011, 7
        %v1013 = vsub.s32 %v1010, %v1012
        %v1014 = vrot.slane %v998, %v1013
        %v1016 = vunpack.c.l.s4 1966171168
        %v1017 = vunpack.c.0.s8 %v1016
        %v1018 = vlaneseq
        %v1019 = vshrl.u32 %v1018, 7
        %v1020 = vsub.s32 %v1017, %v1019
        %v1021 = vrot.slane %v999, %v1020
        %v1023 = vunpack.c.l.s4 1966171168
        %v1024 = vunpack.c.0.s8 %v1023
        %v1025 = vlaneseq
        %v1026 = vshrl.u32 %v1025, 7
        %v1027 = vsub.s32 %v1024, %v1026
        %v1028 = vrot.slane %v1000, %v1027
        %v1029 = vcombine.high %v1007, %v1007
        %v1030 = vcombine.high %v1014, %v1014
        %v1031 = vcombine.high %v1021, %v1021
        %v1032 = vcombine.high %v1028, %v1028
        %v1041 = vmul.f32 %v963, %v1007
        %v1042 = vmul.f32 %v964, %v1021
        %v1043 = vmul.f32 %v965, %v1029
        %v1044 = vmul.f32 %v966, %v1031
        %v1045 = vmul.f32 %v967, %v1014
        %v1046 = vmul.f32 %v968, %v1028
        %v1047 = vmul.f32 %v969, %v1030
        %v1048 = vmul.f32 %v970, %v1032
        %v1049 = vmul.f32 %v971, %v1007
        %v1050 = vmul.f32 %v972, %v1021
        %v1051 = vmul.f32 %v973, %v1029
        %v1052 = vmul.f32 %v974, %v1031
        %v1053 = vmul.f32 %v975, %v1014
        %v1054 = vmul.f32 %v976, %v1028
        %v1055 = vmul.f32 %v977, %v1030
        %v1056 = vmul.f32 %v978, %v1032
        %v1058 = vlaneseq
        %v1059 = vshrl.u32 %v1058, 7
        %v1060 = vsub.s32 0, %v1059
        %v1061 = vrot.slane %v514, %v1060
        %v1062 = vcombine.high %v1061, %v1061
        %v1064 = vunpack.c.l.s4 1966171168
        %v1065 = vunpack.c.0.s8 %v1064
        %v1066 = vlaneseq
        %v1067 = vshrl.u32 %v1066, 7
        %v1068 = vsub.s32 %v1065, %v1067
        %v1069 = vrot.slane %v1061, %v1068
        %v1071 = vunpack.c.l.s4 1966171168
        %v1072 = vunpack.c.0.s8 %v1071
        %v1073 = vlaneseq
        %v1074 = vshrl.u32 %v1073, 7
        %v1075 = vsub.s32 %v1072, %v1074
        %v1076 = vrot.slane %v1062, %v1075
        %v1077 = vcombine.high %v1069, %v1069
        %v1078 = vcombine.high %v1076, %v1076
        %v1080 = vunpack.c.l.s4 1966171168
        %v1081 = vunpack.c.0.s8 %v1080
        %v1082 = vlaneseq
        %v1083 = vshrl.u32 %v1082, 7
        %v1084 = vsub.s32 %v1081, %v1083
        %v1085 = vrot.slane %v1069, %v1084
        %v1087 = vunpack.c.l.s4 1966171168
        %v1088 = vunpack.c.0.s8 %v1087
        %v1089 = vlaneseq
        %v1090 = vshrl.u32 %v1089, 7
        %v1091 = vsub.s32 %v1088, %v1090
        %v1092 = vrot.slane %v1076, %v1091
        %v1094 = vunpack.c.l.s4 1966171168
        %v1095 = vunpack.c.0.s8 %v1094
        %v1096 = vlaneseq
        %v1097 = vshrl.u32 %v1096, 7
        %v1098 = vsub.s32 %v1095, %v1097
        %v1099 = vrot.slane %v1077, %v1098
        %v1101 = vunpack.c.l.s4 1966171168
        %v1102 = vunpack.c.0.s8 %v1101
        %v1103 = vlaneseq
        %v1104 = vshrl.u32 %v1103, 7
        %v1105 = vsub.s32 %v1102, %v1104
        %v1106 = vrot.slane %v1078, %v1105
        %v1107 = vcombine.high %v1085, %v1085
        %v1108 = vcombine.high %v1092, %v1092
        %v1109 = vcombine.high %v1099, %v1099
        %v1110 = vcombine.high %v1106, %v1106
        %v1119 = vadd.f32 %v1041, %v1085
        %v1120 = vadd.f32 %v1042, %v1099
        %v1121 = vadd.f32 %v1043, %v1107
        %v1122 = vadd.f32 %v1044, %v1109
        %v1123 = vadd.f32 %v1045, %v1092
        %v1124 = vadd.f32 %v1046, %v1106
        %v1125 = vadd.f32 %v1047, %v1108
        %v1126 = vadd.f32 %v1048, %v1110
        %v1127 = vadd.f32 %v1049, %v1085
        %v1128 = vadd.f32 %v1050, %v1099
        %v1129 = vadd.f32 %v1051, %v1107
        %v1130 = vadd.f32 %v1052, %v1109
        %v1131 = vadd.f32 %v1053, %v1092
        %v1132 = vadd.f32 %v1054, %v1106
        %v1133 = vadd.f32 %v1055, %v1108
        %v1134 = vadd.f32 %v1056, %v1110
        %v1151 = vcombine.low %v1119, %v1120
        %v1152 = vcombine.low %v1121, %v1122
        %v1153 = vcombine.low %v1123, %v1124
        %v1154 = vcombine.low %v1125, %v1126
        %v1156 = vunpack.c.l.s4 1966171168
        %v1157 = vunpack.c.0.s8 %v1156
        %v1158 = vlaneseq
        %v1159 = vshrl.u32 %v1158, 7
        %v1160 = vsub.s32 %v1157, %v1159
        %v1161 = vrot.slane %v1151, %v1160
        %v1163 = vunpack.c.l.s4 1966171168
        %v1164 = vunpack.c.0.s8 %v1163
        %v1165 = vlaneseq
        %v1166 = vshrl.u32 %v1165, 7
        %v1167 = vsub.s32 %v1164, %v1166
        %v1168 = vrot.slane %v1152, %v1167
        %v1170 = vunpack.c.l.s4 1966171168
        %v1171 = vunpack.c.0.s8 %v1170
        %v1172 = vlaneseq
        %v1173 = vshrl.u32 %v1172, 7
        %v1174 = vsub.s32 %v1171, %v1173
        %v1175 = vrot.slane %v1153, %v1174
        %v1177 = vunpack.c.l.s4 1966171168
        %v1178 = vunpack.c.0.s8 %v1177
        %v1179 = vlaneseq
        %v1180 = vshrl.u32 %v1179, 7
        %v1181 = vsub.s32 %v1178, %v1180
        %v1182 = vrot.slane %v1154, %v1181
        %v1183 = vcombine.low %v1161, %v1168
        %v1184 = vcombine.low %v1175, %v1182
        %v1186 = vunpack.c.l.s4 1966171168
        %v1187 = vunpack.c.0.s8 %v1186
        %v1188 = vlaneseq
        %v1189 = vshrl.u32 %v1188, 7
        %v1190 = vsub.s32 %v1187, %v1189
        %v1191 = vrot.slane %v1183, %v1190
        %v1193 = vunpack.c.l.s4 1966171168
        %v1194 = vunpack.c.0.s8 %v1193
        %v1195 = vlaneseq
        %v1196 = vshrl.u32 %v1195, 7
        %v1197 = vsub.s32 %v1194, %v1196
        %v1198 = vrot.slane %v1184, %v1197
        %v1199 = vcombine.low %v1191, %v1198
        %v1200 = vcombine.low %v1127, %v1128
        %v1201 = vcombine.low %v1129, %v1130
        %v1202 = vcombine.low %v1131, %v1132
        %v1203 = vcombine.low %v1133, %v1134
        %v1205 = vunpack.c.l.s4 1966171168
        %v1206 = vunpack.c.0.s8 %v1205
        %v1207 = vlaneseq
        %v1208 = vshrl.u32 %v1207, 7
        %v1209 = vsub.s32 %v1206, %v1208
        %v1210 = vrot.slane %v1200, %v1209
        %v1212 = vunpack.c.l.s4 1966171168
        %v1213 = vunpack.c.0.s8 %v1212
        %v1214 = vlaneseq
        %v1215 = vshrl.u32 %v1214, 7
        %v1216 = vsub.s32 %v1213, %v1215
        %v1217 = vrot.slane %v1201, %v1216
        %v1219 = vunpack.c.l.s4 1966171168
        %v1220 = vunpack.c.0.s8 %v1219
        %v1221 = vlaneseq
        %v1222 = vshrl.u32 %v1221, 7
        %v1223 = vsub.s32 %v1220, %v1222
        %v1224 = vrot.slane %v1202, %v1223
        %v1226 = vunpack.c.l.s4 1966171168
        %v1227 = vunpack.c.0.s8 %v1226
        %v1228 = vlaneseq
        %v1229 = vshrl.u32 %v1228, 7
        %v1230 = vsub.s32 %v1227, %v1229
        %v1231 = vrot.slane %v1203, %v1230
        %v1232 = vcombine.low %v1210, %v1217
        %v1233 = vcombine.low %v1224, %v1231
        %v1235 = vunpack.c.l.s4 1966171168
        %v1236 = vunpack.c.0.s8 %v1235
        %v1237 = vlaneseq
        %v1238 = vshrl.u32 %v1237, 7
        %v1239 = vsub.s32 %v1236, %v1238
        %v1240 = vrot.slane %v1232, %v1239
        %v1242 = vunpack.c.l.s4 1966171168
        %v1243 = vunpack.c.0.s8 %v1242
        %v1244 = vlaneseq
        %v1245 = vshrl.u32 %v1244, 7
        %v1246 = vsub.s32 %v1243, %v1245
        %v1247 = vrot.slane %v1233, %v1246
        %v1248 = vcombine.low %v1240, %v1247
        %v1251 = vadd.f32 %v495, %v1199
        %v1252 = vadd.f32 %v496, %v1248
        %v1253 = vmul.f32 %v1251, 0.5
        %v1254 = vmul.f32 %v1252, 0.5
        %v1255 = vld [vmem:[%s6] sm:$0xff]
        %v1256 = vld [vmem:[%s6 + $0x8] sm:$0xff]
        %v1257 = vld [vmem:[%s6 + $0x10] sm:$0xff]
        %v1258 = vld [vmem:[%s6 + $0x18] sm:$0xff]
        %v1260 = vsel %vm453, %v1253, 0
        %v1263 = vsel %vm453, %v1254, 0
        %1265 = vmatprep.subr.mxu0 0.0
        %1266 = vmatpush1.msra.mxu0 %v1255
        %1267 = vmatprep.subr.mxu0 0.0
        %1268 = vmatpush1.msra.mxu0 %v1256
        %1269 = vmatprep.subr.mxu0 0.0
        %1270 = vmatpush1.msra.mxu0 %v1257
        %1271 = vmatprep.subr.mxu0 0.0
        %1272 = vmatpush1.msra.mxu0 %v1258
        %1273 = vmatprep.subr.mxu0 0.0
        %1274 = vmatpush1.msra.mxu0 0.0
        %1275 = vmatprep.subr.mxu0 0.0
        %1276 = vmatpush1.msra.mxu0 0.0
        %1277 = vmatprep.subr.mxu0 0.0
        %1278 = vmatpush1.msra.mxu0 0.0
        %1279 = vmatprep.subr.mxu0 0.0
        %1280 = vmatpush1.msra.mxu0 0.0
        %1281 = vmatprep.subr.mxu0 0.0
        %1282 = vmatpush1.msra.mxu0 0.0
        %1283 = vmatprep.subr.mxu0 0.0
        %1284 = vmatpush1.msra.mxu0 0.0
        %1285 = vmatprep.subr.mxu0 0.0
        %1286 = vmatpush1.msra.mxu0 0.0
        %1287 = vmatprep.subr.mxu0 0.0
        %1288 = vmatpush1.msra.mxu0 0.0
        %1289 = vmatprep.subr.mxu0 0.0
        %1290 = vmatpush1.msra.mxu0 0.0
        %1291 = vmatprep.subr.mxu0 0.0
        %1292 = vmatpush1.msra.mxu0 0.0
        %1293 = vmatprep.subr.mxu0 0.0
        %1294 = vmatpush1.msra.mxu0 0.0
        %1295 = vmatprep.subr.mxu0 0.0
        %1296 = vmatpush1.msra.mxu0 0.0
        %1297 = vmatprep.subr.mxu0 0.0
        %1298 = vmatpush1.msra.mxu0 0.0
        %1299 = vmatprep.subr.mxu0 0.0
        %1300 = vmatpush1.msra.mxu0 0.0
        %1301 = vmatprep.subr.mxu0 0.0
        %1302 = vmatpush1.msra.mxu0 0.0
        %1303 = vmatprep.subr.mxu0 0.0
        %1304 = vmatpush1.msra.mxu0 0.0
        %1305 = vmatprep.subr.mxu0 0.0
        %1306 = vmatpush1.msra.mxu0 0.0
        %1307 = vmatprep.subr.mxu0 0.0
        %1308 = vmatpush1.msra.mxu0 0.0
        %1309 = vmatprep.subr.mxu0 0.0
        %1310 = vmatpush1.msra.mxu0 0.0
        %1311 = vmatprep.subr.mxu0 0.0
        %1312 = vmatpush1.msra.mxu0 0.0
        %1313 = vmatprep.subr.mxu0 0.0
        %1314 = vmatpush1.msra.mxu0 0.0
        %1315 = vmatprep.subr.mxu0 0.0
        %1316 = vmatpush1.msra.mxu0 0.0
        %1317 = vmatprep.subr.mxu0 0.0
        %1318 = vmatpush1.msra.mxu0 0.0
        %1319 = vmatprep.subr.mxu0 0.0
        %1320 = vmatpush1.msra.mxu0 0.0
        %1321 = vmatprep.subr.mxu0 0.0
        %1322 = vmatpush1.msra.mxu0 0.0
        %1323 = vmatprep.subr.mxu0 0.0
        %1324 = vmatpush1.msra.mxu0 0.0
        %1325 = vmatprep.subr.mxu0 0.0
        %1326 = vmatpush1.msra.mxu0 0.0
        %1327 = vmatprep.subr.mxu0 0.0
        %1328 = vmatpush1.msra.mxu0 0.0
        %1329 = vmatprep.mubr.f32.mxu0 0.0
        %1330 = vmatmul.mubr.f32.gmra.mrb[0].mxu0 %v1260
        %v1331 = vpop.f32.mrb[0].mxu0
        %v1332 = vadd.f32 0.0, %v1331
        %v1333 = vpop.f32.mrb[0].mxu0
        %1334 = vmatprep.mubr.f32.mxu0 0.0
        %1335 = vmatmul.mubr.f32.gmra.mrb[0].mxu0 %v1263
        %v1336 = vpop.f32.mrb[0].mxu0
        %v1337 = vadd.f32 0.0, %v1336
        %v1338 = vpop.f32.mrb[0].mxu0
        %1339 = vdwg.mxu0
        %v1340 = vld [vmem:[%s7] sm:$0xff]
        %v1341 = vld [vmem:[%s7 + $0x8] sm:$0xff]
        %v1342 = vld [vmem:[%s7 + $0x10] sm:$0xff]
        %v1343 = vld [vmem:[%s7 + $0x18] sm:$0xff]
        %1344 = vmatprep.subr.mxu0 0.0
        %1345 = vmatpush1.msra.mxu0 %v1340
        %1346 = vmatprep.subr.mxu0 0.0
        %1347 = vmatpush1.msra.mxu0 %v1341
        %1348 = vmatprep.subr.mxu0 0.0
        %1349 = vmatpush1.msra.mxu0 %v1342
        %1350 = vmatprep.subr.mxu0 0.0
        %1351 = vmatpush1.msra.mxu0 %v1343
        %1352 = vmatprep.subr.mxu0 0.0
        %1353 = vmatpush1.msra.mxu0 0.0
        %1354 = vmatprep.subr.mxu0 0.0
        %1355 = vmatpush1.msra.mxu0 0.0
        %1356 = vmatprep.subr.mxu0 0.0
        %1357 = vmatpush1.msra.mxu0 0.0
        %1358 = vmatprep.subr.mxu0 0.0
        %1359 = vmatpush1.msra.mxu0 0.0
        %1360 = vmatprep.subr.mxu0 0.0
        %1361 = vmatpush1.msra.mxu0 0.0
        %1362 = vmatprep.subr.mxu0 0.0
        %1363 = vmatpush1.msra.mxu0 0.0
        %1364 = vmatprep.subr.mxu0 0.0
        %1365 = vmatpush1.msra.mxu0 0.0
        %1366 = vmatprep.subr.mxu0 0.0
        %1367 = vmatpush1.msra.mxu0 0.0
        %1368 = vmatprep.subr.mxu0 0.0
        %1369 = vmatpush1.msra.mxu0 0.0
        %1370 = vmatprep.subr.mxu0 0.0
        %1371 = vmatpush1.msra.mxu0 0.0
        %1372 = vmatprep.subr.mxu0 0.0
        %1373 = vmatpush1.msra.mxu0 0.0
        %1374 = vmatprep.subr.mxu0 0.0
        %1375 = vmatpush1.msra.mxu0 0.0
        %1376 = vmatprep.subr.mxu0 0.0
        %1377 = vmatpush1.msra.mxu0 0.0
        %1378 = vmatprep.subr.mxu0 0.0
        %1379 = vmatpush1.msra.mxu0 0.0
        %1380 = vmatprep.subr.mxu0 0.0
        %1381 = vmatpush1.msra.mxu0 0.0
        %1382 = vmatprep.subr.mxu0 0.0
        %1383 = vmatpush1.msra.mxu0 0.0
        %1384 = vmatprep.subr.mxu0 0.0
        %1385 = vmatpush1.msra.mxu0 0.0
        %1386 = vmatprep.subr.mxu0 0.0
        %1387 = vmatpush1.msra.mxu0 0.0
        %1388 = vmatprep.subr.mxu0 0.0
        %1389 = vmatpush1.msra.mxu0 0.0
        %1390 = vmatprep.subr.mxu0 0.0
        %1391 = vmatpush1.msra.mxu0 0.0
        %1392 = vmatprep.subr.mxu0 0.0
        %1393 = vmatpush1.msra.mxu0 0.0
        %1394 = vmatprep.subr.mxu0 0.0
        %1395 = vmatpush1.msra.mxu0 0.0
        %1396 = vmatprep.subr.mxu0 0.0
        %1397 = vmatpush1.msra.mxu0 0.0
        %1398 = vmatprep.subr.mxu0 0.0
        %1399 = vmatpush1.msra.mxu0 0.0
        %1400 = vmatprep.subr.mxu0 0.0
        %1401 = vmatpush1.msra.mxu0 0.0
        %1402 = vmatprep.subr.mxu0 0.0
        %1403 = vmatpush1.msra.mxu0 0.0
        %1404 = vmatprep.subr.mxu0 0.0
        %1405 = vmatpush1.msra.mxu0 0.0
        %1406 = vmatprep.subr.mxu0 0.0
        %1407 = vmatpush1.msra.mxu0 0.0
        %1408 = vmatprep.mubr.f32.mxu0 0.0
        %1409 = vmatmul.mubr.f32.gmra.mrb[0].mxu0 %v1260
        %v1410 = vpop.f32.mrb[0].mxu0
        %v1411 = vadd.f32 0.0, %v1410
        %v1412 = vpop.f32.mrb[0].mxu0
        %1413 = vmatprep.mubr.f32.mxu0 0.0
        %1414 = vmatmul.mubr.f32.gmra.mrb[0].mxu0 %v1263
        %v1415 = vpop.f32.mrb[0].mxu0
        %v1416 = vadd.f32 0.0, %v1415
        %v1417 = vpop.f32.mrb[0].mxu0
        %1418 = vdwg.mxu0
        %v1419 = vld [vmem:[%s8] sm:$0xff]
        %v1420 = vld [vmem:[%s8 + $0x8] sm:$0xff]
        %v1421 = vld [vmem:[%s8 + $0x10] sm:$0xff]
        %v1422 = vld [vmem:[%s8 + $0x18] sm:$0xff]
        %v1424 = vsel %vm453, %v495, 0
        %v1427 = vsel %vm453, %v496, 0
        %1429 = vmatprep.subr.mxu0 0.0
        %1430 = vmatpush1.msra.mxu0 %v1419
        %1431 = vmatprep.subr.mxu0 0.0
        %1432 = vmatpush1.msra.mxu0 %v1420
        %1433 = vmatprep.subr.mxu0 0.0
        %1434 = vmatpush1.msra.mxu0 %v1421
        %1435 = vmatprep.subr.mxu0 0.0
        %1436 = vmatpush1.msra.mxu0 %v1422
        %1437 = vmatprep.subr.mxu0 0.0
        %1438 = vmatpush1.msra.mxu0 0.0
        %1439 = vmatprep.subr.mxu0 0.0
        %1440 = vmatpush1.msra.mxu0 0.0
        %1441 = vmatprep.subr.mxu0 0.0
        %1442 = vmatpush1.msra.mxu0 0.0
        %1443 = vmatprep.subr.mxu0 0.0
        %1444 = vmatpush1.msra.mxu0 0.0
        %1445 = vmatprep.subr.mxu0 0.0
        %1446 = vmatpush1.msra.mxu0 0.0
        %1447 = vmatprep.subr.mxu0 0.0
        %1448 = vmatpush1.msra.mxu0 0.0
        %1449 = vmatprep.subr.mxu0 0.0
        %1450 = vmatpush1.msra.mxu0 0.0
        %1451 = vmatprep.subr.mxu0 0.0
        %1452 = vmatpush1.msra.mxu0 0.0
        %1453 = vmatprep.subr.mxu0 0.0
        %1454 = vmatpush1.msra.mxu0 0.0
        %1455 = vmatprep.subr.mxu0 0.0
        %1456 = vmatpush1.msra.mxu0 0.0
        %1457 = vmatprep.subr.mxu0 0.0
        %1458 = vmatpush1.msra.mxu0 0.0
        %1459 = vmatprep.subr.mxu0 0.0
        %1460 = vmatpush1.msra.mxu0 0.0
        %1461 = vmatprep.subr.mxu0 0.0
        %1462 = vmatpush1.msra.mxu0 0.0
        %1463 = vmatprep.subr.mxu0 0.0
        %1464 = vmatpush1.msra.mxu0 0.0
        %1465 = vmatprep.subr.mxu0 0.0
        %1466 = vmatpush1.msra.mxu0 0.0
        %1467 = vmatprep.subr.mxu0 0.0
        %1468 = vmatpush1.msra.mxu0 0.0
        %1469 = vmatprep.subr.mxu0 0.0
        %1470 = vmatpush1.msra.mxu0 0.0
        %1471 = vmatprep.subr.mxu0 0.0
        %1472 = vmatpush1.msra.mxu0 0.0
        %1473 = vmatprep.subr.mxu0 0.0
        %1474 = vmatpush1.msra.mxu0 0.0
        %1475 = vmatprep.subr.mxu0 0.0
        %1476 = vmatpush1.msra.mxu0 0.0
        %1477 = vmatprep.subr.mxu0 0.0
        %1478 = vmatpush1.msra.mxu0 0.0
        %1479 = vmatprep.subr.mxu0 0.0
        %1480 = vmatpush1.msra.mxu0 0.0
        %1481 = vmatprep.subr.mxu0 0.0
        %1482 = vmatpush1.msra.mxu0 0.0
        %1483 = vmatprep.subr.mxu0 0.0
        %1484 = vmatpush1.msra.mxu0 0.0
        %1485 = vmatprep.subr.mxu0 0.0
        %1486 = vmatpush1.msra.mxu0 0.0
        %1487 = vmatprep.subr.mxu0 0.0
        %1488 = vmatpush1.msra.mxu0 0.0
        %1489 = vmatprep.subr.mxu0 0.0
        %1490 = vmatpush1.msra.mxu0 0.0
        %1491 = vmatprep.subr.mxu0 0.0
        %1492 = vmatpush1.msra.mxu0 0.0
        %1493 = vmatprep.mubr.f32.mxu0 0.0
        %1494 = vmatmul.mubr.f32.gmra.mrb[0].mxu0 %v1424
        %v1495 = vpop.f32.mrb[0].mxu0
        %v1496 = vadd.f32 0.0, %v1495
        %v1497 = vpop.f32.mrb[0].mxu0
        %1498 = vmatprep.mubr.f32.mxu0 0.0
        %1499 = vmatmul.mubr.f32.gmra.mrb[0].mxu0 %v1427
        %v1500 = vpop.f32.mrb[0].mxu0
        %v1501 = vadd.f32 0.0, %v1500
        %v1502 = vpop.f32.mrb[0].mxu0
        %1503 = vdwg.mxu0
        %vm1504 = vcmask 64512
        %v1506 = vsel %vm1504, %v1332, 0
        %v1509 = vsel %vm1504, %v1411, 0
        %1511 = vmatprep.subr.mxu0 0.0
        %1512 = vmatpush1.xpose.msra.mxu0 %v1509
        %1513 = vmatprep.subr.mxu0 0.0
        %1514 = vmatpush1.xpose.msra.mxu0 0.0
        %1515 = vmatprep.subr.mxu0 0.0
        %1516 = vmatpush1.xpose.msra.mxu0 0.0
        %1517 = vmatprep.subr.mxu0 0.0
        %1518 = vmatpush1.xpose.msra.mxu0 0.0
        %1519 = vmatprep.subr.mxu0 0.0
        %1520 = vmatpush1.xpose.msra.mxu0 0.0
        %1521 = vmatprep.subr.mxu0 0.0
        %1522 = vmatpush1.xpose.msra.mxu0 0.0
        %1523 = vmatprep.subr.mxu0 0.0
        %1524 = vmatpush1.xpose.msra.mxu0 0.0
        %1525 = vmatprep.subr.mxu0 0.0
        %1526 = vmatpush1.xpose.msra.mxu0 0.0
        %1527 = vmatprep.subr.mxu0 0.0
        %1528 = vmatpush1.xpose.msra.mxu0 0.0
        %1529 = vmatprep.subr.mxu0 0.0
        %1530 = vmatpush1.xpose.msra.mxu0 0.0
        %1531 = vmatprep.subr.mxu0 0.0
        %1532 = vmatpush1.xpose.msra.mxu0 0.0
        %1533 = vmatprep.subr.mxu0 0.0
        %1534 = vmatpush1.xpose.msra.mxu0 0.0
        %1535 = vmatprep.subr.mxu0 0.0
        %1536 = vmatpush1.xpose.msra.mxu0 0.0
        %1537 = vmatprep.subr.mxu0 0.0
        %1538 = vmatpush1.xpose.msra.mxu0 0.0
        %1539 = vmatprep.subr.mxu0 0.0
        %1540 = vmatpush1.xpose.msra.mxu0 0.0
        %1541 = vmatprep.subr.mxu0 0.0
        %1542 = vmatpush1.xpose.msra.mxu0 0.0
        %1543 = vmatprep.subr.mxu0 0.0
        %1544 = vmatpush1.xpose.msra.mxu0 0.0
        %1545 = vmatprep.subr.mxu0 0.0
        %1546 = vmatpush1.xpose.msra.mxu0 0.0
        %1547 = vmatprep.subr.mxu0 0.0
        %1548 = vmatpush1.xpose.msra.mxu0 0.0
        %1549 = vmatprep.subr.mxu0 0.0
        %1550 = vmatpush1.xpose.msra.mxu0 0.0
        %1551 = vmatprep.subr.mxu0 0.0
        %1552 = vmatpush1.xpose.msra.mxu0 0.0
        %1553 = vmatprep.subr.mxu0 0.0
        %1554 = vmatpush1.xpose.msra.mxu0 0.0
        %1555 = vmatprep.subr.mxu0 0.0
        %1556 = vmatpush1.xpose.msra.mxu0 0.0
        %1557 = vmatprep.subr.mxu0 0.0
        %1558 = vmatpush1.xpose.msra.mxu0 0.0
        %1559 = vmatprep.subr.mxu0 0.0
        %1560 = vmatpush1.xpose.msra.mxu0 0.0
        %1561 = vmatprep.subr.mxu0 0.0
        %1562 = vmatpush1.xpose.msra.mxu0 0.0
        %1563 = vmatprep.subr.mxu0 0.0
        %1564 = vmatpush1.xpose.msra.mxu0 0.0
        %1565 = vmatprep.subr.mxu0 0.0
        %1566 = vmatpush1.xpose.msra.mxu0 0.0
        %1567 = vmatprep.subr.mxu0 0.0
        %1568 = vmatpush1.xpose.msra.mxu0 0.0
        %1569 = vmatprep.subr.mxu0 0.0
        %1570 = vmatpush1.xpose.msra.mxu0 0.0
        %1571 = vmatprep.subr.mxu0 0.0
        %1572 = vmatpush1.xpose.msra.mxu0 0.0
        %1573 = vmatprep.subr.mxu0 0.0
        %1574 = vmatpush1.xpose.msra.mxu0 0.0
        %1575 = vmatprep.mubr.f32.mxu0 0.0
        %1576 = vmatmul.mubr.f32.gmra.mrb[0].mxu0 %v1506
        %v1577 = vpop.f32.mrb[0].mxu0
        %v1578 = vadd.f32 0.0, %v1577
        %v1579 = vpop.f32.mrb[0].mxu0
        %1580 = vdwg.mxu0
        %v1582 = vsel %vm1504, %v1337, 0
        %v1585 = vsel %vm1504, %v1416, 0
        %1587 = vmatprep.subr.mxu0 0.0
        %1588 = vmatpush1.xpose.msra.mxu0 %v1585
        %1589 = vmatprep.subr.mxu0 0.0
        %1590 = vmatpush1.xpose.msra.mxu0 0.0
        %1591 = vmatprep.subr.mxu0 0.0
        %1592 = vmatpush1.xpose.msra.mxu0 0.0
        %1593 = vmatprep.subr.mxu0 0.0
        %1594 = vmatpush1.xpose.msra.mxu0 0.0
        %1595 = vmatprep.subr.mxu0 0.0
        %1596 = vmatpush1.xpose.msra.mxu0 0.0
        %1597 = vmatprep.subr.mxu0 0.0
        %1598 = vmatpush1.xpose.msra.mxu0 0.0
        %1599 = vmatprep.subr.mxu0 0.0
        %1600 = vmatpush1.xpose.msra.mxu0 0.0
        %1601 = vmatprep.subr.mxu0 0.0
        %1602 = vmatpush1.xpose.msra.mxu0 0.0
        %1603 = vmatprep.subr.mxu0 0.0
        %1604 = vmatpush1.xpose.msra.mxu0 0.0
        %1605 = vmatprep.subr.mxu0 0.0
        %1606 = vmatpush1.xpose.msra.mxu0 0.0
        %1607 = vmatprep.subr.mxu0 0.0
        %1608 = vmatpush1.xpose.msra.mxu0 0.0
        %1609 = vmatprep.subr.mxu0 0.0
        %1610 = vmatpush1.xpose.msra.mxu0 0.0
        %1611 = vmatprep.subr.mxu0 0.0
        %1612 = vmatpush1.xpose.msra.mxu0 0.0
        %1613 = vmatprep.subr.mxu0 0.0
        %1614 = vmatpush1.xpose.msra.mxu0 0.0
        %1615 = vmatprep.subr.mxu0 0.0
        %1616 = vmatpush1.xpose.msra.mxu0 0.0
        %1617 = vmatprep.subr.mxu0 0.0
        %1618 = vmatpush1.xpose.msra.mxu0 0.0
        %1619 = vmatprep.subr.mxu0 0.0
        %1620 = vmatpush1.xpose.msra.mxu0 0.0
        %1621 = vmatprep.subr.mxu0 0.0
        %1622 = vmatpush1.xpose.msra.mxu0 0.0
        %1623 = vmatprep.subr.mxu0 0.0
        %1624 = vmatpush1.xpose.msra.mxu0 0.0
        %1625 = vmatprep.subr.mxu0 0.0
        %1626 = vmatpush1.xpose.msra.mxu0 0.0
        %1627 = vmatprep.subr.mxu0 0.0
        %1628 = vmatpush1.xpose.msra.mxu0 0.0
        %1629 = vmatprep.subr.mxu0 0.0
        %1630 = vmatpush1.xpose.msra.mxu0 0.0
        %1631 = vmatprep.subr.mxu0 0.0
        %1632 = vmatpush1.xpose.msra.mxu0 0.0
        %1633 = vmatprep.subr.mxu0 0.0
        %1634 = vmatpush1.xpose.msra.mxu0 0.0
        %1635 = vmatprep.subr.mxu0 0.0
        %1636 = vmatpush1.xpose.msra.mxu0 0.0
        %1637 = vmatprep.subr.mxu0 0.0
        %1638 = vmatpush1.xpose.msra.mxu0 0.0
        %1639 = vmatprep.subr.mxu0 0.0
        %1640 = vmatpush1.xpose.msra.mxu0 0.0
        %1641 = vmatprep.subr.mxu0 0.0
        %1642 = vmatpush1.xpose.msra.mxu0 0.0
        %1643 = vmatprep.subr.mxu0 0.0
        %1644 = vmatpush1.xpose.msra.mxu0 0.0
        %1645 = vmatprep.subr.mxu0 0.0
        %1646 = vmatpush1.xpose.msra.mxu0 0.0
        %1647 = vmatprep.subr.mxu0 0.0
        %1648 = vmatpush1.xpose.msra.mxu0 0.0
        %1649 = vmatprep.subr.mxu0 0.0
        %1650 = vmatpush1.xpose.msra.mxu0 0.0
        %1651 = vmatprep.mubr.f32.mxu0 0.0
        %1652 = vmatmul.mubr.f32.gmra.mrb[0].mxu0 %v1582
        %v1653 = vpop.f32.mrb[0].mxu0
        %v1654 = vadd.f32 0.0, %v1653
        %v1655 = vpop.f32.mrb[0].mxu0
        %1656 = vdwg.mxu0
        %v1657 = vmul.f32 %v1578, 0.17677669
        %v1658 = vmul.f32 %v1654, 0.17677669
        %v1659 = vsel %vm1504, %v1657, -inf
        %1660 = vmax.xlane.f32.xlu0 %v1659
        %v1661 = vpop.xlane.xlu0 %1660
        %v1662 = vsel %vm1504, %v1658, -inf
        %1663 = vmax.xlane.f32.xlu0 %v1662
        %v1664 = vpop.xlane.xlu0 %1663
        %v1665 = vsub.f32 %v1657, %v1661
        %v1666 = vsub.f32 %v1658, %v1664
        %v1667 = vmul.f32 %v1665, 1.442695
        %v1668 = vpow.pop %v1667
        %v1669 = vmul.f32 %v1666, 1.442695
        %v1670 = vpow.pop %v1669
        %v1671 = vsel %vm1504, %v1668, 0.0
        %1672 = vadd.xlane.f32.xlu0 %v1671
        %v1673 = vpop.xlane.xlu0 %1672
        %v1674 = vsel %vm1504, %v1670, 0.0
        %1675 = vadd.xlane.f32.xlu0 %v1674
        %v1676 = vpop.xlane.xlu0 %1675
        %v1677 = vrcp.pop %v1673
        %v1678 = vrcp.pop %v1676
        %v1679 = vmul.f32 %v1673, %v1677
        %v1680 = vmul.f32 %v1676, %v1678
        %v1681 = vsub.f32 2.0, %v1679
        %v1682 = vsub.f32 2.0, %v1680
        %v1683 = vmul.f32 %v1677, %v1681
        %v1684 = vmul.f32 %v1678, %v1682
        %v1685 = vmul.f32 %v1668, %v1683
        %v1686 = vmul.f32 %v1670, %v1684
        %1687 = vst.msk [vmem:[%s434] sm:$0xff] %vm1504, %v1685
        %1688 = vst.msk [vmem:[%s434 + $0x8] sm:$0xff] %vm1504, %v1686
        %v1690 = vsel %vm1504, %v1685, 0
        %1692 = vmatprep.subr.mxu0 0.0
        %1693 = vmatpush1.msra.mxu0 %v1496
        %1694 = vmatprep.subr.mxu0 0.0
        %1695 = vmatpush1.msra.mxu0 0.0
        %1696 = vmatprep.subr.mxu0 0.0
        %1697 = vmatpush1.msra.mxu0 0.0
        %1698 = vmatprep.subr.mxu0 0.0
        %1699 = vmatpush1.msra.mxu0 0.0
        %1700 = vmatprep.subr.mxu0 0.0
        %1701 = vmatpush1.msra.mxu0 0.0
        %1702 = vmatprep.subr.mxu0 0.0
        %1703 = vmatpush1.msra.mxu0 0.0
        %1704 = vmatprep.subr.mxu0 0.0
        %1705 = vmatpush1.msra.mxu0 0.0
        %1706 = vmatprep.subr.mxu0 0.0
        %1707 = vmatpush1.msra.mxu0 0.0
        %1708 = vmatprep.subr.mxu0 0.0
        %1709 = vmatpush1.msra.mxu0 0.0
        %1710 = vmatprep.subr.mxu0 0.0
        %1711 = vmatpush1.msra.mxu0 0.0
        %1712 = vmatprep.subr.mxu0 0.0
        %1713 = vmatpush1.msra.mxu0 0.0
        %1714 = vmatprep.subr.mxu0 0.0
        %1715 = vmatpush1.msra.mxu0 0.0
        %1716 = vmatprep.subr.mxu0 0.0
        %1717 = vmatpush1.msra.mxu0 0.0
        %1718 = vmatprep.subr.mxu0 0.0
        %1719 = vmatpush1.msra.mxu0 0.0
        %1720 = vmatprep.subr.mxu0 0.0
        %1721 = vmatpush1.msra.mxu0 0.0
        %1722 = vmatprep.subr.mxu0 0.0
        %1723 = vmatpush1.msra.mxu0 0.0
        %1724 = vmatprep.subr.mxu0 0.0
        %1725 = vmatpush1.msra.mxu0 0.0
        %1726 = vmatprep.subr.mxu0 0.0
        %1727 = vmatpush1.msra.mxu0 0.0
        %1728 = vmatprep.subr.mxu0 0.0
        %1729 = vmatpush1.msra.mxu0 0.0
        %1730 = vmatprep.subr.mxu0 0.0
        %1731 = vmatpush1.msra.mxu0 0.0
        %1732 = vmatprep.subr.mxu0 0.0
        %1733 = vmatpush1.msra.mxu0 0.0
        %1734 = vmatprep.subr.mxu0 0.0
        %1735 = vmatpush1.msra.mxu0 0.0
        %1736 = vmatprep.subr.mxu0 0.0
        %1737 = vmatpush1.msra.mxu0 0.0
        %1738 = vmatprep.subr.mxu0 0.0
        %1739 = vmatpush1.msra.mxu0 0.0
        %1740 = vmatprep.subr.mxu0 0.0
        %1741 = vmatpush1.msra.mxu0 0.0
        %1742 = vmatprep.subr.mxu0 0.0
        %1743 = vmatpush1.msra.mxu0 0.0
        %1744 = vmatprep.subr.mxu0 0.0
        %1745 = vmatpush1.msra.mxu0 0.0
        %1746 = vmatprep.subr.mxu0 0.0
        %1747 = vmatpush1.msra.mxu0 0.0
        %1748 = vmatprep.subr.mxu0 0.0
        %1749 = vmatpush1.msra.mxu0 0.0
        %1750 = vmatprep.subr.mxu0 0.0
        %1751 = vmatpush1.msra.mxu0 0.0
        %1752 = vmatprep.subr.mxu0 0.0
        %1753 = vmatpush1.msra.mxu0 0.0
        %1754 = vmatprep.subr.mxu0 0.0
        %1755 = vmatpush1.msra.mxu0 0.0
        %1756 = vmatprep.mubr.f32.mxu0 0.0
        %1757 = vmatmul.mubr.f32.gmra.mrb[0].mxu0 %v1690
        %v1758 = vpop.f32.mrb[0].mxu0
        %v1759 = vadd.f32 0.0, %v1758
        %v1760 = vpop.f32.mrb[0].mxu0
        %1761 = vdwg.mxu0
        %v1763 = vsel %vm1504, %v1686, 0
        %1765 = vmatprep.subr.mxu0 0.0
        %1766 = vmatpush1.msra.mxu0 %v1501
        %1767 = vmatprep.subr.mxu0 0.0
        %1768 = vmatpush1.msra.mxu0 0.0
        %1769 = vmatprep.subr.mxu0 0.0
        %1770 = vmatpush1.msra.mxu0 0.0
        %1771 = vmatprep.subr.mxu0 0.0
        %1772 = vmatpush1.msra.mxu0 0.0
        %1773 = vmatprep.subr.mxu0 0.0
        %1774 = vmatpush1.msra.mxu0 0.0
        %1775 = vmatprep.subr.mxu0 0.0
        %1776 = vmatpush1.msra.mxu0 0.0
        %1777 = vmatprep.subr.mxu0 0.0
        %1778 = vmatpush1.msra.mxu0 0.0
        %1779 = vmatprep.subr.mxu0 0.0
        %1780 = vmatpush1.msra.mxu0 0.0
        %1781 = vmatprep.subr.mxu0 0.0
        %1782 = vmatpush1.msra.mxu0 0.0
        %1783 = vmatprep.subr.mxu0 0.0
        %1784 = vmatpush1.msra.mxu0 0.0
        %1785 = vmatprep.subr.mxu0 0.0
        %1786 = vmatpush1.msra.mxu0 0.0
        %1787 = vmatprep.subr.mxu0 0.0
        %1788 = vmatpush1.msra.mxu0 0.0
        %1789 = vmatprep.subr.mxu0 0.0
        %1790 = vmatpush1.msra.mxu0 0.0
        %1791 = vmatprep.subr.mxu0 0.0
        %1792 = vmatpush1.msra.mxu0 0.0
        %1793 = vmatprep.subr.mxu0 0.0
        %1794 = vmatpush1.msra.mxu0 0.0
        %1795 = vmatprep.subr.mxu0 0.0
        %1796 = vmatpush1.msra.mxu0 0.0
        %1797 = vmatprep.subr.mxu0 0.0
        %1798 = vmatpush1.msra.mxu0 0.0
        %1799 = vmatprep.subr.mxu0 0.0
        %1800 = vmatpush1.msra.mxu0 0.0
        %1801 = vmatprep.subr.mxu0 0.0
        %1802 = vmatpush1.msra.mxu0 0.0
        %1803 = vmatprep.subr.mxu0 0.0
        %1804 = vmatpush1.msra.mxu0 0.0
        %1805 = vmatprep.subr.mxu0 0.0
        %1806 = vmatpush1.msra.mxu0 0.0
        %1807 = vmatprep.subr.mxu0 0.0
        %1808 = vmatpush1.msra.mxu0 0.0
        %1809 = vmatprep.subr.mxu0 0.0
        %1810 = vmatpush1.msra.mxu0 0.0
        %1811 = vmatprep.subr.mxu0 0.0
        %1812 = vmatpush1.msra.mxu0 0.0
        %1813 = vmatprep.subr.mxu0 0.0
        %1814 = vmatpush1.msra.mxu0 0.0
        %1815 = vmatprep.subr.mxu0 0.0
        %1816 = vmatpush1.msra.mxu0 0.0
        %1817 = vmatprep.subr.mxu0 0.0
        %1818 = vmatpush1.msra.mxu0 0.0
        %1819 = vmatprep.subr.mxu0 0.0
        %1820 = vmatpush1.msra.mxu0 0.0
        %1821 = vmatprep.subr.mxu0 0.0
        %1822 = vmatpush1.msra.mxu0 0.0
        %1823 = vmatprep.subr.mxu0 0.0
        %1824 = vmatpush1.msra.mxu0 0.0
        %1825 = vmatprep.subr.mxu0 0.0
        %1826 = vmatpush1.msra.mxu0 0.0
        %1827 = vmatprep.subr.mxu0 0.0
        %1828 = vmatpush1.msra.mxu0 0.0
        %1829 = vmatprep.mubr.f32.mxu0 0.0
        %1830 = vmatmul.mubr.f32.gmra.mrb[0].mxu0 %v1763
        %v1831 = vpop.f32.mrb[0].mxu0
        %v1832 = vadd.f32 0.0, %v1831
        %v1833 = vpop.f32.mrb[0].mxu0
        %1834 = vdwg.mxu0
        %v1835 = vld [vmem:[%s9] sm:$0xff]
        %s1836 = scalar_lea.vmem %s6, 32
        %v1837 = vld [vmem:[%s1836] sm:$0xff]
        %v1838 = vld [vmem:[%s1836 + $0x8] sm:$0xff]
        %v1839 = vld [vmem:[%s1836 + $0x10] sm:$0xff]
        %v1840 = vld [vmem:[%s1836 + $0x18] sm:$0xff]
        %1841 = vmatprep.subr.mxu0 0.0
        %1842 = vmatpush1.msra.mxu0 %v1837
        %1843 = vmatprep.subr.mxu0 0.0
        %1844 = vmatpush1.msra.mxu0 %v1838
        %1845 = vmatprep.subr.mxu0 0.0
        %1846 = vmatpush1.msra.mxu0 %v1839
        %1847 = vmatprep.subr.mxu0 0.0
        %1848 = vmatpush1.msra.mxu0 %v1840
        %1849 = vmatprep.subr.mxu0 0.0
        %1850 = vmatpush1.msra.mxu0 0.0
        %1851 = vmatprep.subr.mxu0 0.0
        %1852 = vmatpush1.msra.mxu0 0.0
        %1853 = vmatprep.subr.mxu0 0.0
        %1854 = vmatpush1.msra.mxu0 0.0
        %1855 = vmatprep.subr.mxu0 0.0
        %1856 = vmatpush1.msra.mxu0 0.0
        %1857 = vmatprep.subr.mxu0 0.0
        %1858 = vmatpush1.msra.mxu0 0.0
        %1859 = vmatprep.subr.mxu0 0.0
        %1860 = vmatpush1.msra.mxu0 0.0
        %1861 = vmatprep.subr.mxu0 0.0
        %1862 = vmatpush1.msra.mxu0 0.0
        %1863 = vmatprep.subr.mxu0 0.0
        %1864 = vmatpush1.msra.mxu0 0.0
        %1865 = vmatprep.subr.mxu0 0.0
        %1866 = vmatpush1.msra.mxu0 0.0
        %1867 = vmatprep.subr.mxu0 0.0
        %1868 = vmatpush1.msra.mxu0 0.0
        %1869 = vmatprep.subr.mxu0 0.0
        %1870 = vmatpush1.msra.mxu0 0.0
        %1871 = vmatprep.subr.mxu0 0.0
        %1872 = vmatpush1.msra.mxu0 0.0
        %1873 = vmatprep.subr.mxu0 0.0
        %1874 = vmatpush1.msra.mxu0 0.0
        %1875 = vmatprep.subr.mxu0 0.0
        %1876 = vmatpush1.msra.mxu0 0.0
        %1877 = vmatprep.subr.mxu0 0.0
        %1878 = vmatpush1.msra.mxu0 0.0
        %1879 = vmatprep.subr.mxu0 0.0
        %1880 = vmatpush1.msra.mxu0 0.0
        %1881 = vmatprep.subr.mxu0 0.0
        %1882 = vmatpush1.msra.mxu0 0.0
        %1883 = vmatprep.subr.mxu0 0.0
        %1884 = vmatpush1.msra.mxu0 0.0
        %1885 = vmatprep.subr.mxu0 0.0
        %1886 = vmatpush1.msra.mxu0 0.0
        %1887 = vmatprep.subr.mxu0 0.0
        %1888 = vmatpush1.msra.mxu0 0.0
        %1889 = vmatprep.subr.mxu0 0.0
        %1890 = vmatpush1.msra.mxu0 0.0
        %1891 = vmatprep.subr.mxu0 0.0
        %1892 = vmatpush1.msra.mxu0 0.0
        %1893 = vmatprep.subr.mxu0 0.0
        %1894 = vmatpush1.msra.mxu0 0.0
        %1895 = vmatprep.subr.mxu0 0.0
        %1896 = vmatpush1.msra.mxu0 0.0
        %1897 = vmatprep.subr.mxu0 0.0
        %1898 = vmatpush1.msra.mxu0 0.0
        %1899 = vmatprep.subr.mxu0 0.0
        %1900 = vmatpush1.msra.mxu0 0.0
        %1901 = vmatprep.subr.mxu0 0.0
        %1902 = vmatpush1.msra.mxu0 0.0
        %1903 = vmatprep.subr.mxu0 0.0
        %1904 = vmatpush1.msra.mxu0 0.0
        %1905 = vmatprep.mubr.f32.mxu0 0.0
        %1906 = vmatmul.mubr.f32.gmra.mrb[0].mxu0 %v1260
        %v1907 = vpop.f32.mrb[0].mxu0
        %v1908 = vadd.f32 0.0, %v1907
        %v1909 = vpop.f32.mrb[0].mxu0
        %1910 = vmatprep.mubr.f32.mxu0 0.0
        %1911 = vmatmul.mubr.f32.gmra.mrb[0].mxu0 %v1263
        %v1912 = vpop.f32.mrb[0].mxu0
        %v1913 = vadd.f32 0.0, %v1912
        %v1914 = vpop.f32.mrb[0].mxu0
        %1915 = vdwg.mxu0
        %s1916 = scalar_lea.vmem %s7, 32
        %v1917 = vld [vmem:[%s1916] sm:$0xff]
        %v1918 = vld [vmem:[%s1916 + $0x8] sm:$0xff]
        %v1919 = vld [vmem:[%s1916 + $0x10] sm:$0xff]
        %v1920 = vld [vmem:[%s1916 + $0x18] sm:$0xff]
        %1921 = vmatprep.subr.mxu0 0.0
        %1922 = vmatpush1.msra.mxu0 %v1917
        %1923 = vmatprep.subr.mxu0 0.0
        %1924 = vmatpush1.msra.mxu0 %v1918
        %1925 = vmatprep.subr.mxu0 0.0
        %1926 = vmatpush1.msra.mxu0 %v1919
        %1927 = vmatprep.subr.mxu0 0.0
        %1928 = vmatpush1.msra.mxu0 %v1920
        %1929 = vmatprep.subr.mxu0 0.0
        %1930 = vmatpush1.msra.mxu0 0.0
        %1931 = vmatprep.subr.mxu0 0.0
        %1932 = vmatpush1.msra.mxu0 0.0
        %1933 = vmatprep.subr.mxu0 0.0
        %1934 = vmatpush1.msra.mxu0 0.0
        %1935 = vmatprep.subr.mxu0 0.0
        %1936 = vmatpush1.msra.mxu0 0.0
        %1937 = vmatprep.subr.mxu0 0.0
        %1938 = vmatpush1.msra.mxu0 0.0
        %1939 = vmatprep.subr.mxu0 0.0
        %1940 = vmatpush1.msra.mxu0 0.0
        %1941 = vmatprep.subr.mxu0 0.0
        %1942 = vmatpush1.msra.mxu0 0.0
        %1943 = vmatprep.subr.mxu0 0.0
        %1944 = vmatpush1.msra.mxu0 0.0
        %1945 = vmatprep.subr.mxu0 0.0
        %1946 = vmatpush1.msra.mxu0 0.0
        %1947 = vmatprep.subr.mxu0 0.0
        %1948 = vmatpush1.msra.mxu0 0.0
        %1949 = vmatprep.subr.mxu0 0.0
        %1950 = vmatpush1.msra.mxu0 0.0
        %1951 = vmatprep.subr.mxu0 0.0
        %1952 = vmatpush1.msra.mxu0 0.0
        %1953 = vmatprep.subr.mxu0 0.0
        %1954 = vmatpush1.msra.mxu0 0.0
        %1955 = vmatprep.subr.mxu0 0.0
        %1956 = vmatpush1.msra.mxu0 0.0
        %1957 = vmatprep.subr.mxu0 0.0
        %1958 = vmatpush1.msra.mxu0 0.0
        %1959 = vmatprep.subr.mxu0 0.0
        %1960 = vmatpush1.msra.mxu0 0.0
        %1961 = vmatprep.subr.mxu0 0.0
        %1962 = vmatpush1.msra.mxu0 0.0
        %1963 = vmatprep.subr.mxu0 0.0
        %1964 = vmatpush1.msra.mxu0 0.0
        %1965 = vmatprep.subr.mxu0 0.0
        %1966 = vmatpush1.msra.mxu0 0.0
        %1967 = vmatprep.subr.mxu0 0.0
        %1968 = vmatpush1.msra.mxu0 0.0
        %1969 = vmatprep.subr.mxu0 0.0
        %1970 = vmatpush1.msra.mxu0 0.0
        %1971 = vmatprep.subr.mxu0 0.0
        %1972 = vmatpush1.msra.mxu0 0.0
        %1973 = vmatprep.subr.mxu0 0.0
        %1974 = vmatpush1.msra.mxu0 0.0
        %1975 = vmatprep.subr.mxu0 0.0
        %1976 = vmatpush1.msra.mxu0 0.0
        %1977 = vmatprep.subr.mxu0 0.0
        %1978 = vmatpush1.msra.mxu0 0.0
        %1979 = vmatprep.subr.mxu0 0.0
        %1980 = vmatpush1.msra.mxu0 0.0
        %1981 = vmatprep.subr.mxu0 0.0
        %1982 = vmatpush1.msra.mxu0 0.0
        %1983 = vmatprep.subr.mxu0 0.0
        %1984 = vmatpush1.msra.mxu0 0.0
        %1985 = vmatprep.mubr.f32.mxu0 0.0
        %1986 = vmatmul.mubr.f32.gmra.mrb[0].mxu0 %v1260
        %v1987 = vpop.f32.mrb[0].mxu0
        %v1988 = vadd.f32 0.0, %v1987
        %v1989 = vpop.f32.mrb[0].mxu0
        %1990 = vmatprep.mubr.f32.mxu0 0.0
        %1991 = vmatmul.mubr.f32.gmra.mrb[0].mxu0 %v1263
        %v1992 = vpop.f32.mrb[0].mxu0
        %v1993 = vadd.f32 0.0, %v1992
        %v1994 = vpop.f32.mrb[0].mxu0
        %1995 = vdwg.mxu0
        %s1996 = scalar_lea.vmem %s8, 32
        %v1997 = vld [vmem:[%s1996] sm:$0xff]
        %v1998 = vld [vmem:[%s1996 + $0x8] sm:$0xff]
        %v1999 = vld [vmem:[%s1996 + $0x10] sm:$0xff]
        %v2000 = vld [vmem:[%s1996 + $0x18] sm:$0xff]
        %2001 = vmatprep.subr.mxu0 0.0
        %2002 = vmatpush1.msra.mxu0 %v1997
        %2003 = vmatprep.subr.mxu0 0.0
        %2004 = vmatpush1.msra.mxu0 %v1998
        %2005 = vmatprep.subr.mxu0 0.0
        %2006 = vmatpush1.msra.mxu0 %v1999
        %2007 = vmatprep.subr.mxu0 0.0
        %2008 = vmatpush1.msra.mxu0 %v2000
        %2009 = vmatprep.subr.mxu0 0.0
        %2010 = vmatpush1.msra.mxu0 0.0
        %2011 = vmatprep.subr.mxu0 0.0
        %2012 = vmatpush1.msra.mxu0 0.0
        %2013 = vmatprep.subr.mxu0 0.0
        %2014 = vmatpush1.msra.mxu0 0.0
        %2015 = vmatprep.subr.mxu0 0.0
        %2016 = vmatpush1.msra.mxu0 0.0
        %2017 = vmatprep.subr.mxu0 0.0
        %2018 = vmatpush1.msra.mxu0 0.0
        %2019 = vmatprep.subr.mxu0 0.0
        %2020 = vmatpush1.msra.mxu0 0.0
        %2021 = vmatprep.subr.mxu0 0.0
        %2022 = vmatpush1.msra.mxu0 0.0
        %2023 = vmatprep.subr.mxu0 0.0
        %2024 = vmatpush1.msra.mxu0 0.0
        %2025 = vmatprep.subr.mxu0 0.0
        %2026 = vmatpush1.msra.mxu0 0.0
        %2027 = vmatprep.subr.mxu0 0.0
        %2028 = vmatpush1.msra.mxu0 0.0
        %2029 = vmatprep.subr.mxu0 0.0
        %2030 = vmatpush1.msra.mxu0 0.0
        %2031 = vmatprep.subr.mxu0 0.0
        %2032 = vmatpush1.msra.mxu0 0.0
        %2033 = vmatprep.subr.mxu0 0.0
        %2034 = vmatpush1.msra.mxu0 0.0
        %2035 = vmatprep.subr.mxu0 0.0
        %2036 = vmatpush1.msra.mxu0 0.0
        %2037 = vmatprep.subr.mxu0 0.0
        %2038 = vmatpush1.msra.mxu0 0.0
        %2039 = vmatprep.subr.mxu0 0.0
        %2040 = vmatpush1.msra.mxu0 0.0
        %2041 = vmatprep.subr.mxu0 0.0
        %2042 = vmatpush1.msra.mxu0 0.0
        %2043 = vmatprep.subr.mxu0 0.0
        %2044 = vmatpush1.msra.mxu0 0.0
        %2045 = vmatprep.subr.mxu0 0.0
        %2046 = vmatpush1.msra.mxu0 0.0
        %2047 = vmatprep.subr.mxu0 0.0
        %2048 = vmatpush1.msra.mxu0 0.0
        %2049 = vmatprep.subr.mxu0 0.0
        %2050 = vmatpush1.msra.mxu0 0.0
        %2051 = vmatprep.subr.mxu0 0.0
        %2052 = vmatpush1.msra.mxu0 0.0
        %2053 = vmatprep.subr.mxu0 0.0
        %2054 = vmatpush1.msra.mxu0 0.0
        %2055 = vmatprep.subr.mxu0 0.0
        %2056 = vmatpush1.msra.mxu0 0.0
        %2057 = vmatprep.subr.mxu0 0.0
        %2058 = vmatpush1.msra.mxu0 0.0
        %2059 = vmatprep.subr.mxu0 0.0
        %2060 = vmatpush1.msra.mxu0 0.0
        %2061 = vmatprep.subr.mxu0 0.0
        %2062 = vmatpush1.msra.mxu0 0.0
        %2063 = vmatprep.subr.mxu0 0.0
        %2064 = vmatpush1.msra.mxu0 0.0
        %2065 = vmatprep.mubr.f32.mxu0 0.0
        %2066 = vmatmul.mubr.f32.gmra.mrb[0].mxu0 %v1424
        %v2067 = vpop.f32.mrb[0].mxu0
        %v2068 = vadd.f32 0.0, %v2067
        %v2069 = vpop.f32.mrb[0].mxu0
        %2070 = vmatprep.mubr.f32.mxu0 0.0
        %2071 = vmatmul.mubr.f32.gmra.mrb[0].mxu0 %v1427
        %v2072 = vpop.f32.mrb[0].mxu0
        %v2073 = vadd.f32 0.0, %v2072
        %v2074 = vpop.f32.mrb[0].mxu0
        %2075 = vdwg.mxu0
        %v2077 = vsel %vm1504, %v1908, 0
        %v2080 = vsel %vm1504, %v1988, 0
        %2082 = vmatprep.subr.mxu0 0.0
        %2083 = vmatpush1.xpose.msra.mxu0 %v2080
        %2084 = vmatprep.subr.mxu0 0.0
        %2085 = vmatpush1.xpose.msra.mxu0 0.0
        %2086 = vmatprep.subr.mxu0 0.0
        %2087 = vmatpush1.xpose.msra.mxu0 0.0
        %2088 = vmatprep.subr.mxu0 0.0
        %2089 = vmatpush1.xpose.msra.mxu0 0.0
        %2090 = vmatprep.subr.mxu0 0.0
        %2091 = vmatpush1.xpose.msra.mxu0 0.0
        %2092 = vmatprep.subr.mxu0 0.0
        %2093 = vmatpush1.xpose.msra.mxu0 0.0
        %2094 = vmatprep.subr.mxu0 0.0
        %2095 = vmatpush1.xpose.msra.mxu0 0.0
        %2096 = vmatprep.subr.mxu0 0.0
        %2097 = vmatpush1.xpose.msra.mxu0 0.0
        %2098 = vmatprep.subr.mxu0 0.0
        %2099 = vmatpush1.xpose.msra.mxu0 0.0
        %2100 = vmatprep.subr.mxu0 0.0
        %2101 = vmatpush1.xpose.msra.mxu0 0.0
        %2102 = vmatprep.subr.mxu0 0.0
        %2103 = vmatpush1.xpose.msra.mxu0 0.0
        %2104 = vmatprep.subr.mxu0 0.0
        %2105 = vmatpush1.xpose.msra.mxu0 0.0
        %2106 = vmatprep.subr.mxu0 0.0
        %2107 = vmatpush1.xpose.msra.mxu0 0.0
        %2108 = vmatprep.subr.mxu0 0.0
        %2109 = vmatpush1.xpose.msra.mxu0 0.0
        %2110 = vmatprep.subr.mxu0 0.0
        %2111 = vmatpush1.xpose.msra.mxu0 0.0
        %2112 = vmatprep.subr.mxu0 0.0
        %2113 = vmatpush1.xpose.msra.mxu0 0.0
        %2114 = vmatprep.subr.mxu0 0.0
        %2115 = vmatpush1.xpose.msra.mxu0 0.0
        %2116 = vmatprep.subr.mxu0 0.0
        %2117 = vmatpush1.xpose.msra.mxu0 0.0
        %2118 = vmatprep.subr.mxu0 0.0
        %2119 = vmatpush1.xpose.msra.mxu0 0.0
        %2120 = vmatprep.subr.mxu0 0.0
        %2121 = vmatpush1.xpose.msra.mxu0 0.0
        %2122 = vmatprep.subr.mxu0 0.0
        %2123 = vmatpush1.xpose.msra.mxu0 0.0
        %2124 = vmatprep.subr.mxu0 0.0
        %2125 = vmatpush1.xpose.msra.mxu0 0.0
        %2126 = vmatprep.subr.mxu0 0.0
        %2127 = vmatpush1.xpose.msra.mxu0 0.0
        %2128 = vmatprep.subr.mxu0 0.0
        %2129 = vmatpush1.xpose.msra.mxu0 0.0
        %2130 = vmatprep.subr.mxu0 0.0
        %2131 = vmatpush1.xpose.msra.mxu0 0.0
        %2132 = vmatprep.subr.mxu0 0.0
        %2133 = vmatpush1.xpose.msra.mxu0 0.0
        %2134 = vmatprep.subr.mxu0 0.0
        %2135 = vmatpush1.xpose.msra.mxu0 0.0
        %2136 = vmatprep.subr.mxu0 0.0
        %2137 = vmatpush1.xpose.msra.mxu0 0.0
        %2138 = vmatprep.subr.mxu0 0.0
        %2139 = vmatpush1.xpose.msra.mxu0 0.0
        %2140 = vmatprep.subr.mxu0 0.0
        %2141 = vmatpush1.xpose.msra.mxu0 0.0
        %2142 = vmatprep.subr.mxu0 0.0
        %2143 = vmatpush1.xpose.msra.mxu0 0.0
        %2144 = vmatprep.subr.mxu0 0.0
        %2145 = vmatpush1.xpose.msra.mxu0 0.0
        %2146 = vmatprep.mubr.f32.mxu0 0.0
        %2147 = vmatmul.mubr.f32.gmra.mrb[0].mxu0 %v2077
        %v2148 = vpop.f32.mrb[0].mxu0
        %v2149 = vadd.f32 0.0, %v2148
        %v2150 = vpop.f32.mrb[0].mxu0
        %2151 = vdwg.mxu0
        %v2153 = vsel %vm1504, %v1913, 0
        %v2156 = vsel %vm1504, %v1993, 0
        %2158 = vmatprep.subr.mxu0 0.0
        %2159 = vmatpush1.xpose.msra.mxu0 %v2156
        %2160 = vmatprep.subr.mxu0 0.0
        %2161 = vmatpush1.xpose.msra.mxu0 0.0
        %2162 = vmatprep.subr.mxu0 0.0
        %2163 = vmatpush1.xpose.msra.mxu0 0.0
        %2164 = vmatprep.subr.mxu0 0.0
        %2165 = vmatpush1.xpose.msra.mxu0 0.0
        %2166 = vmatprep.subr.mxu0 0.0
        %2167 = vmatpush1.xpose.msra.mxu0 0.0
        %2168 = vmatprep.subr.mxu0 0.0
        %2169 = vmatpush1.xpose.msra.mxu0 0.0
        %2170 = vmatprep.subr.mxu0 0.0
        %2171 = vmatpush1.xpose.msra.mxu0 0.0
        %2172 = vmatprep.subr.mxu0 0.0
        %2173 = vmatpush1.xpose.msra.mxu0 0.0
        %2174 = vmatprep.subr.mxu0 0.0
        %2175 = vmatpush1.xpose.msra.mxu0 0.0
        %2176 = vmatprep.subr.mxu0 0.0
        %2177 = vmatpush1.xpose.msra.mxu0 0.0
        %2178 = vmatprep.subr.mxu0 0.0
        %2179 = vmatpush1.xpose.msra.mxu0 0.0
        %2180 = vmatprep.subr.mxu0 0.0
        %2181 = vmatpush1.xpose.msra.mxu0 0.0
        %2182 = vmatprep.subr.mxu0 0.0
        %2183 = vmatpush1.xpose.msra.mxu0 0.0
        %2184 = vmatprep.subr.mxu0 0.0
        %2185 = vmatpush1.xpose.msra.mxu0 0.0
        %2186 = vmatprep.subr.mxu0 0.0
        %2187 = vmatpush1.xpose.msra.mxu0 0.0
        %2188 = vmatprep.subr.mxu0 0.0
        %2189 = vmatpush1.xpose.msra.mxu0 0.0
        %2190 = vmatprep.subr.mxu0 0.0
        %2191 = vmatpush1.xpose.msra.mxu0 0.0
        %2192 = vmatprep.subr.mxu0 0.0
        %2193 = vmatpush1.xpose.msra.mxu0 0.0
        %2194 = vmatprep.subr.mxu0 0.0
        %2195 = vmatpush1.xpose.msra.mxu0 0.0
        %2196 = vmatprep.subr.mxu0 0.0
        %2197 = vmatpush1.xpose.msra.mxu0 0.0
        %2198 = vmatprep.subr.mxu0 0.0
        %2199 = vmatpush1.xpose.msra.mxu0 0.0
        %2200 = vmatprep.subr.mxu0 0.0
        %2201 = vmatpush1.xpose.msra.mxu0 0.0
        %2202 = vmatprep.subr.mxu0 0.0
        %2203 = vmatpush1.xpose.msra.mxu0 0.0
        %2204 = vmatprep.subr.mxu0 0.0
        %2205 = vmatpush1.xpose.msra.mxu0 0.0
        %2206 = vmatprep.subr.mxu0 0.0
        %2207 = vmatpush1.xpose.msra.mxu0 0.0
        %2208 = vmatprep.subr.mxu0 0.0
        %2209 = vmatpush1.xpose.msra.mxu0 0.0
        %2210 = vmatprep.subr.mxu0 0.0
        %2211 = vmatpush1.xpose.msra.mxu0 0.0
        %2212 = vmatprep.subr.mxu0 0.0
        %2213 = vmatpush1.xpose.msra.mxu0 0.0
        %2214 = vmatprep.subr.mxu0 0.0
        %2215 = vmatpush1.xpose.msra.mxu0 0.0
        %2216 = vmatprep.subr.mxu0 0.0
        %2217 = vmatpush1.xpose.msra.mxu0 0.0
        %2218 = vmatprep.subr.mxu0 0.0
        %2219 = vmatpush1.xpose.msra.mxu0 0.0
        %2220 = vmatprep.subr.mxu0 0.0
        %2221 = vmatpush1.xpose.msra.mxu0 0.0
        %2222 = vmatprep.mubr.f32.mxu0 0.0
        %2223 = vmatmul.mubr.f32.gmra.mrb[0].mxu0 %v2153
        %v2224 = vpop.f32.mrb[0].mxu0
        %v2225 = vadd.f32 0.0, %v2224
        %v2226 = vpop.f32.mrb[0].mxu0
        %2227 = vdwg.mxu0
        %v2228 = vmul.f32 %v2149, 0.17677669
        %v2229 = vmul.f32 %v2225, 0.17677669
        %v2230 = vsel %vm1504, %v2228, -inf
        %2231 = vmax.xlane.f32.xlu0 %v2230
        %v2232 = vpop.xlane.xlu0 %2231
        %v2233 = vsel %vm1504, %v2229, -inf
        %2234 = vmax.xlane.f32.xlu0 %v2233
        %v2235 = vpop.xlane.xlu0 %2234
        %v2236 = vsub.f32 %v2228, %v2232
        %v2237 = vsub.f32 %v2229, %v2235
        %v2238 = vmul.f32 %v2236, 1.442695
        %v2239 = vpow.pop %v2238
        %v2240 = vmul.f32 %v2237, 1.442695
        %v2241 = vpow.pop %v2240
        %v2242 = vsel %vm1504, %v2239, 0.0
        %2243 = vadd.xlane.f32.xlu0 %v2242
        %v2244 = vpop.xlane.xlu0 %2243
        %v2245 = vsel %vm1504, %v2241, 0.0
        %2246 = vadd.xlane.f32.xlu0 %v2245
        %v2247 = vpop.xlane.xlu0 %2246
        %v2248 = vrcp.pop %v2244
        %v2249 = vrcp.pop %v2247
        %v2250 = vmul.f32 %v2244, %v2248
        %v2251 = vmul.f32 %v2247, %v2249
        %v2252 = vsub.f32 2.0, %v2250
        %v2253 = vsub.f32 2.0, %v2251
        %v2254 = vmul.f32 %v2248, %v2252
        %v2255 = vmul.f32 %v2249, %v2253
        %v2256 = vmul.f32 %v2239, %v2254
        %v2257 = vmul.f32 %v2241, %v2255
        %s2258 = scalar_lea.vmem %s434, 16 [#allocation4]
        %2259 = vst.msk [vmem:[%s2258] sm:$0xff] %vm1504, %v2256
        %2260 = vst.msk [vmem:[%s2258 + $0x8] sm:$0xff] %vm1504, %v2257
        %v2262 = vsel %vm1504, %v2256, 0
        %2264 = vmatprep.subr.mxu0 0.0
        %2265 = vmatpush1.msra.mxu0 %v2068
        %2266 = vmatprep.subr.mxu0 0.0
        %2267 = vmatpush1.msra.mxu0 0.0
        %2268 = vmatprep.subr.mxu0 0.0
        %2269 = vmatpush1.msra.mxu0 0.0
        %2270 = vmatprep.subr.mxu0 0.0
        %2271 = vmatpush1.msra.mxu0 0.0
        %2272 = vmatprep.subr.mxu0 0.0
        %2273 = vmatpush1.msra.mxu0 0.0
        %2274 = vmatprep.subr.mxu0 0.0
        %2275 = vmatpush1.msra.mxu0 0.0
        %2276 = vmatprep.subr.mxu0 0.0
        %2277 = vmatpush1.msra.mxu0 0.0
        %2278 = vmatprep.subr.mxu0 0.0
        %2279 = vmatpush1.msra.mxu0 0.0
        %2280 = vmatprep.subr.mxu0 0.0
        %2281 = vmatpush1.msra.mxu0 0.0
        %2282 = vmatprep.subr.mxu0 0.0
        %2283 = vmatpush1.msra.mxu0 0.0
        %2284 = vmatprep.subr.mxu0 0.0
        %2285 = vmatpush1.msra.mxu0 0.0
        %2286 = vmatprep.subr.mxu0 0.0
        %2287 = vmatpush1.msra.mxu0 0.0
        %2288 = vmatprep.subr.mxu0 0.0
        %2289 = vmatpush1.msra.mxu0 0.0
        %2290 = vmatprep.subr.mxu0 0.0
        %2291 = vmatpush1.msra.mxu0 0.0
        %2292 = vmatprep.subr.mxu0 0.0
        %2293 = vmatpush1.msra.mxu0 0.0
        %2294 = vmatprep.subr.mxu0 0.0
        %2295 = vmatpush1.msra.mxu0 0.0
        %2296 = vmatprep.subr.mxu0 0.0
        %2297 = vmatpush1.msra.mxu0 0.0
        %2298 = vmatprep.subr.mxu0 0.0
        %2299 = vmatpush1.msra.mxu0 0.0
        %2300 = vmatprep.subr.mxu0 0.0
        %2301 = vmatpush1.msra.mxu0 0.0
        %2302 = vmatprep.subr.mxu0 0.0
        %2303 = vmatpush1.msra.mxu0 0.0
        %2304 = vmatprep.subr.mxu0 0.0
        %2305 = vmatpush1.msra.mxu0 0.0
        %2306 = vmatprep.subr.mxu0 0.0
        %2307 = vmatpush1.msra.mxu0 0.0
        %2308 = vmatprep.subr.mxu0 0.0
        %2309 = vmatpush1.msra.mxu0 0.0
        %2310 = vmatprep.subr.mxu0 0.0
        %2311 = vmatpush1.msra.mxu0 0.0
        %2312 = vmatprep.subr.mxu0 0.0
        %2313 = vmatpush1.msra.mxu0 0.0
        %2314 = vmatprep.subr.mxu0 0.0
        %2315 = vmatpush1.msra.mxu0 0.0
        %2316 = vmatprep.subr.mxu0 0.0
        %2317 = vmatpush1.msra.mxu0 0.0
        %2318 = vmatprep.subr.mxu0 0.0
        %2319 = vmatpush1.msra.mxu0 0.0
        %2320 = vmatprep.subr.mxu0 0.0
        %2321 = vmatpush1.msra.mxu0 0.0
        %2322 = vmatprep.subr.mxu0 0.0
        %2323 = vmatpush1.msra.mxu0 0.0
        %2324 = vmatprep.subr.mxu0 0.0
        %2325 = vmatpush1.msra.mxu0 0.0
        %2326 = vmatprep.subr.mxu0 0.0
        %2327 = vmatpush1.msra.mxu0 0.0
        %2328 = vmatprep.mubr.f32.mxu0 0.0
        %2329 = vmatmul.mubr.f32.gmra.mrb[0].mxu0 %v2262
        %v2330 = vpop.f32.mrb[0].mxu0
        %v2331 = vadd.f32 0.0, %v2330
        %v2332 = vpop.f32.mrb[0].mxu0
        %2333 = vdwg.mxu0
        %v2335 = vsel %vm1504, %v2257, 0
        %2337 = vmatprep.subr.mxu0 0.0
        %2338 = vmatpush1.msra.mxu0 %v2073
        %2339 = vmatprep.subr.mxu0 0.0
        %2340 = vmatpush1.msra.mxu0 0.0
        %2341 = vmatprep.subr.mxu0 0.0
        %2342 = vmatpush1.msra.mxu0 0.0
        %2343 = vmatprep.subr.mxu0 0.0
        %2344 = vmatpush1.msra.mxu0 0.0
        %2345 = vmatprep.subr.mxu0 0.0
        %2346 = vmatpush1.msra.mxu0 0.0
        %2347 = vmatprep.subr.mxu0 0.0
        %2348 = vmatpush1.msra.mxu0 0.0
        %2349 = vmatprep.subr.mxu0 0.0
        %2350 = vmatpush1.msra.mxu0 0.0
        %2351 = vmatprep.subr.mxu0 0.0
        %2352 = vmatpush1.msra.mxu0 0.0
        %2353 = vmatprep.subr.mxu0 0.0
        %2354 = vmatpush1.msra.mxu0 0.0
        %2355 = vmatprep.subr.mxu0 0.0
        %2356 = vmatpush1.msra.mxu0 0.0
        %2357 = vmatprep.subr.mxu0 0.0
        %2358 = vmatpush1.msra.mxu0 0.0
        %2359 = vmatprep.subr.mxu0 0.0
        %2360 = vmatpush1.msra.mxu0 0.0
        %2361 = vmatprep.subr.mxu0 0.0
        %2362 = vmatpush1.msra.mxu0 0.0
        %2363 = vmatprep.subr.mxu0 0.0
        %2364 = vmatpush1.msra.mxu0 0.0
        %2365 = vmatprep.subr.mxu0 0.0
        %2366 = vmatpush1.msra.mxu0 0.0
        %2367 = vmatprep.subr.mxu0 0.0
        %2368 = vmatpush1.msra.mxu0 0.0
        %2369 = vmatprep.subr.mxu0 0.0
        %2370 = vmatpush1.msra.mxu0 0.0
        %2371 = vmatprep.subr.mxu0 0.0
        %2372 = vmatpush1.msra.mxu0 0.0
        %2373 = vmatprep.subr.mxu0 0.0
        %2374 = vmatpush1.msra.mxu0 0.0
        %2375 = vmatprep.subr.mxu0 0.0
        %2376 = vmatpush1.msra.mxu0 0.0
        %2377 = vmatprep.subr.mxu0 0.0
        %2378 = vmatpush1.msra.mxu0 0.0
        %2379 = vmatprep.subr.mxu0 0.0
        %2380 = vmatpush1.msra.mxu0 0.0
        %2381 = vmatprep.subr.mxu0 0.0
        %2382 = vmatpush1.msra.mxu0 0.0
        %2383 = vmatprep.subr.mxu0 0.0
        %2384 = vmatpush1.msra.mxu0 0.0
        %2385 = vmatprep.subr.mxu0 0.0
        %2386 = vmatpush1.msra.mxu0 0.0
        %2387 = vmatprep.subr.mxu0 0.0
        %2388 = vmatpush1.msra.mxu0 0.0
        %2389 = vmatprep.subr.mxu0 0.0
        %2390 = vmatpush1.msra.mxu0 0.0
        %2391 = vmatprep.subr.mxu0 0.0
        %2392 = vmatpush1.msra.mxu0 0.0
        %2393 = vmatprep.subr.mxu0 0.0
        %2394 = vmatpush1.msra.mxu0 0.0
        %2395 = vmatprep.subr.mxu0 0.0
        %2396 = vmatpush1.msra.mxu0 0.0
        %2397 = vmatprep.subr.mxu0 0.0
        %2398 = vmatpush1.msra.mxu0 0.0
        %2399 = vmatprep.subr.mxu0 0.0
        %2400 = vmatpush1.msra.mxu0 0.0
        %2401 = vmatprep.mubr.f32.mxu0 0.0
        %2402 = vmatmul.mubr.f32.gmra.mrb[0].mxu0 %v2335
        %v2403 = vpop.f32.mrb[0].mxu0
        %v2404 = vadd.f32 0.0, %v2403
        %v2405 = vpop.f32.mrb[0].mxu0
        %2406 = vdwg.mxu0
        %s2407 = scalar_lea.vmem %s9, 8
        %v2408 = vld [vmem:[%s2407] sm:$0xff]
        %v2410 = vsel %vm1504, %v2331, 0
        %v2413 = vsel %vm1504, %v2404, 0
        %2415 = vmatprep.subr.mxu0 0.0
        %2416 = vmatpush1.msra.mxu0 %v2408
        %2417 = vmatprep.subr.mxu0 0.0
        %2418 = vmatpush1.msra.mxu0 0.0
        %2419 = vmatprep.subr.mxu0 0.0
        %2420 = vmatpush1.msra.mxu0 0.0
        %2421 = vmatprep.subr.mxu0 0.0
        %2422 = vmatpush1.msra.mxu0 0.0
        %2423 = vmatprep.subr.mxu0 0.0
        %2424 = vmatpush1.msra.mxu0 0.0
        %2425 = vmatprep.subr.mxu0 0.0
        %2426 = vmatpush1.msra.mxu0 0.0
        %2427 = vmatprep.subr.mxu0 0.0
        %2428 = vmatpush1.msra.mxu0 0.0
        %2429 = vmatprep.subr.mxu0 0.0
        %2430 = vmatpush1.msra.mxu0 0.0
        %2431 = vmatprep.subr.mxu0 0.0
        %2432 = vmatpush1.msra.mxu0 0.0
        %2433 = vmatprep.subr.mxu0 0.0
        %2434 = vmatpush1.msra.mxu0 0.0
        %2435 = vmatprep.subr.mxu0 0.0
        %2436 = vmatpush1.msra.mxu0 0.0
        %2437 = vmatprep.subr.mxu0 0.0
        %2438 = vmatpush1.msra.mxu0 0.0
        %2439 = vmatprep.subr.mxu0 0.0
        %2440 = vmatpush1.msra.mxu0 0.0
        %2441 = vmatprep.subr.mxu0 0.0
        %2442 = vmatpush1.msra.mxu0 0.0
        %2443 = vmatprep.subr.mxu0 0.0
        %2444 = vmatpush1.msra.mxu0 0.0
        %2445 = vmatprep.subr.mxu0 0.0
        %2446 = vmatpush1.msra.mxu0 0.0
        %2447 = vmatprep.subr.mxu0 0.0
        %2448 = vmatpush1.msra.mxu0 0.0
        %2449 = vmatprep.subr.mxu0 0.0
        %2450 = vmatpush1.msra.mxu0 0.0
        %2451 = vmatprep.subr.mxu0 0.0
        %2452 = vmatpush1.msra.mxu0 0.0
        %2453 = vmatprep.subr.mxu0 0.0
        %2454 = vmatpush1.msra.mxu0 0.0
        %2455 = vmatprep.subr.mxu0 0.0
        %2456 = vmatpush1.msra.mxu0 0.0
        %2457 = vmatprep.subr.mxu0 0.0
        %2458 = vmatpush1.msra.mxu0 0.0
        %2459 = vmatprep.subr.mxu0 0.0
        %2460 = vmatpush1.msra.mxu0 0.0
        %2461 = vmatprep.subr.mxu0 0.0
        %2462 = vmatpush1.msra.mxu0 0.0
        %2463 = vmatprep.subr.mxu0 0.0
        %2464 = vmatpush1.msra.mxu0 0.0
        %2465 = vmatprep.subr.mxu0 0.0
        %2466 = vmatpush1.msra.mxu0 0.0
        %2467 = vmatprep.subr.mxu0 0.0
        %2468 = vmatpush1.msra.mxu0 0.0
        %2469 = vmatprep.subr.mxu0 0.0
        %2470 = vmatpush1.msra.mxu0 0.0
        %2471 = vmatprep.subr.mxu0 0.0
        %2472 = vmatpush1.msra.mxu0 0.0
        %2473 = vmatprep.subr.mxu0 0.0
        %2474 = vmatpush1.msra.mxu0 0.0
        %2475 = vmatprep.subr.mxu0 0.0
        %2476 = vmatpush1.msra.mxu0 0.0
        %2477 = vmatprep.subr.mxu0 0.0
        %2478 = vmatpush1.msra.mxu0 0.0
        %2479 = vmatprep.mubr.f32.mxu0 0.0
        %2480 = vmatmul.mubr.f32.gmra.mrb[0].mxu0 %v2410
        %v2481 = vpop.f32.mrb[0].mxu0
        %v2482 = vadd.f32 0.0, %v2481
        %v2483 = vpop.f32.mrb[0].mxu0
        %2484 = vmatprep.mubr.f32.mxu0 0.0
        %2485 = vmatmul.mubr.f32.gmra.mrb[0].mxu0 %v2413
        %v2486 = vpop.f32.mrb[0].mxu0
        %v2487 = vadd.f32 0.0, %v2486
        %v2488 = vpop.f32.mrb[0].mxu0
        %2489 = vdwg.mxu0
        %v2491 = vsel %vm1504, %v1759, 0
        %v2494 = vsel %vm1504, %v1832, 0
        %2496 = vmatprep.subr.mxu0 0.0
        %2497 = vmatpush1.msra.mxu0 %v1835
        %2498 = vmatprep.subr.mxu0 0.0
        %2499 = vmatpush1.msra.mxu0 0.0
        %2500 = vmatprep.subr.mxu0 0.0
        %2501 = vmatpush1.msra.mxu0 0.0
        %2502 = vmatprep.subr.mxu0 0.0
        %2503 = vmatpush1.msra.mxu0 0.0
        %2504 = vmatprep.subr.mxu0 0.0
        %2505 = vmatpush1.msra.mxu0 0.0
        %2506 = vmatprep.subr.mxu0 0.0
        %2507 = vmatpush1.msra.mxu0 0.0
        %2508 = vmatprep.subr.mxu0 0.0
        %2509 = vmatpush1.msra.mxu0 0.0
        %2510 = vmatprep.subr.mxu0 0.0
        %2511 = vmatpush1.msra.mxu0 0.0
        %2512 = vmatprep.subr.mxu0 0.0
        %2513 = vmatpush1.msra.mxu0 0.0
        %2514 = vmatprep.subr.mxu0 0.0
        %2515 = vmatpush1.msra.mxu0 0.0
        %2516 = vmatprep.subr.mxu0 0.0
        %2517 = vmatpush1.msra.mxu0 0.0
        %2518 = vmatprep.subr.mxu0 0.0
        %2519 = vmatpush1.msra.mxu0 0.0
        %2520 = vmatprep.subr.mxu0 0.0
        %2521 = vmatpush1.msra.mxu0 0.0
        %2522 = vmatprep.subr.mxu0 0.0
        %2523 = vmatpush1.msra.mxu0 0.0
        %2524 = vmatprep.subr.mxu0 0.0
        %2525 = vmatpush1.msra.mxu0 0.0
        %2526 = vmatprep.subr.mxu0 0.0
        %2527 = vmatpush1.msra.mxu0 0.0
        %2528 = vmatprep.subr.mxu0 0.0
        %2529 = vmatpush1.msra.mxu0 0.0
        %2530 = vmatprep.subr.mxu0 0.0
        %2531 = vmatpush1.msra.mxu0 0.0
        %2532 = vmatprep.subr.mxu0 0.0
        %2533 = vmatpush1.msra.mxu0 0.0
        %2534 = vmatprep.subr.mxu0 0.0
        %2535 = vmatpush1.msra.mxu0 0.0
        %2536 = vmatprep.subr.mxu0 0.0
        %2537 = vmatpush1.msra.mxu0 0.0
        %2538 = vmatprep.subr.mxu0 0.0
        %2539 = vmatpush1.msra.mxu0 0.0
        %2540 = vmatprep.subr.mxu0 0.0
        %2541 = vmatpush1.msra.mxu0 0.0
        %2542 = vmatprep.subr.mxu0 0.0
        %2543 = vmatpush1.msra.mxu0 0.0
        %2544 = vmatprep.subr.mxu0 0.0
        %2545 = vmatpush1.msra.mxu0 0.0
        %2546 = vmatprep.subr.mxu0 0.0
        %2547 = vmatpush1.msra.mxu0 0.0
        %2548 = vmatprep.subr.mxu0 0.0
        %2549 = vmatpush1.msra.mxu0 0.0
        %2550 = vmatprep.subr.mxu0 0.0
        %2551 = vmatpush1.msra.mxu0 0.0
        %2552 = vmatprep.subr.mxu0 0.0
        %2553 = vmatpush1.msra.mxu0 0.0
        %2554 = vmatprep.subr.mxu0 0.0
        %2555 = vmatpush1.msra.mxu0 0.0
        %2556 = vmatprep.subr.mxu0 0.0
        %2557 = vmatpush1.msra.mxu0 0.0
        %2558 = vmatprep.subr.mxu0 0.0
        %2559 = vmatpush1.msra.mxu0 0.0
        %2560 = vmatprep.mubr.f32.mxu0 0.0
        %2561 = vmatmul.mubr.f32.gmra.mrb[0].mxu0 %v2491
        %v2562 = vpop.f32.mrb[0].mxu0
        %v2563 = vadd.f32 %v2482, %v2562
        %v2564 = vpop.f32.mrb[0].mxu0
        %2565 = vmatprep.mubr.f32.mxu0 0.0
        %2566 = vmatmul.mubr.f32.gmra.mrb[0].mxu0 %v2494
        %v2567 = vpop.f32.mrb[0].mxu0
        %v2568 = vadd.f32 %v2487, %v2567
        %v2569 = vpop.f32.mrb[0].mxu0
        %2570 = vdwg.mxu0
        %s2571 = scalar_lea.vmem %s6, 64
        %v2572 = vld [vmem:[%s2571] sm:$0xff]
        %v2573 = vld [vmem:[%s2571 + $0x8] sm:$0xff]
        %v2574 = vld [vmem:[%s2571 + $0x10] sm:$0xff]
        %v2575 = vld [vmem:[%s2571 + $0x18] sm:$0xff]
        %2576 = vmatprep.subr.mxu0 0.0
        %2577 = vmatpush1.msra.mxu0 %v2572
        %2578 = vmatprep.subr.mxu0 0.0
        %2579 = vmatpush1.msra.mxu0 %v2573
        %2580 = vmatprep.subr.mxu0 0.0
        %2581 = vmatpush1.msra.mxu0 %v2574
        %2582 = vmatprep.subr.mxu0 0.0
        %2583 = vmatpush1.msra.mxu0 %v2575
        %2584 = vmatprep.subr.mxu0 0.0
        %2585 = vmatpush1.msra.mxu0 0.0
        %2586 = vmatprep.subr.mxu0 0.0
        %2587 = vmatpush1.msra.mxu0 0.0
        %2588 = vmatprep.subr.mxu0 0.0
        %2589 = vmatpush1.msra.mxu0 0.0
        %2590 = vmatprep.subr.mxu0 0.0
        %2591 = vmatpush1.msra.mxu0 0.0
        %2592 = vmatprep.subr.mxu0 0.0
        %2593 = vmatpush1.msra.mxu0 0.0
        %2594 = vmatprep.subr.mxu0 0.0
        %2595 = vmatpush1.msra.mxu0 0.0
        %2596 = vmatprep.subr.mxu0 0.0
        %2597 = vmatpush1.msra.mxu0 0.0
        %2598 = vmatprep.subr.mxu0 0.0
        %2599 = vmatpush1.msra.mxu0 0.0
        %2600 = vmatprep.subr.mxu0 0.0
        %2601 = vmatpush1.msra.mxu0 0.0
        %2602 = vmatprep.subr.mxu0 0.0
        %2603 = vmatpush1.msra.mxu0 0.0
        %2604 = vmatprep.subr.mxu0 0.0
        %2605 = vmatpush1.msra.mxu0 0.0
        %2606 = vmatprep.subr.mxu0 0.0
        %2607 = vmatpush1.msra.mxu0 0.0
        %2608 = vmatprep.subr.mxu0 0.0
        %2609 = vmatpush1.msra.mxu0 0.0
        %2610 = vmatprep.subr.mxu0 0.0
        %2611 = vmatpush1.msra.mxu0 0.0
        %2612 = vmatprep.subr.mxu0 0.0
        %2613 = vmatpush1.msra.mxu0 0.0
        %2614 = vmatprep.subr.mxu0 0.0
        %2615 = vmatpush1.msra.mxu0 0.0
        %2616 = vmatprep.subr.mxu0 0.0
        %2617 = vmatpush1.msra.mxu0 0.0
        %2618 = vmatprep.subr.mxu0 0.0
        %2619 = vmatpush1.msra.mxu0 0.0
        %2620 = vmatprep.subr.mxu0 0.0
        %2621 = vmatpush1.msra.mxu0 0.0
        %2622 = vmatprep.subr.mxu0 0.0
        %2623 = vmatpush1.msra.mxu0 0.0
        %2624 = vmatprep.subr.mxu0 0.0
        %2625 = vmatpush1.msra.mxu0 0.0
        %2626 = vmatprep.subr.mxu0 0.0
        %2627 = vmatpush1.msra.mxu0 0.0
        %2628 = vmatprep.subr.mxu0 0.0
        %2629 = vmatpush1.msra.mxu0 0.0
        %2630 = vmatprep.subr.mxu0 0.0
        %2631 = vmatpush1.msra.mxu0 0.0
        %2632 = vmatprep.subr.mxu0 0.0
        %2633 = vmatpush1.msra.mxu0 0.0
        %2634 = vmatprep.subr.mxu0 0.0
        %2635 = vmatpush1.msra.mxu0 0.0
        %2636 = vmatprep.subr.mxu0 0.0
        %2637 = vmatpush1.msra.mxu0 0.0
        %2638 = vmatprep.subr.mxu0 0.0
        %2639 = vmatpush1.msra.mxu0 0.0
        %2640 = vmatprep.mubr.f32.mxu0 0.0
        %2641 = vmatmul.mubr.f32.gmra.mrb[0].mxu0 %v1260
        %v2642 = vpop.f32.mrb[0].mxu0
        %v2643 = vadd.f32 0.0, %v2642
        %v2644 = vpop.f32.mrb[0].mxu0
        %2645 = vmatprep.mubr.f32.mxu0 0.0
        %2646 = vmatmul.mubr.f32.gmra.mrb[0].mxu0 %v1263
        %v2647 = vpop.f32.mrb[0].mxu0
        %v2648 = vadd.f32 0.0, %v2647
        %v2649 = vpop.f32.mrb[0].mxu0
        %2650 = vdwg.mxu0
        %s2651 = scalar_lea.vmem %s7, 64
        %v2652 = vld [vmem:[%s2651] sm:$0xff]
        %v2653 = vld [vmem:[%s2651 + $0x8] sm:$0xff]
        %v2654 = vld [vmem:[%s2651 + $0x10] sm:$0xff]
        %v2655 = vld [vmem:[%s2651 + $0x18] sm:$0xff]
        %2656 = vmatprep.subr.mxu0 0.0
        %2657 = vmatpush1.msra.mxu0 %v2652
        %2658 = vmatprep.subr.mxu0 0.0
        %2659 = vmatpush1.msra.mxu0 %v2653
        %2660 = vmatprep.subr.mxu0 0.0
        %2661 = vmatpush1.msra.mxu0 %v2654
        %2662 = vmatprep.subr.mxu0 0.0
        %2663 = vmatpush1.msra.mxu0 %v2655
        %2664 = vmatprep.subr.mxu0 0.0
        %2665 = vmatpush1.msra.mxu0 0.0
        %2666 = vmatprep.subr.mxu0 0.0
        %2667 = vmatpush1.msra.mxu0 0.0
        %2668 = vmatprep.subr.mxu0 0.0
        %2669 = vmatpush1.msra.mxu0 0.0
        %2670 = vmatprep.subr.mxu0 0.0
        %2671 = vmatpush1.msra.mxu0 0.0
        %2672 = vmatprep.subr.mxu0 0.0
        %2673 = vmatpush1.msra.mxu0 0.0
        %2674 = vmatprep.subr.mxu0 0.0
        %2675 = vmatpush1.msra.mxu0 0.0
        %2676 = vmatprep.subr.mxu0 0.0
        %2677 = vmatpush1.msra.mxu0 0.0
        %2678 = vmatprep.subr.mxu0 0.0
        %2679 = vmatpush1.msra.mxu0 0.0
        %2680 = vmatprep.subr.mxu0 0.0
        %2681 = vmatpush1.msra.mxu0 0.0
        %2682 = vmatprep.subr.mxu0 0.0
        %2683 = vmatpush1.msra.mxu0 0.0
        %2684 = vmatprep.subr.mxu0 0.0
        %2685 = vmatpush1.msra.mxu0 0.0
        %2686 = vmatprep.subr.mxu0 0.0
        %2687 = vmatpush1.msra.mxu0 0.0
        %2688 = vmatprep.subr.mxu0 0.0
        %2689 = vmatpush1.msra.mxu0 0.0
        %2690 = vmatprep.subr.mxu0 0.0
        %2691 = vmatpush1.msra.mxu0 0.0
        %2692 = vmatprep.subr.mxu0 0.0
        %2693 = vmatpush1.msra.mxu0 0.0
        %2694 = vmatprep.subr.mxu0 0.0
        %2695 = vmatpush1.msra.mxu0 0.0
        %2696 = vmatprep.subr.mxu0 0.0
        %2697 = vmatpush1.msra.mxu0 0.0
        %2698 = vmatprep.subr.mxu0 0.0
        %2699 = vmatpush1.msra.mxu0 0.0
        %2700 = vmatprep.subr.mxu0 0.0
        %2701 = vmatpush1.msra.mxu0 0.0
        %2702 = vmatprep.subr.mxu0 0.0
        %2703 = vmatpush1.msra.mxu0 0.0
        %2704 = vmatprep.subr.mxu0 0.0
        %2705 = vmatpush1.msra.mxu0 0.0
        %2706 = vmatprep.subr.mxu0 0.0
        %2707 = vmatpush1.msra.mxu0 0.0
        %2708 = vmatprep.subr.mxu0 0.0
        %2709 = vmatpush1.msra.mxu0 0.0
        %2710 = vmatprep.subr.mxu0 0.0
        %2711 = vmatpush1.msra.mxu0 0.0
        %2712 = vmatprep.subr.mxu0 0.0
        %2713 = vmatpush1.msra.mxu0 0.0
        %2714 = vmatprep.subr.mxu0 0.0
        %2715 = vmatpush1.msra.mxu0 0.0
        %2716 = vmatprep.subr.mxu0 0.0
        %2717 = vmatpush1.msra.mxu0 0.0
        %2718 = vmatprep.subr.mxu0 0.0
        %2719 = vmatpush1.msra.mxu0 0.0
        %2720 = vmatprep.mubr.f32.mxu0 0.0
        %2721 = vmatmul.mubr.f32.gmra.mrb[0].mxu0 %v1260
        %v2722 = vpop.f32.mrb[0].mxu0
        %v2723 = vadd.f32 0.0, %v2722
        %v2724 = vpop.f32.mrb[0].mxu0
        %2725 = vmatprep.mubr.f32.mxu0 0.0
        %2726 = vmatmul.mubr.f32.gmra.mrb[0].mxu0 %v1263
        %v2727 = vpop.f32.mrb[0].mxu0
        %v2728 = vadd.f32 0.0, %v2727
        %v2729 = vpop.f32.mrb[0].mxu0
        %2730 = vdwg.mxu0
        %s2731 = scalar_lea.vmem %s8, 64
        %v2732 = vld [vmem:[%s2731] sm:$0xff]
        %v2733 = vld [vmem:[%s2731 + $0x8] sm:$0xff]
        %v2734 = vld [vmem:[%s2731 + $0x10] sm:$0xff]
        %v2735 = vld [vmem:[%s2731 + $0x18] sm:$0xff]
        %2736 = vmatprep.subr.mxu0 0.0
        %2737 = vmatpush1.msra.mxu0 %v2732
        %2738 = vmatprep.subr.mxu0 0.0
        %2739 = vmatpush1.msra.mxu0 %v2733
        %2740 = vmatprep.subr.mxu0 0.0
        %2741 = vmatpush1.msra.mxu0 %v2734
        %2742 = vmatprep.subr.mxu0 0.0
        %2743 = vmatpush1.msra.mxu0 %v2735
        %2744 = vmatprep.subr.mxu0 0.0
        %2745 = vmatpush1.msra.mxu0 0.0
        %2746 = vmatprep.subr.mxu0 0.0
        %2747 = vmatpush1.msra.mxu0 0.0
        %2748 = vmatprep.subr.mxu0 0.0
        %2749 = vmatpush1.msra.mxu0 0.0
        %2750 = vmatprep.subr.mxu0 0.0
        %2751 = vmatpush1.msra.mxu0 0.0
        %2752 = vmatprep.subr.mxu0 0.0
        %2753 = vmatpush1.msra.mxu0 0.0
        %2754 = vmatprep.subr.mxu0 0.0
        %2755 = vmatpush1.msra.mxu0 0.0
        %2756 = vmatprep.subr.mxu0 0.0
        %2757 = vmatpush1.msra.mxu0 0.0
        %2758 = vmatprep.subr.mxu0 0.0
        %2759 = vmatpush1.msra.mxu0 0.0
        %2760 = vmatprep.subr.mxu0 0.0
        %2761 = vmatpush1.msra.mxu0 0.0
        %2762 = vmatprep.subr.mxu0 0.0
        %2763 = vmatpush1.msra.mxu0 0.0
        %2764 = vmatprep.subr.mxu0 0.0
        %2765 = vmatpush1.msra.mxu0 0.0
        %2766 = vmatprep.subr.mxu0 0.0
        %2767 = vmatpush1.msra.mxu0 0.0
        %2768 = vmatprep.subr.mxu0 0.0
        %2769 = vmatpush1.msra.mxu0 0.0
        %2770 = vmatprep.subr.mxu0 0.0
        %2771 = vmatpush1.msra.mxu0 0.0
        %2772 = vmatprep.subr.mxu0 0.0
        %2773 = vmatpush1.msra.mxu0 0.0
        %2774 = vmatprep.subr.mxu0 0.0
        %2775 = vmatpush1.msra.mxu0 0.0
        %2776 = vmatprep.subr.mxu0 0.0
        %2777 = vmatpush1.msra.mxu0 0.0
        %2778 = vmatprep.subr.mxu0 0.0
        %2779 = vmatpush1.msra.mxu0 0.0
        %2780 = vmatprep.subr.mxu0 0.0
        %2781 = vmatpush1.msra.mxu0 0.0
        %2782 = vmatprep.subr.mxu0 0.0
        %2783 = vmatpush1.msra.mxu0 0.0
        %2784 = vmatprep.subr.mxu0 0.0
        %2785 = vmatpush1.msra.mxu0 0.0
        %2786 = vmatprep.subr.mxu0 0.0
        %2787 = vmatpush1.msra.mxu0 0.0
        %2788 = vmatprep.subr.mxu0 0.0
        %2789 = vmatpush1.msra.mxu0 0.0
        %2790 = vmatprep.subr.mxu0 0.0
        %2791 = vmatpush1.msra.mxu0 0.0
        %2792 = vmatprep.subr.mxu0 0.0
        %2793 = vmatpush1.msra.mxu0 0.0
        %2794 = vmatprep.subr.mxu0 0.0
        %2795 = vmatpush1.msra.mxu0 0.0
        %2796 = vmatprep.subr.mxu0 0.0
        %2797 = vmatpush1.msra.mxu0 0.0
        %2798 = vmatprep.subr.mxu0 0.0
        %2799 = vmatpush1.msra.mxu0 0.0
        %2800 = vmatprep.mubr.f32.mxu0 0.0
        %2801 = vmatmul.mubr.f32.gmra.mrb[0].mxu0 %v1424
        %v2802 = vpop.f32.mrb[0].mxu0
        %v2803 = vadd.f32 0.0, %v2802
        %v2804 = vpop.f32.mrb[0].mxu0
        %2805 = vmatprep.mubr.f32.mxu0 0.0
        %2806 = vmatmul.mubr.f32.gmra.mrb[0].mxu0 %v1427
        %v2807 = vpop.f32.mrb[0].mxu0
        %v2808 = vadd.f32 0.0, %v2807
        %v2809 = vpop.f32.mrb[0].mxu0
        %2810 = vdwg.mxu0
        %v2812 = vsel %vm1504, %v2643, 0
        %v2815 = vsel %vm1504, %v2723, 0
        %2817 = vmatprep.subr.mxu0 0.0
        %2818 = vmatpush1.xpose.msra.mxu0 %v2815
        %2819 = vmatprep.subr.mxu0 0.0
        %2820 = vmatpush1.xpose.msra.mxu0 0.0
        %2821 = vmatprep.subr.mxu0 0.0
        %2822 = vmatpush1.xpose.msra.mxu0 0.0
        %2823 = vmatprep.subr.mxu0 0.0
        %2824 = vmatpush1.xpose.msra.mxu0 0.0
        %2825 = vmatprep.subr.mxu0 0.0
        %2826 = vmatpush1.xpose.msra.mxu0 0.0
        %2827 = vmatprep.subr.mxu0 0.0
        %2828 = vmatpush1.xpose.msra.mxu0 0.0
        %2829 = vmatprep.subr.mxu0 0.0
        %2830 = vmatpush1.xpose.msra.mxu0 0.0
        %2831 = vmatprep.subr.mxu0 0.0
        %2832 = vmatpush1.xpose.msra.mxu0 0.0
        %2833 = vmatprep.subr.mxu0 0.0
        %2834 = vmatpush1.xpose.msra.mxu0 0.0
        %2835 = vmatprep.subr.mxu0 0.0
        %2836 = vmatpush1.xpose.msra.mxu0 0.0
        %2837 = vmatprep.subr.mxu0 0.0
        %2838 = vmatpush1.xpose.msra.mxu0 0.0
        %2839 = vmatprep.subr.mxu0 0.0
        %2840 = vmatpush1.xpose.msra.mxu0 0.0
        %2841 = vmatprep.subr.mxu0 0.0
        %2842 = vmatpush1.xpose.msra.mxu0 0.0
        %2843 = vmatprep.subr.mxu0 0.0
        %2844 = vmatpush1.xpose.msra.mxu0 0.0
        %2845 = vmatprep.subr.mxu0 0.0
        %2846 = vmatpush1.xpose.msra.mxu0 0.0
        %2847 = vmatprep.subr.mxu0 0.0
        %2848 = vmatpush1.xpose.msra.mxu0 0.0
        %2849 = vmatprep.subr.mxu0 0.0
        %2850 = vmatpush1.xpose.msra.mxu0 0.0
        %2851 = vmatprep.subr.mxu0 0.0
        %2852 = vmatpush1.xpose.msra.mxu0 0.0
        %2853 = vmatprep.subr.mxu0 0.0
        %2854 = vmatpush1.xpose.msra.mxu0 0.0
        %2855 = vmatprep.subr.mxu0 0.0
        %2856 = vmatpush1.xpose.msra.mxu0 0.0
        %2857 = vmatprep.subr.mxu0 0.0
        %2858 = vmatpush1.xpose.msra.mxu0 0.0
        %2859 = vmatprep.subr.mxu0 0.0
        %2860 = vmatpush1.xpose.msra.mxu0 0.0
        %2861 = vmatprep.subr.mxu0 0.0
        %2862 = vmatpush1.xpose.msra.mxu0 0.0
        %2863 = vmatprep.subr.mxu0 0.0
        %2864 = vmatpush1.xpose.msra.mxu0 0.0
        %2865 = vmatprep.subr.mxu0 0.0
        %2866 = vmatpush1.xpose.msra.mxu0 0.0
        %2867 = vmatprep.subr.mxu0 0.0
        %2868 = vmatpush1.xpose.msra.mxu0 0.0
        %2869 = vmatprep.subr.mxu0 0.0
        %2870 = vmatpush1.xpose.msra.mxu0 0.0
        %2871 = vmatprep.subr.mxu0 0.0
        %2872 = vmatpush1.xpose.msra.mxu0 0.0
        %2873 = vmatprep.subr.mxu0 0.0
        %2874 = vmatpush1.xpose.msra.mxu0 0.0
        %2875 = vmatprep.subr.mxu0 0.0
        %2876 = vmatpush1.xpose.msra.mxu0 0.0
        %2877 = vmatprep.subr.mxu0 0.0
        %2878 = vmatpush1.xpose.msra.mxu0 0.0
        %2879 = vmatprep.subr.mxu0 0.0
        %2880 = vmatpush1.xpose.msra.mxu0 0.0
        %2881 = vmatprep.mubr.f32.mxu0 0.0
        %2882 = vmatmul.mubr.f32.gmra.mrb[0].mxu0 %v2812
        %v2883 = vpop.f32.mrb[0].mxu0
        %v2884 = vadd.f32 0.0, %v2883
        %v2885 = vpop.f32.mrb[0].mxu0
        %2886 = vdwg.mxu0
        %v2888 = vsel %vm1504, %v2648, 0
        %v2891 = vsel %vm1504, %v2728, 0
        %2893 = vmatprep.subr.mxu0 0.0
        %2894 = vmatpush1.xpose.msra.mxu0 %v2891
        %2895 = vmatprep.subr.mxu0 0.0
        %2896 = vmatpush1.xpose.msra.mxu0 0.0
        %2897 = vmatprep.subr.mxu0 0.0
        %2898 = vmatpush1.xpose.msra.mxu0 0.0
        %2899 = vmatprep.subr.mxu0 0.0
        %2900 = vmatpush1.xpose.msra.mxu0 0.0
        %2901 = vmatprep.subr.mxu0 0.0
        %2902 = vmatpush1.xpose.msra.mxu0 0.0
        %2903 = vmatprep.subr.mxu0 0.0
        %2904 = vmatpush1.xpose.msra.mxu0 0.0
        %2905 = vmatprep.subr.mxu0 0.0
        %2906 = vmatpush1.xpose.msra.mxu0 0.0
        %2907 = vmatprep.subr.mxu0 0.0
        %2908 = vmatpush1.xpose.msra.mxu0 0.0
        %2909 = vmatprep.subr.mxu0 0.0
        %2910 = vmatpush1.xpose.msra.mxu0 0.0
        %2911 = vmatprep.subr.mxu0 0.0
        %2912 = vmatpush1.xpose.msra.mxu0 0.0
        %2913 = vmatprep.subr.mxu0 0.0
        %2914 = vmatpush1.xpose.msra.mxu0 0.0
        %2915 = vmatprep.subr.mxu0 0.0
        %2916 = vmatpush1.xpose.msra.mxu0 0.0
        %2917 = vmatprep.subr.mxu0 0.0
        %2918 = vmatpush1.xpose.msra.mxu0 0.0
        %2919 = vmatprep.subr.mxu0 0.0
        %2920 = vmatpush1.xpose.msra.mxu0 0.0
        %2921 = vmatprep.subr.mxu0 0.0
        %2922 = vmatpush1.xpose.msra.mxu0 0.0
        %2923 = vmatprep.subr.mxu0 0.0
        %2924 = vmatpush1.xpose.msra.mxu0 0.0
        %2925 = vmatprep.subr.mxu0 0.0
        %2926 = vmatpush1.xpose.msra.mxu0 0.0
        %2927 = vmatprep.subr.mxu0 0.0
        %2928 = vmatpush1.xpose.msra.mxu0 0.0
        %2929 = vmatprep.subr.mxu0 0.0
        %2930 = vmatpush1.xpose.msra.mxu0 0.0
        %2931 = vmatprep.subr.mxu0 0.0
        %2932 = vmatpush1.xpose.msra.mxu0 0.0
        %2933 = vmatprep.subr.mxu0 0.0
        %2934 = vmatpush1.xpose.msra.mxu0 0.0
        %2935 = vmatprep.subr.mxu0 0.0
        %2936 = vmatpush1.xpose.msra.mxu0 0.0
        %2937 = vmatprep.subr.mxu0 0.0
        %2938 = vmatpush1.xpose.msra.mxu0 0.0
        %2939 = vmatprep.subr.mxu0 0.0
        %2940 = vmatpush1.xpose.msra.mxu0 0.0
        %2941 = vmatprep.subr.mxu0 0.0
        %2942 = vmatpush1.xpose.msra.mxu0 0.0
        %2943 = vmatprep.subr.mxu0 0.0
        %2944 = vmatpush1.xpose.msra.mxu0 0.0
        %2945 = vmatprep.subr.mxu0 0.0
        %2946 = vmatpush1.xpose.msra.mxu0 0.0
        %2947 = vmatprep.subr.mxu0 0.0
        %2948 = vmatpush1.xpose.msra.mxu0 0.0
        %2949 = vmatprep.subr.mxu0 0.0
        %2950 = vmatpush1.xpose.msra.mxu0 0.0
        %2951 = vmatprep.subr.mxu0 0.0
        %2952 = vmatpush1.xpose.msra.mxu0 0.0
        %2953 = vmatprep.subr.mxu0 0.0
        %2954 = vmatpush1.xpose.msra.mxu0 0.0
        %2955 = vmatprep.subr.mxu0 0.0
        %2956 = vmatpush1.xpose.msra.mxu0 0.0
        %2957 = vmatprep.mubr.f32.mxu0 0.0
        %2958 = vmatmul.mubr.f32.gmra.mrb[0].mxu0 %v2888
        %v2959 = vpop.f32.mrb[0].mxu0
        %v2960 = vadd.f32 0.0, %v2959
        %v2961 = vpop.f32.mrb[0].mxu0
        %2962 = vdwg.mxu0
        %v2963 = vmul.f32 %v2884, 0.17677669
        %v2964 = vmul.f32 %v2960, 0.17677669
        %v2965 = vsel %vm1504, %v2963, -inf
        %2966 = vmax.xlane.f32.xlu0 %v2965
        %v2967 = vpop.xlane.xlu0 %2966
        %v2968 = vsel %vm1504, %v2964, -inf
        %2969 = vmax.xlane.f32.xlu0 %v2968
        %v2970 = vpop.xlane.xlu0 %2969
        %v2971 = vsub.f32 %v2963, %v2967
        %v2972 = vsub.f32 %v2964, %v2970
        %v2973 = vmul.f32 %v2971, 1.442695
        %v2974 = vpow.pop %v2973
        %v2975 = vmul.f32 %v2972, 1.442695
        %v2976 = vpow.pop %v2975
        %v2977 = vsel %vm1504, %v2974, 0.0
        %2978 = vadd.xlane.f32.xlu0 %v2977
        %v2979 = vpop.xlane.xlu0 %2978
        %v2980 = vsel %vm1504, %v2976, 0.0
        %2981 = vadd.xlane.f32.xlu0 %v2980
        %v2982 = vpop.xlane.xlu0 %2981
        %v2983 = vrcp.pop %v2979
        %v2984 = vrcp.pop %v2982
        %v2985 = vmul.f32 %v2979, %v2983
        %v2986 = vmul.f32 %v2982, %v2984
        %v2987 = vsub.f32 2.0, %v2985
        %v2988 = vsub.f32 2.0, %v2986
        %v2989 = vmul.f32 %v2983, %v2987
        %v2990 = vmul.f32 %v2984, %v2988
        %v2991 = vmul.f32 %v2974, %v2989
        %v2992 = vmul.f32 %v2976, %v2990
        %s2993 = scalar_lea.vmem %s434, 32 [#allocation4]
        %2994 = vst.msk [vmem:[%s2993] sm:$0xff] %vm1504, %v2991
        %2995 = vst.msk [vmem:[%s2993 + $0x8] sm:$0xff] %vm1504, %v2992
        %v2997 = vsel %vm1504, %v2991, 0
        %2999 = vmatprep.subr.mxu0 0.0
        %3000 = vmatpush1.msra.mxu0 %v2803
        %3001 = vmatprep.subr.mxu0 0.0
        %3002 = vmatpush1.msra.mxu0 0.0
        %3003 = vmatprep.subr.mxu0 0.0
        %3004 = vmatpush1.msra.mxu0 0.0
        %3005 = vmatprep.subr.mxu0 0.0
        %3006 = vmatpush1.msra.mxu0 0.0
        %3007 = vmatprep.subr.mxu0 0.0
        %3008 = vmatpush1.msra.mxu0 0.0
        %3009 = vmatprep.subr.mxu0 0.0
        %3010 = vmatpush1.msra.mxu0 0.0
        %3011 = vmatprep.subr.mxu0 0.0
        %3012 = vmatpush1.msra.mxu0 0.0
        %3013 = vmatprep.subr.mxu0 0.0
        %3014 = vmatpush1.msra.mxu0 0.0
        %3015 = vmatprep.subr.mxu0 0.0
        %3016 = vmatpush1.msra.mxu0 0.0
        %3017 = vmatprep.subr.mxu0 0.0
        %3018 = vmatpush1.msra.mxu0 0.0
        %3019 = vmatprep.subr.mxu0 0.0
        %3020 = vmatpush1.msra.mxu0 0.0
        %3021 = vmatprep.subr.mxu0 0.0
        %3022 = vmatpush1.msra.mxu0 0.0
        %3023 = vmatprep.subr.mxu0 0.0
        %3024 = vmatpush1.msra.mxu0 0.0
        %3025 = vmatprep.subr.mxu0 0.0
        %3026 = vmatpush1.msra.mxu0 0.0
        %3027 = vmatprep.subr.mxu0 0.0
        %3028 = vmatpush1.msra.mxu0 0.0
        %3029 = vmatprep.subr.mxu0 0.0
        %3030 = vmatpush1.msra.mxu0 0.0
        %3031 = vmatprep.subr.mxu0 0.0
        %3032 = vmatpush1.msra.mxu0 0.0
        %3033 = vmatprep.subr.mxu0 0.0
        %3034 = vmatpush1.msra.mxu0 0.0
        %3035 = vmatprep.subr.mxu0 0.0
        %3036 = vmatpush1.msra.mxu0 0.0
        %3037 = vmatprep.subr.mxu0 0.0
        %3038 = vmatpush1.msra.mxu0 0.0
        %3039 = vmatprep.subr.mxu0 0.0
        %3040 = vmatpush1.msra.mxu0 0.0
        %3041 = vmatprep.subr.mxu0 0.0
        %3042 = vmatpush1.msra.mxu0 0.0
        %3043 = vmatprep.subr.mxu0 0.0
        %3044 = vmatpush1.msra.mxu0 0.0
        %3045 = vmatprep.subr.mxu0 0.0
        %3046 = vmatpush1.msra.mxu0 0.0
        %3047 = vmatprep.subr.mxu0 0.0
        %3048 = vmatpush1.msra.mxu0 0.0
        %3049 = vmatprep.subr.mxu0 0.0
        %3050 = vmatpush1.msra.mxu0 0.0
        %3051 = vmatprep.subr.mxu0 0.0
        %3052 = vmatpush1.msra.mxu0 0.0
        %3053 = vmatprep.subr.mxu0 0.0
        %3054 = vmatpush1.msra.mxu0 0.0
        %3055 = vmatprep.subr.mxu0 0.0
        %3056 = vmatpush1.msra.mxu0 0.0
        %3057 = vmatprep.subr.mxu0 0.0
        %3058 = vmatpush1.msra.mxu0 0.0
        %3059 = vmatprep.subr.mxu0 0.0
        %3060 = vmatpush1.msra.mxu0 0.0
        %3061 = vmatprep.subr.mxu0 0.0
        %3062 = vmatpush1.msra.mxu0 0.0
        %3063 = vmatprep.mubr.f32.mxu0 0.0
        %3064 = vmatmul.mubr.f32.gmra.mrb[0].mxu0 %v2997
        %v3065 = vpop.f32.mrb[0].mxu0
        %v3066 = vadd.f32 0.0, %v3065
        %v3067 = vpop.f32.mrb[0].mxu0
        %3068 = vdwg.mxu0
        %v3070 = vsel %vm1504, %v2992, 0
        %3072 = vmatprep.subr.mxu0 0.0
        %3073 = vmatpush1.msra.mxu0 %v2808
        %3074 = vmatprep.subr.mxu0 0.0
        %3075 = vmatpush1.msra.mxu0 0.0
        %3076 = vmatprep.subr.mxu0 0.0
        %3077 = vmatpush1.msra.mxu0 0.0
        %3078 = vmatprep.subr.mxu0 0.0
        %3079 = vmatpush1.msra.mxu0 0.0
        %3080 = vmatprep.subr.mxu0 0.0
        %3081 = vmatpush1.msra.mxu0 0.0
        %3082 = vmatprep.subr.mxu0 0.0
        %3083 = vmatpush1.msra.mxu0 0.0
        %3084 = vmatprep.subr.mxu0 0.0
        %3085 = vmatpush1.msra.mxu0 0.0
        %3086 = vmatprep.subr.mxu0 0.0
        %3087 = vmatpush1.msra.mxu0 0.0
        %3088 = vmatprep.subr.mxu0 0.0
        %3089 = vmatpush1.msra.mxu0 0.0
        %3090 = vmatprep.subr.mxu0 0.0
        %3091 = vmatpush1.msra.mxu0 0.0
        %3092 = vmatprep.subr.mxu0 0.0
        %3093 = vmatpush1.msra.mxu0 0.0
        %3094 = vmatprep.subr.mxu0 0.0
        %3095 = vmatpush1.msra.mxu0 0.0
        %3096 = vmatprep.subr.mxu0 0.0
        %3097 = vmatpush1.msra.mxu0 0.0
        %3098 = vmatprep.subr.mxu0 0.0
        %3099 = vmatpush1.msra.mxu0 0.0
        %3100 = vmatprep.subr.mxu0 0.0
        %3101 = vmatpush1.msra.mxu0 0.0
        %3102 = vmatprep.subr.mxu0 0.0
        %3103 = vmatpush1.msra.mxu0 0.0
        %3104 = vmatprep.subr.mxu0 0.0
        %3105 = vmatpush1.msra.mxu0 0.0
        %3106 = vmatprep.subr.mxu0 0.0
        %3107 = vmatpush1.msra.mxu0 0.0
        %3108 = vmatprep.subr.mxu0 0.0
        %3109 = vmatpush1.msra.mxu0 0.0
        %3110 = vmatprep.subr.mxu0 0.0
        %3111 = vmatpush1.msra.mxu0 0.0
        %3112 = vmatprep.subr.mxu0 0.0
        %3113 = vmatpush1.msra.mxu0 0.0
        %3114 = vmatprep.subr.mxu0 0.0
        %3115 = vmatpush1.msra.mxu0 0.0
        %3116 = vmatprep.subr.mxu0 0.0
        %3117 = vmatpush1.msra.mxu0 0.0
        %3118 = vmatprep.subr.mxu0 0.0
        %3119 = vmatpush1.msra.mxu0 0.0
        %3120 = vmatprep.subr.mxu0 0.0
        %3121 = vmatpush1.msra.mxu0 0.0
        %3122 = vmatprep.subr.mxu0 0.0
        %3123 = vmatpush1.msra.mxu0 0.0
        %3124 = vmatprep.subr.mxu0 0.0
        %3125 = vmatpush1.msra.mxu0 0.0
        %3126 = vmatprep.subr.mxu0 0.0
        %3127 = vmatpush1.msra.mxu0 0.0
        %3128 = vmatprep.subr.mxu0 0.0
        %3129 = vmatpush1.msra.mxu0 0.0
        %3130 = vmatprep.subr.mxu0 0.0
        %3131 = vmatpush1.msra.mxu0 0.0
        %3132 = vmatprep.subr.mxu0 0.0
        %3133 = vmatpush1.msra.mxu0 0.0
        %3134 = vmatprep.subr.mxu0 0.0
        %3135 = vmatpush1.msra.mxu0 0.0
        %3136 = vmatprep.mubr.f32.mxu0 0.0
        %3137 = vmatmul.mubr.f32.gmra.mrb[0].mxu0 %v3070
        %v3138 = vpop.f32.mrb[0].mxu0
        %v3139 = vadd.f32 0.0, %v3138
        %v3140 = vpop.f32.mrb[0].mxu0
        %3141 = vdwg.mxu0
        %s3142 = scalar_lea.vmem %s9, 16
        %v3143 = vld [vmem:[%s3142] sm:$0xff]
        %v3145 = vsel %vm1504, %v3066, 0
        %v3148 = vsel %vm1504, %v3139, 0
        %3150 = vmatprep.subr.mxu0 0.0
        %3151 = vmatpush1.msra.mxu0 %v3143
        %3152 = vmatprep.subr.mxu0 0.0
        %3153 = vmatpush1.msra.mxu0 0.0
        %3154 = vmatprep.subr.mxu0 0.0
        %3155 = vmatpush1.msra.mxu0 0.0
        %3156 = vmatprep.subr.mxu0 0.0
        %3157 = vmatpush1.msra.mxu0 0.0
        %3158 = vmatprep.subr.mxu0 0.0
        %3159 = vmatpush1.msra.mxu0 0.0
        %3160 = vmatprep.subr.mxu0 0.0
        %3161 = vmatpush1.msra.mxu0 0.0
        %3162 = vmatprep.subr.mxu0 0.0
        %3163 = vmatpush1.msra.mxu0 0.0
        %3164 = vmatprep.subr.mxu0 0.0
        %3165 = vmatpush1.msra.mxu0 0.0
        %3166 = vmatprep.subr.mxu0 0.0
        %3167 = vmatpush1.msra.mxu0 0.0
        %3168 = vmatprep.subr.mxu0 0.0
        %3169 = vmatpush1.msra.mxu0 0.0
        %3170 = vmatprep.subr.mxu0 0.0
        %3171 = vmatpush1.msra.mxu0 0.0
        %3172 = vmatprep.subr.mxu0 0.0
        %3173 = vmatpush1.msra.mxu0 0.0
        %3174 = vmatprep.subr.mxu0 0.0
        %3175 = vmatpush1.msra.mxu0 0.0
        %3176 = vmatprep.subr.mxu0 0.0
        %3177 = vmatpush1.msra.mxu0 0.0
        %3178 = vmatprep.subr.mxu0 0.0
        %3179 = vmatpush1.msra.mxu0 0.0
        %3180 = vmatprep.subr.mxu0 0.0
        %3181 = vmatpush1.msra.mxu0 0.0
        %3182 = vmatprep.subr.mxu0 0.0
        %3183 = vmatpush1.msra.mxu0 0.0
        %3184 = vmatprep.subr.mxu0 0.0
        %3185 = vmatpush1.msra.mxu0 0.0
        %3186 = vmatprep.subr.mxu0 0.0
        %3187 = vmatpush1.msra.mxu0 0.0
        %3188 = vmatprep.subr.mxu0 0.0
        %3189 = vmatpush1.msra.mxu0 0.0
        %3190 = vmatprep.subr.mxu0 0.0
        %3191 = vmatpush1.msra.mxu0 0.0
        %3192 = vmatprep.subr.mxu0 0.0
        %3193 = vmatpush1.msra.mxu0 0.0
        %3194 = vmatprep.subr.mxu0 0.0
        %3195 = vmatpush1.msra.mxu0 0.0
        %3196 = vmatprep.subr.mxu0 0.0
        %3197 = vmatpush1.msra.mxu0 0.0
        %3198 = vmatprep.subr.mxu0 0.0
        %3199 = vmatpush1.msra.mxu0 0.0
        %3200 = vmatprep.subr.mxu0 0.0
        %3201 = vmatpush1.msra.mxu0 0.0
        %3202 = vmatprep.subr.mxu0 0.0
        %3203 = vmatpush1.msra.mxu0 0.0
        %3204 = vmatprep.subr.mxu0 0.0
        %3205 = vmatpush1.msra.mxu0 0.0
        %3206 = vmatprep.subr.mxu0 0.0
        %3207 = vmatpush1.msra.mxu0 0.0
        %3208 = vmatprep.subr.mxu0 0.0
        %3209 = vmatpush1.msra.mxu0 0.0
        %3210 = vmatprep.subr.mxu0 0.0
        %3211 = vmatpush1.msra.mxu0 0.0
        %3212 = vmatprep.subr.mxu0 0.0
        %3213 = vmatpush1.msra.mxu0 0.0
        %3214 = vmatprep.mubr.f32.mxu0 0.0
        %3215 = vmatmul.mubr.f32.gmra.mrb[0].mxu0 %v3145
        %v3216 = vpop.f32.mrb[0].mxu0
        %v3217 = vadd.f32 0.0, %v3216
        %v3218 = vpop.f32.mrb[0].mxu0
        %3219 = vmatprep.mubr.f32.mxu0 0.0
        %3220 = vmatmul.mubr.f32.gmra.mrb[0].mxu0 %v3148
        %v3221 = vpop.f32.mrb[0].mxu0
        %v3222 = vadd.f32 0.0, %v3221
        %v3223 = vpop.f32.mrb[0].mxu0
        %3224 = vdwg.mxu0
        %v3225 = vadd.f32 %v2563, %v3217
        %v3226 = vadd.f32 %v2568, %v3222
        %s3227 = scalar_lea.vmem %s6, 96
        %v3228 = vld [vmem:[%s3227] sm:$0xff]
        %v3229 = vld [vmem:[%s3227 + $0x8] sm:$0xff]
        %v3230 = vld [vmem:[%s3227 + $0x10] sm:$0xff]
        %v3231 = vld [vmem:[%s3227 + $0x18] sm:$0xff]
        %3232 = vmatprep.subr.mxu0 0.0
        %3233 = vmatpush1.msra.mxu0 %v3228
        %3234 = vmatprep.subr.mxu0 0.0
        %3235 = vmatpush1.msra.mxu0 %v3229
        %3236 = vmatprep.subr.mxu0 0.0
        %3237 = vmatpush1.msra.mxu0 %v3230
        %3238 = vmatprep.subr.mxu0 0.0
        %3239 = vmatpush1.msra.mxu0 %v3231
        %3240 = vmatprep.subr.mxu0 0.0
        %3241 = vmatpush1.msra.mxu0 0.0
        %3242 = vmatprep.subr.mxu0 0.0
        %3243 = vmatpush1.msra.mxu0 0.0
        %3244 = vmatprep.subr.mxu0 0.0
        %3245 = vmatpush1.msra.mxu0 0.0
        %3246 = vmatprep.subr.mxu0 0.0
        %3247 = vmatpush1.msra.mxu0 0.0
        %3248 = vmatprep.subr.mxu0 0.0
        %3249 = vmatpush1.msra.mxu0 0.0
        %3250 = vmatprep.subr.mxu0 0.0
        %3251 = vmatpush1.msra.mxu0 0.0
        %3252 = vmatprep.subr.mxu0 0.0
        %3253 = vmatpush1.msra.mxu0 0.0
        %3254 = vmatprep.subr.mxu0 0.0
        %3255 = vmatpush1.msra.mxu0 0.0
        %3256 = vmatprep.subr.mxu0 0.0
        %3257 = vmatpush1.msra.mxu0 0.0
        %3258 = vmatprep.subr.mxu0 0.0
        %3259 = vmatpush1.msra.mxu0 0.0
        %3260 = vmatprep.subr.mxu0 0.0
        %3261 = vmatpush1.msra.mxu0 0.0
        %3262 = vmatprep.subr.mxu0 0.0
        %3263 = vmatpush1.msra.mxu0 0.0
        %3264 = vmatprep.subr.mxu0 0.0
        %3265 = vmatpush1.msra.mxu0 0.0
        %3266 = vmatprep.subr.mxu0 0.0
        %3267 = vmatpush1.msra.mxu0 0.0
        %3268 = vmatprep.subr.mxu0 0.0
        %3269 = vmatpush1.msra.mxu0 0.0
        %3270 = vmatprep.subr.mxu0 0.0
        %3271 = vmatpush1.msra.mxu0 0.0
        %3272 = vmatprep.subr.mxu0 0.0
        %3273 = vmatpush1.msra.mxu0 0.0
        %3274 = vmatprep.subr.mxu0 0.0
        %3275 = vmatpush1.msra.mxu0 0.0
        %3276 = vmatprep.subr.mxu0 0.0
        %3277 = vmatpush1.msra.mxu0 0.0
        %3278 = vmatprep.subr.mxu0 0.0
        %3279 = vmatpush1.msra.mxu0 0.0
        %3280 = vmatprep.subr.mxu0 0.0
        %3281 = vmatpush1.msra.mxu0 0.0
        %3282 = vmatprep.subr.mxu0 0.0
        %3283 = vmatpush1.msra.mxu0 0.0
        %3284 = vmatprep.subr.mxu0 0.0
        %3285 = vmatpush1.msra.mxu0 0.0
        %3286 = vmatprep.subr.mxu0 0.0
        %3287 = vmatpush1.msra.mxu0 0.0
        %3288 = vmatprep.subr.mxu0 0.0
        %3289 = vmatpush1.msra.mxu0 0.0
        %3290 = vmatprep.subr.mxu0 0.0
        %3291 = vmatpush1.msra.mxu0 0.0
        %3292 = vmatprep.subr.mxu0 0.0
        %3293 = vmatpush1.msra.mxu0 0.0
        %3294 = vmatprep.subr.mxu0 0.0
        %3295 = vmatpush1.msra.mxu0 0.0
        %3296 = vmatprep.mubr.f32.mxu0 0.0
        %3297 = vmatmul.mubr.f32.gmra.mrb[0].mxu0 %v1260
        %v3298 = vpop.f32.mrb[0].mxu0
        %v3299 = vadd.f32 0.0, %v3298
        %v3300 = vpop.f32.mrb[0].mxu0
        %3301 = vmatprep.mubr.f32.mxu0 0.0
        %3302 = vmatmul.mubr.f32.gmra.mrb[0].mxu0 %v1263
        %v3303 = vpop.f32.mrb[0].mxu0
        %v3304 = vadd.f32 0.0, %v3303
        %v3305 = vpop.f32.mrb[0].mxu0
        %3306 = vdwg.mxu0
        %s3307 = scalar_lea.vmem %s7, 96
        %v3308 = vld [vmem:[%s3307] sm:$0xff]
        %v3309 = vld [vmem:[%s3307 + $0x8] sm:$0xff]
        %v3310 = vld [vmem:[%s3307 + $0x10] sm:$0xff]
        %v3311 = vld [vmem:[%s3307 + $0x18] sm:$0xff]
        %3312 = vmatprep.subr.mxu0 0.0
        %3313 = vmatpush1.msra.mxu0 %v3308
        %3314 = vmatprep.subr.mxu0 0.0
        %3315 = vmatpush1.msra.mxu0 %v3309
        %3316 = vmatprep.subr.mxu0 0.0
        %3317 = vmatpush1.msra.mxu0 %v3310
        %3318 = vmatprep.subr.mxu0 0.0
        %3319 = vmatpush1.msra.mxu0 %v3311
        %3320 = vmatprep.subr.mxu0 0.0
        %3321 = vmatpush1.msra.mxu0 0.0
        %3322 = vmatprep.subr.mxu0 0.0
        %3323 = vmatpush1.msra.mxu0 0.0
        %3324 = vmatprep.subr.mxu0 0.0
        %3325 = vmatpush1.msra.mxu0 0.0
        %3326 = vmatprep.subr.mxu0 0.0
        %3327 = vmatpush1.msra.mxu0 0.0
        %3328 = vmatprep.subr.mxu0 0.0
        %3329 = vmatpush1.msra.mxu0 0.0
        %3330 = vmatprep.subr.mxu0 0.0
        %3331 = vmatpush1.msra.mxu0 0.0
        %3332 = vmatprep.subr.mxu0 0.0
        %3333 = vmatpush1.msra.mxu0 0.0
        %3334 = vmatprep.subr.mxu0 0.0
        %3335 = vmatpush1.msra.mxu0 0.0
        %3336 = vmatprep.subr.mxu0 0.0
        %3337 = vmatpush1.msra.mxu0 0.0
        %3338 = vmatprep.subr.mxu0 0.0
        %3339 = vmatpush1.msra.mxu0 0.0
        %3340 = vmatprep.subr.mxu0 0.0
        %3341 = vmatpush1.msra.mxu0 0.0
        %3342 = vmatprep.subr.mxu0 0.0
        %3343 = vmatpush1.msra.mxu0 0.0
        %3344 = vmatprep.subr.mxu0 0.0
        %3345 = vmatpush1.msra.mxu0 0.0
        %3346 = vmatprep.subr.mxu0 0.0
        %3347 = vmatpush1.msra.mxu0 0.0
        %3348 = vmatprep.subr.mxu0 0.0
        %3349 = vmatpush1.msra.mxu0 0.0
        %3350 = vmatprep.subr.mxu0 0.0
        %3351 = vmatpush1.msra.mxu0 0.0
        %3352 = vmatprep.subr.mxu0 0.0
        %3353 = vmatpush1.msra.mxu0 0.0
        %3354 = vmatprep.subr.mxu0 0.0
        %3355 = vmatpush1.msra.mxu0 0.0
        %3356 = vmatprep.subr.mxu0 0.0
        %3357 = vmatpush1.msra.mxu0 0.0
        %3358 = vmatprep.subr.mxu0 0.0
        %3359 = vmatpush1.msra.mxu0 0.0
        %3360 = vmatprep.subr.mxu0 0.0
        %3361 = vmatpush1.msra.mxu0 0.0
        %3362 = vmatprep.subr.mxu0 0.0
        %3363 = vmatpush1.msra.mxu0 0.0
        %3364 = vmatprep.subr.mxu0 0.0
        %3365 = vmatpush1.msra.mxu0 0.0
        %3366 = vmatprep.subr.mxu0 0.0
        %3367 = vmatpush1.msra.mxu0 0.0
        %3368 = vmatprep.subr.mxu0 0.0
        %3369 = vmatpush1.msra.mxu0 0.0
        %3370 = vmatprep.subr.mxu0 0.0
        %3371 = vmatpush1.msra.mxu0 0.0
        %3372 = vmatprep.subr.mxu0 0.0
        %3373 = vmatpush1.msra.mxu0 0.0
        %3374 = vmatprep.subr.mxu0 0.0
        %3375 = vmatpush1.msra.mxu0 0.0
        %3376 = vmatprep.mubr.f32.mxu0 0.0
        %3377 = vmatmul.mubr.f32.gmra.mrb[0].mxu0 %v1260
        %v3378 = vpop.f32.mrb[0].mxu0
        %v3379 = vadd.f32 0.0, %v3378
        %v3380 = vpop.f32.mrb[0].mxu0
        %3381 = vmatprep.mubr.f32.mxu0 0.0
        %3382 = vmatmul.mubr.f32.gmra.mrb[0].mxu0 %v1263
        %v3383 = vpop.f32.mrb[0].mxu0
        %v3384 = vadd.f32 0.0, %v3383
        %v3385 = vpop.f32.mrb[0].mxu0
        %3386 = vdwg.mxu0
        %s3387 = scalar_lea.vmem %s8, 96
        %v3388 = vld [vmem:[%s3387] sm:$0xff]
        %v3389 = vld [vmem:[%s3387 + $0x8] sm:$0xff]
        %v3390 = vld [vmem:[%s3387 + $0x10] sm:$0xff]
        %v3391 = vld [vmem:[%s3387 + $0x18] sm:$0xff]
        %3392 = vmatprep.subr.mxu0 0.0
        %3393 = vmatpush1.msra.mxu0 %v3388
        %3394 = vmatprep.subr.mxu0 0.0
        %3395 = vmatpush1.msra.mxu0 %v3389
        %3396 = vmatprep.subr.mxu0 0.0
        %3397 = vmatpush1.msra.mxu0 %v3390
        %3398 = vmatprep.subr.mxu0 0.0
        %3399 = vmatpush1.msra.mxu0 %v3391
        %3400 = vmatprep.subr.mxu0 0.0
        %3401 = vmatpush1.msra.mxu0 0.0
        %3402 = vmatprep.subr.mxu0 0.0
        %3403 = vmatpush1.msra.mxu0 0.0
        %3404 = vmatprep.subr.mxu0 0.0
        %3405 = vmatpush1.msra.mxu0 0.0
        %3406 = vmatprep.subr.mxu0 0.0
        %3407 = vmatpush1.msra.mxu0 0.0
        %3408 = vmatprep.subr.mxu0 0.0
        %3409 = vmatpush1.msra.mxu0 0.0
        %3410 = vmatprep.subr.mxu0 0.0
        %3411 = vmatpush1.msra.mxu0 0.0
        %3412 = vmatprep.subr.mxu0 0.0
        %3413 = vmatpush1.msra.mxu0 0.0
        %3414 = vmatprep.subr.mxu0 0.0
        %3415 = vmatpush1.msra.mxu0 0.0
        %3416 = vmatprep.subr.mxu0 0.0
        %3417 = vmatpush1.msra.mxu0 0.0
        %3418 = vmatprep.subr.mxu0 0.0
        %3419 = vmatpush1.msra.mxu0 0.0
        %3420 = vmatprep.subr.mxu0 0.0
        %3421 = vmatpush1.msra.mxu0 0.0
        %3422 = vmatprep.subr.mxu0 0.0
        %3423 = vmatpush1.msra.mxu0 0.0
        %3424 = vmatprep.subr.mxu0 0.0
        %3425 = vmatpush1.msra.mxu0 0.0
        %3426 = vmatprep.subr.mxu0 0.0
        %3427 = vmatpush1.msra.mxu0 0.0
        %3428 = vmatprep.subr.mxu0 0.0
        %3429 = vmatpush1.msra.mxu0 0.0
        %3430 = vmatprep.subr.mxu0 0.0
        %3431 = vmatpush1.msra.mxu0 0.0
        %3432 = vmatprep.subr.mxu0 0.0
        %3433 = vmatpush1.msra.mxu0 0.0
        %3434 = vmatprep.subr.mxu0 0.0
        %3435 = vmatpush1.msra.mxu0 0.0
        %3436 = vmatprep.subr.mxu0 0.0
        %3437 = vmatpush1.msra.mxu0 0.0
        %3438 = vmatprep.subr.mxu0 0.0
        %3439 = vmatpush1.msra.mxu0 0.0
        %3440 = vmatprep.subr.mxu0 0.0
        %3441 = vmatpush1.msra.mxu0 0.0
        %3442 = vmatprep.subr.mxu0 0.0
        %3443 = vmatpush1.msra.mxu0 0.0
        %3444 = vmatprep.subr.mxu0 0.0
        %3445 = vmatpush1.msra.mxu0 0.0
        %3446 = vmatprep.subr.mxu0 0.0
        %3447 = vmatpush1.msra.mxu0 0.0
        %3448 = vmatprep.subr.mxu0 0.0
        %3449 = vmatpush1.msra.mxu0 0.0
        %3450 = vmatprep.subr.mxu0 0.0
        %3451 = vmatpush1.msra.mxu0 0.0
        %3452 = vmatprep.subr.mxu0 0.0
        %3453 = vmatpush1.msra.mxu0 0.0
        %3454 = vmatprep.subr.mxu0 0.0
        %3455 = vmatpush1.msra.mxu0 0.0
        %3456 = vmatprep.mubr.f32.mxu0 0.0
        %3457 = vmatmul.mubr.f32.gmra.mrb[0].mxu0 %v1424
        %v3458 = vpop.f32.mrb[0].mxu0
        %v3459 = vadd.f32 0.0, %v3458
        %v3460 = vpop.f32.mrb[0].mxu0
        %3461 = vmatprep.mubr.f32.mxu0 0.0
        %3462 = vmatmul.mubr.f32.gmra.mrb[0].mxu0 %v1427
        %v3463 = vpop.f32.mrb[0].mxu0
        %v3464 = vadd.f32 0.0, %v3463
        %v3465 = vpop.f32.mrb[0].mxu0
        %3466 = vdwg.mxu0
        %v3468 = vsel %vm1504, %v3299, 0
        %v3471 = vsel %vm1504, %v3379, 0
        %3473 = vmatprep.subr.mxu0 0.0
        %3474 = vmatpush1.xpose.msra.mxu0 %v3471
        %3475 = vmatprep.subr.mxu0 0.0
        %3476 = vmatpush1.xpose.msra.mxu0 0.0
        %3477 = vmatprep.subr.mxu0 0.0
        %3478 = vmatpush1.xpose.msra.mxu0 0.0
        %3479 = vmatprep.subr.mxu0 0.0
        %3480 = vmatpush1.xpose.msra.mxu0 0.0
        %3481 = vmatprep.subr.mxu0 0.0
        %3482 = vmatpush1.xpose.msra.mxu0 0.0
        %3483 = vmatprep.subr.mxu0 0.0
        %3484 = vmatpush1.xpose.msra.mxu0 0.0
        %3485 = vmatprep.subr.mxu0 0.0
        %3486 = vmatpush1.xpose.msra.mxu0 0.0
        %3487 = vmatprep.subr.mxu0 0.0
        %3488 = vmatpush1.xpose.msra.mxu0 0.0
        %3489 = vmatprep.subr.mxu0 0.0
        %3490 = vmatpush1.xpose.msra.mxu0 0.0
        %3491 = vmatprep.subr.mxu0 0.0
        %3492 = vmatpush1.xpose.msra.mxu0 0.0
        %3493 = vmatprep.subr.mxu0 0.0
        %3494 = vmatpush1.xpose.msra.mxu0 0.0
        %3495 = vmatprep.subr.mxu0 0.0
        %3496 = vmatpush1.xpose.msra.mxu0 0.0
        %3497 = vmatprep.subr.mxu0 0.0
        %3498 = vmatpush1.xpose.msra.mxu0 0.0
        %3499 = vmatprep.subr.mxu0 0.0
        %3500 = vmatpush1.xpose.msra.mxu0 0.0
        %3501 = vmatprep.subr.mxu0 0.0
        %3502 = vmatpush1.xpose.msra.mxu0 0.0
        %3503 = vmatprep.subr.mxu0 0.0
        %3504 = vmatpush1.xpose.msra.mxu0 0.0
        %3505 = vmatprep.subr.mxu0 0.0
        %3506 = vmatpush1.xpose.msra.mxu0 0.0
        %3507 = vmatprep.subr.mxu0 0.0
        %3508 = vmatpush1.xpose.msra.mxu0 0.0
        %3509 = vmatprep.subr.mxu0 0.0
        %3510 = vmatpush1.xpose.msra.mxu0 0.0
        %3511 = vmatprep.subr.mxu0 0.0
        %3512 = vmatpush1.xpose.msra.mxu0 0.0
        %3513 = vmatprep.subr.mxu0 0.0
        %3514 = vmatpush1.xpose.msra.mxu0 0.0
        %3515 = vmatprep.subr.mxu0 0.0
        %3516 = vmatpush1.xpose.msra.mxu0 0.0
        %3517 = vmatprep.subr.mxu0 0.0
        %3518 = vmatpush1.xpose.msra.mxu0 0.0
        %3519 = vmatprep.subr.mxu0 0.0
        %3520 = vmatpush1.xpose.msra.mxu0 0.0
        %3521 = vmatprep.subr.mxu0 0.0
        %3522 = vmatpush1.xpose.msra.mxu0 0.0
        %3523 = vmatprep.subr.mxu0 0.0
        %3524 = vmatpush1.xpose.msra.mxu0 0.0
        %3525 = vmatprep.subr.mxu0 0.0
        %3526 = vmatpush1.xpose.msra.mxu0 0.0
        %3527 = vmatprep.subr.mxu0 0.0
        %3528 = vmatpush1.xpose.msra.mxu0 0.0
        %3529 = vmatprep.subr.mxu0 0.0
        %3530 = vmatpush1.xpose.msra.mxu0 0.0
        %3531 = vmatprep.subr.mxu0 0.0
        %3532 = vmatpush1.xpose.msra.mxu0 0.0
        %3533 = vmatprep.subr.mxu0 0.0
        %3534 = vmatpush1.xpose.msra.mxu0 0.0
        %3535 = vmatprep.subr.mxu0 0.0
        %3536 = vmatpush1.xpose.msra.mxu0 0.0
        %3537 = vmatprep.mubr.f32.mxu0 0.0
        %3538 = vmatmul.mubr.f32.gmra.mrb[0].mxu0 %v3468
        %v3539 = vpop.f32.mrb[0].mxu0
        %v3540 = vadd.f32 0.0, %v3539
        %v3541 = vpop.f32.mrb[0].mxu0
        %3542 = vdwg.mxu0
        %v3544 = vsel %vm1504, %v3304, 0
        %v3547 = vsel %vm1504, %v3384, 0
        %3549 = vmatprep.subr.mxu0 0.0
        %3550 = vmatpush1.xpose.msra.mxu0 %v3547
        %3551 = vmatprep.subr.mxu0 0.0
        %3552 = vmatpush1.xpose.msra.mxu0 0.0
        %3553 = vmatprep.subr.mxu0 0.0
        %3554 = vmatpush1.xpose.msra.mxu0 0.0
        %3555 = vmatprep.subr.mxu0 0.0
        %3556 = vmatpush1.xpose.msra.mxu0 0.0
        %3557 = vmatprep.subr.mxu0 0.0
        %3558 = vmatpush1.xpose.msra.mxu0 0.0
        %3559 = vmatprep.subr.mxu0 0.0
        %3560 = vmatpush1.xpose.msra.mxu0 0.0
        %3561 = vmatprep.subr.mxu0 0.0
        %3562 = vmatpush1.xpose.msra.mxu0 0.0
        %3563 = vmatprep.subr.mxu0 0.0
        %3564 = vmatpush1.xpose.msra.mxu0 0.0
        %3565 = vmatprep.subr.mxu0 0.0
        %3566 = vmatpush1.xpose.msra.mxu0 0.0
        %3567 = vmatprep.subr.mxu0 0.0
        %3568 = vmatpush1.xpose.msra.mxu0 0.0
        %3569 = vmatprep.subr.mxu0 0.0
        %3570 = vmatpush1.xpose.msra.mxu0 0.0
        %3571 = vmatprep.subr.mxu0 0.0
        %3572 = vmatpush1.xpose.msra.mxu0 0.0
        %3573 = vmatprep.subr.mxu0 0.0
        %3574 = vmatpush1.xpose.msra.mxu0 0.0
        %3575 = vmatprep.subr.mxu0 0.0
        %3576 = vmatpush1.xpose.msra.mxu0 0.0
        %3577 = vmatprep.subr.mxu0 0.0
        %3578 = vmatpush1.xpose.msra.mxu0 0.0
        %3579 = vmatprep.subr.mxu0 0.0
        %3580 = vmatpush1.xpose.msra.mxu0 0.0
        %3581 = vmatprep.subr.mxu0 0.0
        %3582 = vmatpush1.xpose.msra.mxu0 0.0
        %3583 = vmatprep.subr.mxu0 0.0
        %3584 = vmatpush1.xpose.msra.mxu0 0.0
        %3585 = vmatprep.subr.mxu0 0.0
        %3586 = vmatpush1.xpose.msra.mxu0 0.0
        %3587 = vmatprep.subr.mxu0 0.0
        %3588 = vmatpush1.xpose.msra.mxu0 0.0
        %3589 = vmatprep.subr.mxu0 0.0
        %3590 = vmatpush1.xpose.msra.mxu0 0.0
        %3591 = vmatprep.subr.mxu0 0.0
        %3592 = vmatpush1.xpose.msra.mxu0 0.0
        %3593 = vmatprep.subr.mxu0 0.0
        %3594 = vmatpush1.xpose.msra.mxu0 0.0
        %3595 = vmatprep.subr.mxu0 0.0
        %3596 = vmatpush1.xpose.msra.mxu0 0.0
        %3597 = vmatprep.subr.mxu0 0.0
        %3598 = vmatpush1.xpose.msra.mxu0 0.0
        %3599 = vmatprep.subr.mxu0 0.0
        %3600 = vmatpush1.xpose.msra.mxu0 0.0
        %3601 = vmatprep.subr.mxu0 0.0
        %3602 = vmatpush1.xpose.msra.mxu0 0.0
        %3603 = vmatprep.subr.mxu0 0.0
        %3604 = vmatpush1.xpose.msra.mxu0 0.0
        %3605 = vmatprep.subr.mxu0 0.0
        %3606 = vmatpush1.xpose.msra.mxu0 0.0
        %3607 = vmatprep.subr.mxu0 0.0
        %3608 = vmatpush1.xpose.msra.mxu0 0.0
        %3609 = vmatprep.subr.mxu0 0.0
        %3610 = vmatpush1.xpose.msra.mxu0 0.0
        %3611 = vmatprep.subr.mxu0 0.0
        %3612 = vmatpush1.xpose.msra.mxu0 0.0
        %3613 = vmatprep.mubr.f32.mxu0 0.0
        %3614 = vmatmul.mubr.f32.gmra.mrb[0].mxu0 %v3544
        %v3615 = vpop.f32.mrb[0].mxu0
        %v3616 = vadd.f32 0.0, %v3615
        %v3617 = vpop.f32.mrb[0].mxu0
        %3618 = vdwg.mxu0
        %v3619 = vmul.f32 %v3540, 0.17677669
        %v3620 = vmul.f32 %v3616, 0.17677669
        %v3621 = vsel %vm1504, %v3619, -inf
        %3622 = vmax.xlane.f32.xlu0 %v3621
        %v3623 = vpop.xlane.xlu0 %3622
        %v3624 = vsel %vm1504, %v3620, -inf
        %3625 = vmax.xlane.f32.xlu0 %v3624
        %v3626 = vpop.xlane.xlu0 %3625
        %v3627 = vsub.f32 %v3619, %v3623
        %v3628 = vsub.f32 %v3620, %v3626
        %v3629 = vmul.f32 %v3627, 1.442695
        %v3630 = vpow.pop %v3629
        %v3631 = vmul.f32 %v3628, 1.442695
        %v3632 = vpow.pop %v3631
        %v3633 = vsel %vm1504, %v3630, 0.0
        %3634 = vadd.xlane.f32.xlu0 %v3633
        %v3635 = vpop.xlane.xlu0 %3634
        %v3636 = vsel %vm1504, %v3632, 0.0
        %3637 = vadd.xlane.f32.xlu0 %v3636
        %v3638 = vpop.xlane.xlu0 %3637
        %v3639 = vrcp.pop %v3635
        %v3640 = vrcp.pop %v3638
        %v3641 = vmul.f32 %v3635, %v3639
        %v3642 = vmul.f32 %v3638, %v3640
        %v3643 = vsub.f32 2.0, %v3641
        %v3644 = vsub.f32 2.0, %v3642
        %v3645 = vmul.f32 %v3639, %v3643
        %v3646 = vmul.f32 %v3640, %v3644
        %v3647 = vmul.f32 %v3630, %v3645
        %v3648 = vmul.f32 %v3632, %v3646
        %s3649 = scalar_lea.vmem %s434, 48 [#allocation4]
        %3650 = vst.msk [vmem:[%s3649] sm:$0xff] %vm1504, %v3647
        %3651 = vst.msk [vmem:[%s3649 + $0x8] sm:$0xff] %vm1504, %v3648
        %v3653 = vsel %vm1504, %v3647, 0
        %3655 = vmatprep.subr.mxu0 0.0
        %3656 = vmatpush1.msra.mxu0 %v3459
        %3657 = vmatprep.subr.mxu0 0.0
        %3658 = vmatpush1.msra.mxu0 0.0
        %3659 = vmatprep.subr.mxu0 0.0
        %3660 = vmatpush1.msra.mxu0 0.0
        %3661 = vmatprep.subr.mxu0 0.0
        %3662 = vmatpush1.msra.mxu0 0.0
        %3663 = vmatprep.subr.mxu0 0.0
        %3664 = vmatpush1.msra.mxu0 0.0
        %3665 = vmatprep.subr.mxu0 0.0
        %3666 = vmatpush1.msra.mxu0 0.0
        %3667 = vmatprep.subr.mxu0 0.0
        %3668 = vmatpush1.msra.mxu0 0.0
        %3669 = vmatprep.subr.mxu0 0.0
        %3670 = vmatpush1.msra.mxu0 0.0
        %3671 = vmatprep.subr.mxu0 0.0
        %3672 = vmatpush1.msra.mxu0 0.0
        %3673 = vmatprep.subr.mxu0 0.0
        %3674 = vmatpush1.msra.mxu0 0.0
        %3675 = vmatprep.subr.mxu0 0.0
        %3676 = vmatpush1.msra.mxu0 0.0
        %3677 = vmatprep.subr.mxu0 0.0
        %3678 = vmatpush1.msra.mxu0 0.0
        %3679 = vmatprep.subr.mxu0 0.0
        %3680 = vmatpush1.msra.mxu0 0.0
        %3681 = vmatprep.subr.mxu0 0.0
        %3682 = vmatpush1.msra.mxu0 0.0
        %3683 = vmatprep.subr.mxu0 0.0
        %3684 = vmatpush1.msra.mxu0 0.0
        %3685 = vmatprep.subr.mxu0 0.0
        %3686 = vmatpush1.msra.mxu0 0.0
        %3687 = vmatprep.subr.mxu0 0.0
        %3688 = vmatpush1.msra.mxu0 0.0
        %3689 = vmatprep.subr.mxu0 0.0
        %3690 = vmatpush1.msra.mxu0 0.0
        %3691 = vmatprep.subr.mxu0 0.0
        %3692 = vmatpush1.msra.mxu0 0.0
        %3693 = vmatprep.subr.mxu0 0.0
        %3694 = vmatpush1.msra.mxu0 0.0
        %3695 = vmatprep.subr.mxu0 0.0
        %3696 = vmatpush1.msra.mxu0 0.0
        %3697 = vmatprep.subr.mxu0 0.0
        %3698 = vmatpush1.msra.mxu0 0.0
        %3699 = vmatprep.subr.mxu0 0.0
        %3700 = vmatpush1.msra.mxu0 0.0
        %3701 = vmatprep.subr.mxu0 0.0
        %3702 = vmatpush1.msra.mxu0 0.0
        %3703 = vmatprep.subr.mxu0 0.0
        %3704 = vmatpush1.msra.mxu0 0.0
        %3705 = vmatprep.subr.mxu0 0.0
        %3706 = vmatpush1.msra.mxu0 0.0
        %3707 = vmatprep.subr.mxu0 0.0
        %3708 = vmatpush1.msra.mxu0 0.0
        %3709 = vmatprep.subr.mxu0 0.0
        %3710 = vmatpush1.msra.mxu0 0.0
        %3711 = vmatprep.subr.mxu0 0.0
        %3712 = vmatpush1.msra.mxu0 0.0
        %3713 = vmatprep.subr.mxu0 0.0
        %3714 = vmatpush1.msra.mxu0 0.0
        %3715 = vmatprep.subr.mxu0 0.0
        %3716 = vmatpush1.msra.mxu0 0.0
        %3717 = vmatprep.subr.mxu0 0.0
        %3718 = vmatpush1.msra.mxu0 0.0
        %3719 = vmatprep.mubr.f32.mxu0 0.0
        %3720 = vmatmul.mubr.f32.gmra.mrb[0].mxu0 %v3653
        %v3721 = vpop.f32.mrb[0].mxu0
        %v3722 = vadd.f32 0.0, %v3721
        %v3723 = vpop.f32.mrb[0].mxu0
        %3724 = vdwg.mxu0
        %v3726 = vsel %vm1504, %v3648, 0
        %3728 = vmatprep.subr.mxu0 0.0
        %3729 = vmatpush1.msra.mxu0 %v3464
        %3730 = vmatprep.subr.mxu0 0.0
        %3731 = vmatpush1.msra.mxu0 0.0
        %3732 = vmatprep.subr.mxu0 0.0
        %3733 = vmatpush1.msra.mxu0 0.0
        %3734 = vmatprep.subr.mxu0 0.0
        %3735 = vmatpush1.msra.mxu0 0.0
        %3736 = vmatprep.subr.mxu0 0.0
        %3737 = vmatpush1.msra.mxu0 0.0
        %3738 = vmatprep.subr.mxu0 0.0
        %3739 = vmatpush1.msra.mxu0 0.0
        %3740 = vmatprep.subr.mxu0 0.0
        %3741 = vmatpush1.msra.mxu0 0.0
        %3742 = vmatprep.subr.mxu0 0.0
        %3743 = vmatpush1.msra.mxu0 0.0
        %3744 = vmatprep.subr.mxu0 0.0
        %3745 = vmatpush1.msra.mxu0 0.0
        %3746 = vmatprep.subr.mxu0 0.0
        %3747 = vmatpush1.msra.mxu0 0.0
        %3748 = vmatprep.subr.mxu0 0.0
        %3749 = vmatpush1.msra.mxu0 0.0
        %3750 = vmatprep.subr.mxu0 0.0
        %3751 = vmatpush1.msra.mxu0 0.0
        %3752 = vmatprep.subr.mxu0 0.0
        %3753 = vmatpush1.msra.mxu0 0.0
        %3754 = vmatprep.subr.mxu0 0.0
        %3755 = vmatpush1.msra.mxu0 0.0
        %3756 = vmatprep.subr.mxu0 0.0
        %3757 = vmatpush1.msra.mxu0 0.0
        %3758 = vmatprep.subr.mxu0 0.0
        %3759 = vmatpush1.msra.mxu0 0.0
        %3760 = vmatprep.subr.mxu0 0.0
        %3761 = vmatpush1.msra.mxu0 0.0
        %3762 = vmatprep.subr.mxu0 0.0
        %3763 = vmatpush1.msra.mxu0 0.0
        %3764 = vmatprep.subr.mxu0 0.0
        %3765 = vmatpush1.msra.mxu0 0.0
        %3766 = vmatprep.subr.mxu0 0.0
        %3767 = vmatpush1.msra.mxu0 0.0
        %3768 = vmatprep.subr.mxu0 0.0
        %3769 = vmatpush1.msra.mxu0 0.0
        %3770 = vmatprep.subr.mxu0 0.0
        %3771 = vmatpush1.msra.mxu0 0.0
        %3772 = vmatprep.subr.mxu0 0.0
        %3773 = vmatpush1.msra.mxu0 0.0
        %3774 = vmatprep.subr.mxu0 0.0
        %3775 = vmatpush1.msra.mxu0 0.0
        %3776 = vmatprep.subr.mxu0 0.0
        %3777 = vmatpush1.msra.mxu0 0.0
        %3778 = vmatprep.subr.mxu0 0.0
        %3779 = vmatpush1.msra.mxu0 0.0
        %3780 = vmatprep.subr.mxu0 0.0
        %3781 = vmatpush1.msra.mxu0 0.0
        %3782 = vmatprep.subr.mxu0 0.0
        %3783 = vmatpush1.msra.mxu0 0.0
        %3784 = vmatprep.subr.mxu0 0.0
        %3785 = vmatpush1.msra.mxu0 0.0
        %3786 = vmatprep.subr.mxu0 0.0
        %3787 = vmatpush1.msra.mxu0 0.0
        %3788 = vmatprep.subr.mxu0 0.0
        %3789 = vmatpush1.msra.mxu0 0.0
        %3790 = vmatprep.subr.mxu0 0.0
        %3791 = vmatpush1.msra.mxu0 0.0
        %3792 = vmatprep.mubr.f32.mxu0 0.0
        %3793 = vmatmul.mubr.f32.gmra.mrb[0].mxu0 %v3726
        %v3794 = vpop.f32.mrb[0].mxu0
        %v3795 = vadd.f32 0.0, %v3794
        %v3796 = vpop.f32.mrb[0].mxu0
        %3797 = vdwg.mxu0
        %s3798 = scalar_lea.vmem %s9, 24
        %v3799 = vld [vmem:[%s3798] sm:$0xff]
        %v3801 = vsel %vm1504, %v3722, 0
        %v3804 = vsel %vm1504, %v3795, 0
        %3806 = vmatprep.subr.mxu0 0.0
        %3807 = vmatpush1.msra.mxu0 %v3799
        %3808 = vmatprep.subr.mxu0 0.0
        %3809 = vmatpush1.msra.mxu0 0.0
        %3810 = vmatprep.subr.mxu0 0.0
        %3811 = vmatpush1.msra.mxu0 0.0
        %3812 = vmatprep.subr.mxu0 0.0
        %3813 = vmatpush1.msra.mxu0 0.0
        %3814 = vmatprep.subr.mxu0 0.0
        %3815 = vmatpush1.msra.mxu0 0.0
        %3816 = vmatprep.subr.mxu0 0.0
        %3817 = vmatpush1.msra.mxu0 0.0
        %3818 = vmatprep.subr.mxu0 0.0
        %3819 = vmatpush1.msra.mxu0 0.0
        %3820 = vmatprep.subr.mxu0 0.0
        %3821 = vmatpush1.msra.mxu0 0.0
        %3822 = vmatprep.subr.mxu0 0.0
        %3823 = vmatpush1.msra.mxu0 0.0
        %3824 = vmatprep.subr.mxu0 0.0
        %3825 = vmatpush1.msra.mxu0 0.0
        %3826 = vmatprep.subr.mxu0 0.0
        %3827 = vmatpush1.msra.mxu0 0.0
        %3828 = vmatprep.subr.mxu0 0.0
        %3829 = vmatpush1.msra.mxu0 0.0
        %3830 = vmatprep.subr.mxu0 0.0
        %3831 = vmatpush1.msra.mxu0 0.0
        %3832 = vmatprep.subr.mxu0 0.0
        %3833 = vmatpush1.msra.mxu0 0.0
        %3834 = vmatprep.subr.mxu0 0.0
        %3835 = vmatpush1.msra.mxu0 0.0
        %3836 = vmatprep.subr.mxu0 0.0
        %3837 = vmatpush1.msra.mxu0 0.0
        %3838 = vmatprep.subr.mxu0 0.0
        %3839 = vmatpush1.msra.mxu0 0.0
        %3840 = vmatprep.subr.mxu0 0.0
        %3841 = vmatpush1.msra.mxu0 0.0
        %3842 = vmatprep.subr.mxu0 0.0
        %3843 = vmatpush1.msra.mxu0 0.0
        %3844 = vmatprep.subr.mxu0 0.0
        %3845 = vmatpush1.msra.mxu0 0.0
        %3846 = vmatprep.subr.mxu0 0.0
        %3847 = vmatpush1.msra.mxu0 0.0
        %3848 = vmatprep.subr.mxu0 0.0
        %3849 = vmatpush1.msra.mxu0 0.0
        %3850 = vmatprep.subr.mxu0 0.0
        %3851 = vmatpush1.msra.mxu0 0.0
        %3852 = vmatprep.subr.mxu0 0.0
        %3853 = vmatpush1.msra.mxu0 0.0
        %3854 = vmatprep.subr.mxu0 0.0
        %3855 = vmatpush1.msra.mxu0 0.0
        %3856 = vmatprep.subr.mxu0 0.0
        %3857 = vmatpush1.msra.mxu0 0.0
        %3858 = vmatprep.subr.mxu0 0.0
        %3859 = vmatpush1.msra.mxu0 0.0
        %3860 = vmatprep.subr.mxu0 0.0
        %3861 = vmatpush1.msra.mxu0 0.0
        %3862 = vmatprep.subr.mxu0 0.0
        %3863 = vmatpush1.msra.mxu0 0.0
        %3864 = vmatprep.subr.mxu0 0.0
        %3865 = vmatpush1.msra.mxu0 0.0
        %3866 = vmatprep.subr.mxu0 0.0
        %3867 = vmatpush1.msra.mxu0 0.0
        %3868 = vmatprep.subr.mxu0 0.0
        %3869 = vmatpush1.msra.mxu0 0.0
        %3870 = vmatprep.mubr.f32.mxu0 0.0
        %3871 = vmatmul.mubr.f32.gmra.mrb[0].mxu0 %v3801
        %v3872 = vpop.f32.mrb[0].mxu0
        %v3873 = vadd.f32 0.0, %v3872
        %v3874 = vpop.f32.mrb[0].mxu0
        %3875 = vmatprep.mubr.f32.mxu0 0.0
        %3876 = vmatmul.mubr.f32.gmra.mrb[0].mxu0 %v3804
        %v3877 = vpop.f32.mrb[0].mxu0
        %v3878 = vadd.f32 0.0, %v3877
        %v3879 = vpop.f32.mrb[0].mxu0
        %3880 = vdwg.mxu0
        %v3881 = vadd.f32 %v3225, %v3873
        %v3882 = vadd.f32 %v3226, %v3878
        %v3883 = vadd.f32 %v449, %v3881
        %v3884 = vadd.f32 %v450, %v3882
        %v3885 = vld [vmem:[%s10] sm:$0x1]
        %v3887 = vlaneseq
        %v3888 = vshrl.u32 %v3887, 7
        %v3889 = vsub.s32 0, %v3888
        %v3890 = vrot.slane %v3885, %v3889
        %v3892 = vadd.f32 %v3883, %v3890
        %v3893 = vadd.f32 %v3884, %v3890
        %3894 = vst.msk [vmem:[%s427] sm:$0xff] %vm453, %v3892
        %3895 = vst.msk [vmem:[%s427 + $0x8] sm:$0xff] %vm453, %v3893
        %s3896 = sand.u32 %s279, 1
        %s3897 = scalar_lea.sflag [#allocation3], %s3896
        %s3898 = sand.u32 %s279, 1
        %s3899 = smul.addr %s3898, 16
        %s3900 = scalar_lea.vmem [#allocation2], %s3899
        %s3901 = sand.u32 %s305, 1
        %s3902 = scalar_lea.sflag [#allocation5], %s3901
        %s3903 = sand.u32 %s305, 1
        %s3904 = smul.addr %s3903, 64
        %s3905 = scalar_lea.vmem [#allocation4], %s3904
        // Predicated region
        $region65: #{tpu_custom_call.1} parent=63 // pred_check
          %p3906 = pneg %p289
        $region66: #{tpu_custom_call.1} parent=63 // pred_check_branch
          %3908 = sbr.rel (%p3906) target = $region68
        $region67: #{tpu_custom_call.1} parent=63 // pred_region
          %s3909 = smul.u32 2, %s30
          %s3911 = ssub.s32 256, 256
          %3912 = vsyncadd %s3897, %s3911
          %s3913 = smul.addr %s3909, 128
          %s3914 = scalar_lea.hbm %s11, %s3913
          %s3915 = sshll.u32 %s3900, 4
          %s3916 = int_to_ptr.vmem [resolvable:$true] %s3915
          %3921 = dma.vmem_to_hbm [thread:$0]  %s3916, 256, %s3914, %s3897, 128, 128, 8
        $region68: #{tpu_custom_call.1} parent=63 // pred_fallthru
          _
        // Predicated region
        $region69: #{tpu_custom_call.1} parent=63 // pred_check
          %p3922 = pneg %p315
        $region70: #{tpu_custom_call.1} parent=63 // pred_check_branch
          %3924 = sbr.rel (%p3922) target = $region72
        $region71: #{tpu_custom_call.1} parent=63 // pred_region
          #allocation7 [shape = 'u32[6]{0}', space=smem, size = 0x18, scoped, tag = 'DMA stride descriptor']
          %s3925 = smul.u32 2, %s30
          %s3927 = ssub.s32 1024, 1024
          %3928 = vsyncadd %s3902, %s3927
          %s3929 = smul.addr %s3925, 128
          %s3930 = scalar_lea.hbm %s12, %s3929
          %s3932 = sshll.u32 1, 14
          %s3933 = sxor.u32 4294967295, %s3932
          %s3936 = sshll.u32 7, 18
          %s3937 = sxor.u32 4294967295, %s3936
          %s3938 = sand.u32 0, %s3937
          %s3940 = sor.u32 %s3938, 0
          %s3942 = sshll.u32 3, 24
          %s3943 = sxor.u32 4294967295, %s3942
          %s3944 = sand.u32 %s3940, %s3943
          %s3946 = sor.u32 %s3944, 0
          %s3947 = sshll.u32 %s3905, 4
          %s3948 = int_to_ptr.vmem [resolvable:$true] %s3947
          %3954 = sst [smem:[#allocation7]] 256
          %s3955 = scalar_lea.smem [#allocation7], 1
          %3956 = sst [smem:[%s3955]] 512
          %s3957 = scalar_lea.smem [#allocation7], 2
          %3958 = sst [smem:[%s3957]] 2
          %s3959 = scalar_lea.smem [#allocation7], 3
          %3960 = sst [smem:[%s3959]] 128
          %s3961 = scalar_lea.smem [#allocation7], 4
          %3962 = sst [smem:[%s3961]] 128
          %s3963 = scalar_lea.smem [#allocation7], 5
          %3964 = sst [smem:[%s3963]] 8
          %3966 = dma.general %s3948, 1024, %s3930, %s3902, [#allocation6], [#allocation7], %s3946, 0
        $region72: #{tpu_custom_call.1} parent=63 // pred_fallthru
          _
      $region64: #{tpu_custom_call.1} parent=5 // pred_fallthru
        _
      %p3967 = scmp.le.s32.totalorder 2, %s25
      // Predicated region
      $region73: #{tpu_custom_call.1} parent=5 // pred_check
        %p3968 = pneg %p3967
      $region74: #{tpu_custom_call.1} parent=5 // pred_check_branch
        %3970 = sbr.rel (%p3968) target = $region76
      $region75: #{tpu_custom_call.1} parent=5 // pred_region
        %s3971 = ssub.s32 %s25, 2
        // Predicated region
        $region77: #{tpu_custom_call.1} parent=75 // pred_check
          %p3972 = pneg %p295
        $region78: #{tpu_custom_call.1} parent=75 // pred_check_branch
          %3974 = sbr.rel (%p3972) target = $region80
        $region79: #{tpu_custom_call.1} parent=75 // pred_region
          %s3975 = sand.u32 %s280, 1
          %s3976 = scalar_lea.sflag [#allocation3], %s3975
          %s3977 = sand.u32 %s280, 1
          %s3978 = smul.addr %s3977, 16
          %s3979 = scalar_lea.vmem [#allocation2], %s3978
          %3980 = dma.done %s3976, 256
        $region80: #{tpu_custom_call.1} parent=75 // pred_fallthru
          _
        // Predicated region
        $region81: #{tpu_custom_call.1} parent=75 // pred_check
          %p3981 = pneg %p321
        $region82: #{tpu_custom_call.1} parent=75 // pred_check_branch
          %3983 = sbr.rel (%p3981) target = $region84
        $region83: #{tpu_custom_call.1} parent=75 // pred_region
          %s3984 = sand.u32 %s306, 1
          %s3985 = scalar_lea.sflag [#allocation5], %s3984
          %s3986 = sand.u32 %s306, 1
          %s3987 = smul.addr %s3986, 64
          %s3988 = scalar_lea.vmem [#allocation4], %s3987
          %3989 = dma.done %s3985, 1024
        $region84: #{tpu_custom_call.1} parent=75 // pred_fallthru
          _
      $region76: #{tpu_custom_call.1} parent=5 // pred_fallthru
        _
    $region6: #{tpu_custom_call.1} parent=1 // loop_footer
      %s29 = sadd.s32 1, %s25
    $region7: #{tpu_custom_call.1} parent=1 // loop_footer_branch
      %24 = sbr.rel target = $region3
    $region8: #{tpu_custom_call.1} parent=1 // loop_exit
      _
    %3990 = vsyncpa [#allocation3], 1
    %s3991 = scalar_lea.sflag [#allocation3], 1
    %3992 = vsyncpa %s3991, 1
    %3993 = vsyncpa [#allocation5], 1
    %s3994 = scalar_lea.sflag [#allocation5], 1
    %3995 = vsyncpa %s3994, 1

</llo_original>
